<compile_context>
chip_gen: v5e
topology: v5e:2x2
jax: 0.10.0
libtpu: 0.0.40
codegen_flags: <defaults>
</compile_context>

<pallas_src>
import jax
import jax.numpy as jnp
from jax.experimental import pallas as pl
from jax.experimental.pallas import tpu as pltpu

VOCAB = 11
VOCAB_PAD = 16       # pad token axis of the folded encoder table to a multiple of 8
D_EMB = 512
D_H1 = 256
D_LAT = 128
D_OUT = 11
D_OUT_PAD = 128      # lane-dense output width (zero-padded proj columns)


def _vae_kernel(tok_ref, eps_ref,
                enc_ref,
                w3_ref, b3_ref, w4_ref, b4_ref,
                wp_ref, bp_ref,
                out_ref):
    tm = tok_ref.shape[0]

    # one-hot over the (padded) vocab; padded tail tokens are 0 -> valid rows,
    # sliced off in the wrapper.
    tok = tok_ref[...]                                          # (TM, 1) int32
    iota = jax.lax.broadcasted_iota(jnp.int32, (tm, VOCAB_PAD), 1)
    onehot = (tok == iota).astype(jnp.bfloat16)                 # (TM, 16)

    # folded encoder: ms[m, :] == enc_table[tok[m], :] == (mu | sigma)
    ms = jnp.dot(onehot, enc_ref[...], preferred_element_type=jnp.float32)
    mu = ms[:, :D_LAT]
    sigma = ms[:, D_LAT:]

    # reparameterization: z = mu + exp(0.5 * sigma) * eps   (eps streamed as bf16)
    eps = eps_ref[...].astype(jnp.float32)                      # (TM, 128)
    z = mu + jnp.exp(0.5 * sigma) * eps
    z = z.astype(jnp.bfloat16)

    # decoder: Linear(128,256) + ReLU ; Linear(256,512) + ReLU
    d1 = jnp.dot(z, w3_ref[...], preferred_element_type=jnp.float32) + b3_ref[...]
    d1 = jnp.maximum(d1, 0.0).astype(jnp.bfloat16)
    d2 = jnp.dot(d1, w4_ref[...], preferred_element_type=jnp.float32) + b4_ref[...]
    d2 = jnp.maximum(d2, 0.0).astype(jnp.bfloat16)              # (TM, 512)

    # proj: Linear(512, 128-padded) -> lane-dense unmasked (TM, 128) store
    out_ref[...] = (jnp.dot(d2, wp_ref[...], preferred_element_type=jnp.float32)
                    + bp_ref[...])


def _full_spec(shape):
    # whole-array block, resident (constant index) across all grid steps
    return pl.BlockSpec(shape, lambda i: tuple(0 for _ in shape))


@jax.jit
def vae_forward(x_tokens, params, eps):
    """x_tokens: int NCHW (B, 1, 30, 30) or (30, 30). Returns (B, 11, 30, 30) f32."""
    if x_tokens.ndim > 3:
        b = x_tokens.shape[0]
        tok = x_tokens.reshape(b, 900)
    else:
        b = 1
        tok = x_tokens.reshape(1, 900)
    tok = tok.reshape(-1, 1).astype(jnp.int32)                  # (N, 1) token ids

    n = tok.shape[0]
    # adaptive row tile: keep >= 4 grid steps for small N so both v7x TCs get work;
    # larger tile for big batches to amortize per-step overhead.
    tm = 256 if n <= 2048 else 512
    n_pad = pl.cdiv(n, tm) * tm
    pad = n_pad - n
    tok_p = jnp.pad(tok, ((0, pad), (0, 0)))                    # pad with token 0
    eps_p = jnp.pad(eps.reshape(-1, D_LAT).astype(jnp.bfloat16), ((0, pad), (0, 0)))

    grid = (n_pad // tm,)

    weight_args = (
        params["enc_table"],
        params["w3"], params["b3"], params["w4"], params["b4"],
        params["wp"], params["bp"],
    )

    in_specs = [
        pl.BlockSpec((tm, 1), lambda i: (i, 0)),       # token ids
        pl.BlockSpec((tm, D_LAT), lambda i: (i, 0)),   # eps (bf16)
    ] + [_full_spec(w.shape) for w in weight_args]

    out = pl.pallas_call(
        _vae_kernel,
        out_shape=jax.ShapeDtypeStruct((n_pad, D_OUT_PAD), jnp.float32),
        grid_spec=pltpu.PrefetchScalarGridSpec(
            num_scalar_prefetch=0,
            grid=grid,
            in_specs=in_specs,
            out_specs=pl.BlockSpec((tm, D_OUT_PAD), lambda i: (i, 0)),
        ),
        compiler_params=pltpu.CompilerParams(
            dimension_semantics=("parallel",),
            vmem_limit_bytes=32 * 1024 * 1024,
        ),
    )(tok_p, eps_p, *weight_args)

    out = out[:n, :D_OUT]                                       # (N, 11)
    out = out.reshape(-1, 30, 30, 11)                           # NHWC-ish
    return jnp.transpose(out, (0, 3, 1, 2))                     # NCHW (B, 11, 30, 30)


def init_params(key):
    ks = jax.random.split(key, 16)

    def lin(kw, kb, d_in, d_out):
        scale = 1.0 / jnp.sqrt(d_in)
        w = jax.random.uniform(kw, (d_in, d_out), jnp.float32, -scale, scale)
        b = jax.random.uniform(kb, (1, d_out), jnp.float32, -scale, scale)
        return w, b

    emb = jax.random.normal(ks[0], (VOCAB, D_EMB), jnp.float32)
    emb_pad = jnp.zeros((VOCAB_PAD, D_EMB), jnp.float32).at[:VOCAB].set(emb)

    w1, b1 = lin(ks[1], ks[2], D_EMB, D_H1)
    w2, b2 = lin(ks[3], ks[4], D_H1, D_LAT)
    wmu, bmu = lin(ks[5], ks[6], D_LAT, D_LAT)
    wsig, bsig = lin(ks[7], ks[8], D_LAT, D_LAT)
    w3, b3 = lin(ks[9], ks[10], D_LAT, D_H1)
    w4, b4 = lin(ks[11], ks[12], D_H1, D_EMB)
    wp, bp = lin(ks[13], ks[14], D_EMB, D_OUT)

    # Fold token -> (mu | sigma): the encoder output depends only on the token id,
    # so precompute it per token in f32 and round once to bf16.
    h = jnp.maximum(emb_pad @ w1 + b1, 0.0)
    h = jnp.maximum(h @ w2 + b2, 0.0)
    enc_table = jnp.concatenate([h @ wmu + bmu, h @ wsig + bsig], axis=1)  # (16, 256)

    wp_pad = jnp.zeros((D_EMB, D_OUT_PAD), jnp.float32).at[:, :D_OUT].set(wp)
    bp_pad = jnp.zeros((1, D_OUT_PAD), jnp.float32).at[:, :D_OUT].set(bp)

    return {
        # bf16 weights (MXU path), f32 biases (added post-accumulation)
        "enc_table": enc_table.astype(jnp.bfloat16),
        "w3": w3.astype(jnp.bfloat16), "b3": b3,
        "w4": w4.astype(jnp.bfloat16), "b4": b4,
        "wp": wp_pad.astype(jnp.bfloat16), "bp": bp_pad,
    }


if __name__ == "__main__":
    key = jax.random.PRNGKey(0)
    k_param, k_tok, k_eps = jax.random.split(key, 3)

    params = init_params(k_param)

    # small batch of integer "grid" inputs, NCHW (B, 1, 30, 30), values in [0, 11)
    B = 2
    x = jax.random.randint(k_tok, (B, 1, 30, 30), 0, VOCAB, dtype=jnp.int32)

    # eps ~ N(0, 1), same shape as sigma / latent: (B*900, 128)
    # TODO(synk): the PyTorch module draws eps internally via torch.randn_like;
    # here it is supplied as an explicit input for determinism.
    eps = jax.random.normal(k_eps, (B * 900, D_LAT), jnp.float32)

    out = vae_forward(x, params, eps)
    jax.block_until_ready(out)

    assert out.shape == (B, 11, 30, 30), out.shape
    assert out.dtype == jnp.float32

    # sanity-check against a pure-JAX reference of the same (bf16-weight) math
    tok = x.reshape(B, 900).astype(jnp.int32).reshape(-1)
    ms = params["enc_table"][tok].astype(jnp.float32)            # (N, 256)
    mu, sg = ms[:, :D_LAT], ms[:, D_LAT:]
    eps_b = eps.astype(jnp.bfloat16).astype(jnp.float32)
    z = (mu + jnp.exp(0.5 * sg) * eps_b).astype(jnp.bfloat16)

    def dense(a, w, b):
        return jnp.dot(a, w, preferred_element_type=jnp.float32) + b

    d = jnp.maximum(dense(z, params["w3"], params["b3"]), 0.0).astype(jnp.bfloat16)
    d = jnp.maximum(dense(d, params["w4"], params["b4"]), 0.0).astype(jnp.bfloat16)
    ref = dense(d, params["wp"], params["bp"])[:, :D_OUT]
    ref = ref.reshape(-1, 30, 30, 11).transpose(0, 3, 1, 2)

    assert jnp.allclose(out, ref, atol=5e-3, rtol=5e-3), float(jnp.max(jnp.abs(out - ref)))

    print("KERNEL_OK")
</pallas_src>

<mosaic_0001>
module attributes {stable_mosaic.version = 11 : i64} {
  func.func @_vae_kernel(%arg0: i32, %arg1: memref<256x1xi32, #tpu.memory_space<vmem>>, %arg2: memref<256x128xbf16, #tpu.memory_space<vmem>>, %arg3: memref<16x256xbf16, #tpu.memory_space<vmem>>, %arg4: memref<128x256xbf16, #tpu.memory_space<vmem>>, %arg5: memref<1x256xf32, #tpu.memory_space<vmem>>, %arg6: memref<256x512xbf16, #tpu.memory_space<vmem>>, %arg7: memref<1x512xf32, #tpu.memory_space<vmem>>, %arg8: memref<512x128xbf16, #tpu.memory_space<vmem>>, %arg9: memref<1x128xf32, #tpu.memory_space<vmem>>, %arg10: memref<256x128xf32, #tpu.memory_space<vmem>>) attributes {dimension_semantics = [#tpu.dimension_semantics<parallel>], iteration_bounds = array<i64: 8>, scalar_prefetch = 0 : i64, scratch_operands = 0 : i64, tpu.core_type = #tpu.core_type<tc>, window_params = [{transform_indices = @transform_0, window_bounds = array<i64: 256, 1>}, {transform_indices = @transform_1, window_bounds = array<i64: 256, 128>}, {pipeline_mode = #tpu.pipeline_mode<synchronous>, transform_indices = @transform_2, window_bounds = array<i64: 16, 256>}, {pipeline_mode = #tpu.pipeline_mode<synchronous>, transform_indices = @transform_3, window_bounds = array<i64: 128, 256>}, {pipeline_mode = #tpu.pipeline_mode<synchronous>, transform_indices = @transform_4, window_bounds = array<i64: 1, 256>}, {pipeline_mode = #tpu.pipeline_mode<synchronous>, transform_indices = @transform_5, window_bounds = array<i64: 256, 512>}, {pipeline_mode = #tpu.pipeline_mode<synchronous>, transform_indices = @transform_6, window_bounds = array<i64: 1, 512>}, {pipeline_mode = #tpu.pipeline_mode<synchronous>, transform_indices = @transform_7, window_bounds = array<i64: 512, 128>}, {pipeline_mode = #tpu.pipeline_mode<synchronous>, transform_indices = @transform_8, window_bounds = array<i64: 1, 128>}, {transform_indices = @transform_9, window_bounds = array<i64: 256, 128>}]} {
    %c0 = arith.constant 0 : index
    %c0_0 = arith.constant 0 : index
    %0 = vector.load %arg1[%c0, %c0_0] : memref<256x1xi32, #tpu.memory_space<vmem>>, vector<256x1xi32>
    %1 = tpu.iota {dimensions = array<i32: 1>} : vector<256x16xi32>
    %2 = vector.broadcast %0 : vector<256x1xi32> to vector<256x16xi32>
    %3 = arith.cmpi eq, %2, %1 : vector<256x16xi32>
    %4 = arith.extui %3 : vector<256x16xi1> to vector<256x16xi32>
    %5 = arith.sitofp %4 : vector<256x16xi32> to vector<256x16xf32>
    %6 = arith.truncf %5 : vector<256x16xf32> to vector<256x16xbf16>
    %c0_1 = arith.constant 0 : index
    %c0_2 = arith.constant 0 : index
    %7 = vector.load %arg3[%c0_1, %c0_2] : memref<16x256xbf16, #tpu.memory_space<vmem>>, vector<16x256xbf16>
    %cst = arith.constant dense<0.000000e+00> : vector<256x256xf32>
    %8 = tpu.matmul %6, %7, %cst {dimension_numbers = #tpu.dot_dimension_numbers<[1], [0], [0], [1], [0, 0, 1, 1], [], []>} : vector<256x16xbf16>, vector<16x256xbf16>, vector<256x256xf32> -> vector<256x256xf32>
    %9 = vector.extract_strided_slice %8 {offsets = [0, 0], sizes = [256, 128], strides = [1, 1]} : vector<256x256xf32> to vector<256x128xf32>
    %10 = vector.extract_strided_slice %8 {offsets = [0, 128], sizes = [256, 128], strides = [1, 1]} : vector<256x256xf32> to vector<256x128xf32>
    %c0_3 = arith.constant 0 : index
    %c0_4 = arith.constant 0 : index
    %11 = vector.load %arg2[%c0_3, %c0_4] : memref<256x128xbf16, #tpu.memory_space<vmem>>, vector<256x128xbf16>
    %12 = arith.extf %11 : vector<256x128xbf16> to vector<256x128xf32>
    %cst_5 = arith.constant 5.000000e-01 : f32
    %13 = vector.broadcast %cst_5 : f32 to vector<256x128xf32>
    %14 = arith.mulf %13, %10 : vector<256x128xf32>
    %15 = math.exp %14 : vector<256x128xf32>
    %16 = arith.mulf %15, %12 : vector<256x128xf32>
    %17 = arith.addf %9, %16 : vector<256x128xf32>
    %18 = arith.truncf %17 : vector<256x128xf32> to vector<256x128xbf16>
    %c0_6 = arith.constant 0 : index
    %c0_7 = arith.constant 0 : index
    %19 = vector.load %arg4[%c0_6, %c0_7] : memref<128x256xbf16, #tpu.memory_space<vmem>>, vector<128x256xbf16>
    %cst_8 = arith.constant dense<0.000000e+00> : vector<256x256xf32>
    %20 = tpu.matmul %18, %19, %cst_8 {dimension_numbers = #tpu.dot_dimension_numbers<[1], [0], [0], [1], [0, 0, 1, 1], [], []>} : vector<256x128xbf16>, vector<128x256xbf16>, vector<256x256xf32> -> vector<256x256xf32>
    %c0_9 = arith.constant 0 : index
    %c0_10 = arith.constant 0 : index
    %21 = vector.load %arg5[%c0_9, %c0_10] : memref<1x256xf32, #tpu.memory_space<vmem>>, vector<1x256xf32>
    %22 = vector.broadcast %21 : vector<1x256xf32> to vector<256x256xf32>
    %23 = arith.addf %20, %22 : vector<256x256xf32>
    %cst_11 = arith.constant 0.000000e+00 : f32
    %24 = vector.broadcast %cst_11 : f32 to vector<256x256xf32>
    %25 = arith.maximumf %23, %24 : vector<256x256xf32>
    %26 = arith.truncf %25 : vector<256x256xf32> to vector<256x256xbf16>
    %c0_12 = arith.constant 0 : index
    %c0_13 = arith.constant 0 : index
    %27 = vector.load %arg6[%c0_12, %c0_13] : memref<256x512xbf16, #tpu.memory_space<vmem>>, vector<256x512xbf16>
    %cst_14 = arith.constant dense<0.000000e+00> : vector<256x512xf32>
    %28 = tpu.matmul %26, %27, %cst_14 {dimension_numbers = #tpu.dot_dimension_numbers<[1], [0], [0], [1], [0, 0, 1, 1], [], []>} : vector<256x256xbf16>, vector<256x512xbf16>, vector<256x512xf32> -> vector<256x512xf32>
    %c0_15 = arith.constant 0 : index
    %c0_16 = arith.constant 0 : index
    %29 = vector.load %arg7[%c0_15, %c0_16] : memref<1x512xf32, #tpu.memory_space<vmem>>, vector<1x512xf32>
    %30 = vector.broadcast %29 : vector<1x512xf32> to vector<256x512xf32>
    %31 = arith.addf %28, %30 : vector<256x512xf32>
    %cst_17 = arith.constant 0.000000e+00 : f32
    %32 = vector.broadcast %cst_17 : f32 to vector<256x512xf32>
    %33 = arith.maximumf %31, %32 : vector<256x512xf32>
    %34 = arith.truncf %33 : vector<256x512xf32> to vector<256x512xbf16>
    %c0_18 = arith.constant 0 : index
    %c0_19 = arith.constant 0 : index
    %35 = vector.load %arg8[%c0_18, %c0_19] : memref<512x128xbf16, #tpu.memory_space<vmem>>, vector<512x128xbf16>
    %cst_20 = arith.constant dense<0.000000e+00> : vector<256x128xf32>
    %36 = tpu.matmul %34, %35, %cst_20 {dimension_numbers = #tpu.dot_dimension_numbers<[1], [0], [0], [1], [0, 0, 1, 1], [], []>} : vector<256x512xbf16>, vector<512x128xbf16>, vector<256x128xf32> -> vector<256x128xf32>
    %c0_21 = arith.constant 0 : index
    %c0_22 = arith.constant 0 : index
    %37 = vector.load %arg9[%c0_21, %c0_22] : memref<1x128xf32, #tpu.memory_space<vmem>>, vector<1x128xf32>
    %38 = vector.broadcast %37 : vector<1x128xf32> to vector<256x128xf32>
    %39 = arith.addf %36, %38 : vector<256x128xf32>
    %c0_23 = arith.constant 0 : index
    %c0_24 = arith.constant 0 : index
    %40 = vector.load %arg10[%c0_23, %c0_24] : memref<256x128xf32, #tpu.memory_space<vmem>>, vector<256x128xf32>
    tpu.vector_store %arg10[%c0_23, %c0_24], %39 {strides = array<i32>} : memref<256x128xf32, #tpu.memory_space<vmem>>, vector<256x128xf32>,
    return
  }
  func.func @transform_0(%arg0: i32) -> (i32, i32) {
    %c0_i32 = arith.constant 0 : i32
    %c0_i32_0 = arith.constant 0 : i32
    return %arg0, %c0_i32 : i32, i32
  }
  func.func @transform_1(%arg0: i32) -> (i32, i32) {
    %c0_i32 = arith.constant 0 : i32
    %c0_i32_0 = arith.constant 0 : i32
    return %arg0, %c0_i32 : i32, i32
  }
  func.func @transform_2(%arg0: i32) -> (i32, i32) {
    %c0_i32 = arith.constant 0 : i32
    %c0_i32_0 = arith.constant 0 : i32
    %c0_i32_1 = arith.constant 0 : i32
    return %c0_i32, %c0_i32_0 : i32, i32
  }
  func.func @transform_3(%arg0: i32) -> (i32, i32) {
    %c0_i32 = arith.constant 0 : i32
    %c0_i32_0 = arith.constant 0 : i32
    %c0_i32_1 = arith.constant 0 : i32
    return %c0_i32, %c0_i32_0 : i32, i32
  }
  func.func @transform_4(%arg0: i32) -> (i32, i32) {
    %c0_i32 = arith.constant 0 : i32
    %c0_i32_0 = arith.constant 0 : i32
    %c0_i32_1 = arith.constant 0 : i32
    return %c0_i32, %c0_i32_0 : i32, i32
  }
  func.func @transform_5(%arg0: i32) -> (i32, i32) {
    %c0_i32 = arith.constant 0 : i32
    %c0_i32_0 = arith.constant 0 : i32
    %c0_i32_1 = arith.constant 0 : i32
    return %c0_i32, %c0_i32_0 : i32, i32
  }
  func.func @transform_6(%arg0: i32) -> (i32, i32) {
    %c0_i32 = arith.constant 0 : i32
    %c0_i32_0 = arith.constant 0 : i32
    %c0_i32_1 = arith.constant 0 : i32
    return %c0_i32, %c0_i32_0 : i32, i32
  }
  func.func @transform_7(%arg0: i32) -> (i32, i32) {
    %c0_i32 = arith.constant 0 : i32
    %c0_i32_0 = arith.constant 0 : i32
    %c0_i32_1 = arith.constant 0 : i32
    return %c0_i32, %c0_i32_0 : i32, i32
  }
  func.func @transform_8(%arg0: i32) -> (i32, i32) {
    %c0_i32 = arith.constant 0 : i32
    %c0_i32_0 = arith.constant 0 : i32
    %c0_i32_1 = arith.constant 0 : i32
    return %c0_i32, %c0_i32_0 : i32, i32
  }
  func.func @transform_9(%arg0: i32) -> (i32, i32) {
    %c0_i32 = arith.constant 0 : i32
    %c0_i32_0 = arith.constant 0 : i32
    return %arg0, %c0_i32 : i32, i32
  }
}

</mosaic_0001>

<llo_original>
// kernel: vae_forward.1
$region0: #{vae_forward.1}
  #allocation0 [shape = 'u32[]', space=smem, size = 0x4, offset = 0x4, fixed_abs, tag = 'smem constant byte address 0x4 - core index']
  #allocation1 [shape = 'u32[72,128]{1,0:T(1,128)}', space=vmem, size = 0x9000, scoped, tag = 'internal scratch']
  %s0 = inlined_call_operand.vmem [shape: s32[2048,1], index: 0, kind: input, shape index: {}]
  %s1 = inlined_call_operand.vmem [shape: bf16[2048,128], index: 1, kind: input, shape index: {}]
  %s2 = inlined_call_operand.vmem [shape: bf16[16,256], index: 2, kind: input, shape index: {}]
  %s3 = inlined_call_operand.vmem [shape: bf16[128,256], index: 3, kind: input, shape index: {}]
  %s4 = inlined_call_operand.vmem [shape: f32[1,256], index: 4, kind: input, shape index: {}]
  %s5 = inlined_call_operand.vmem [shape: bf16[256,512], index: 5, kind: input, shape index: {}]
  %s6 = inlined_call_operand.vmem [shape: f32[1,512], index: 6, kind: input, shape index: {}]
  %s7 = inlined_call_operand.vmem [shape: bf16[512,128], index: 7, kind: input, shape index: {}]
  %s8 = inlined_call_operand.vmem [shape: f32[1,128], index: 8, kind: input, shape index: {}]
  %s9 = inlined_call_operand.vmem [shape: f32[2048,128], index: 9, kind: output, shape index: {}]
  %s10 = sld [smem:[#allocation0]]
  $region69: #{vae_forward.1} parent=0
    _
  %s12 = ssub.s32 1, %s10
  %s13 = scalar_select 0, %s12, %s10
  loop: start=0, step=1, limit=10
  $region2: #{vae_forward.1} parent=0 // loop_pre_header
    _
  $region3: #{vae_forward.1} parent=0 // loop_header
    %s15 = sphi 0, %s19
    %p16 = scmp.ge.s32.totalorder %s15, 10
    %s25 = sphi 0, %s27
    %s28 = sphi 0, %s25
    %s29 = sphi 0, %s28
    %s45 = sphi 0, %s29
    %s51 = sphi 0, %s53
    %s54 = sphi 0, %s51
    %s55 = sphi 0, %s54
    %s71 = sphi 0, %s55
    %s75 = sphi 0, %s75
    %s77 = sphi 0, %s75
    %s78 = sphi 0, %s77
    %s92 = sphi 0, %s78
    %s96 = sphi 0, %s96
    %s98 = sphi 0, %s96
    %s99 = sphi 0, %s98
    %s113 = sphi 0, %s99
    %s117 = sphi 0, %s117
    %s119 = sphi 0, %s117
    %s120 = sphi 0, %s119
    %s134 = sphi 0, %s120
    %s138 = sphi 0, %s138
    %s140 = sphi 0, %s138
    %s141 = sphi 0, %s140
    %s155 = sphi 0, %s141
    %s159 = sphi 0, %s159
    %s161 = sphi 0, %s159
    %s162 = sphi 0, %s161
    %s176 = sphi 0, %s162
    %s180 = sphi 0, %s180
    %s182 = sphi 0, %s180
    %s183 = sphi 0, %s182
    %s197 = sphi 0, %s183
    %s201 = sphi 0, %s201
    %s203 = sphi 0, %s201
    %s204 = sphi 0, %s203
    %s218 = sphi 0, %s204
    %s224 = sphi 0, %s226
    %s227 = sphi 0, %s224
    %s228 = sphi 0, %s227
    %s244 = sphi 0, %s228
  $region4: #{vae_forward.1} parent=0 // loop_header_branch
    %18 = sbr.rel (%p16) target = $region8
  $region5: #{vae_forward.1} parent=0 // loop_body
    %s20 = ssub.s32 %s15, 1
    %s21 = ssub.s32 %s15, 2
    %s22 = sadd.s32 %s15, 1
    %s23 = ssub.s32 %s15, %s22
    %p24 = scmp.eq.s32.totalorder %s23, 0
    %s26 = sadd.s32 %s25, 1
    %s27 = scalar_select %p24, %s25, %s26
    %p30 = pneg %p24
    %p31 = scmp.eq.s32.totalorder %s15, 7
    %p32 = por %p30, %p31
    %p33 = scmp.ne.s32.totalorder %s25, %s28
    %p34 = scmp.eq.s32.totalorder %s15, 0
    %p35 = por %p33, %p34
    %p36 = scmp.ne.s32.totalorder %s25, %s28
    %p37 = scmp.eq.s32.totalorder %s20, 7
    %p38 = por %p36, %p37
    %p39 = scmp.ne.s32.totalorder %s28, %s29
    %p40 = scmp.eq.s32.totalorder %s20, 0
    %p41 = por %p39, %p40
    %p42 = scmp.ne.s32.totalorder %s28, %s29
    %p43 = scmp.eq.s32.totalorder %s21, 7
    %p44 = por %p42, %p43
    %p46 = scmp.ne.s32.totalorder %s29, %s45
    %p47 = scmp.eq.s32.totalorder %s21, 0
    %p48 = por %p46, %p47
    %s49 = ssub.s32 %s15, %s22
    %p50 = scmp.eq.s32.totalorder %s49, 0
    %s52 = sadd.s32 %s51, 1
    %s53 = scalar_select %p50, %s51, %s52
    %p56 = pneg %p50
    %p57 = scmp.eq.s32.totalorder %s15, 7
    %p58 = por %p56, %p57
    %p59 = scmp.ne.s32.totalorder %s51, %s54
    %p60 = scmp.eq.s32.totalorder %s15, 0
    %p61 = por %p59, %p60
    %p62 = scmp.ne.s32.totalorder %s51, %s54
    %p63 = scmp.eq.s32.totalorder %s20, 7
    %p64 = por %p62, %p63
    %p65 = scmp.ne.s32.totalorder %s54, %s55
    %p66 = scmp.eq.s32.totalorder %s20, 0
    %p67 = por %p65, %p66
    %p68 = scmp.ne.s32.totalorder %s54, %s55
    %p69 = scmp.eq.s32.totalorder %s21, 7
    %p70 = por %p68, %p69
    %p72 = scmp.ne.s32.totalorder %s55, %s71
    %p73 = scmp.eq.s32.totalorder %s21, 0
    %p74 = por %p72, %p73
    %s76 = sadd.s32 %s75, 1
    %p79 = scmp.eq.s32.totalorder %s15, 7
    %p80 = scmp.ne.s32.totalorder %s75, %s77
    %p81 = scmp.eq.s32.totalorder %s15, 0
    %p82 = por %p80, %p81
    %p83 = scmp.ne.s32.totalorder %s75, %s77
    %p84 = scmp.eq.s32.totalorder %s20, 7
    %p85 = por %p83, %p84
    %p86 = scmp.ne.s32.totalorder %s77, %s78
    %p87 = scmp.eq.s32.totalorder %s20, 0
    %p88 = por %p86, %p87
    %p89 = scmp.ne.s32.totalorder %s77, %s78
    %p90 = scmp.eq.s32.totalorder %s21, 7
    %p91 = por %p89, %p90
    %p93 = scmp.ne.s32.totalorder %s78, %s92
    %p94 = scmp.eq.s32.totalorder %s21, 0
    %p95 = por %p93, %p94
    %s97 = sadd.s32 %s96, 1
    %p100 = scmp.eq.s32.totalorder %s15, 7
    %p101 = scmp.ne.s32.totalorder %s96, %s98
    %p102 = scmp.eq.s32.totalorder %s15, 0
    %p103 = por %p101, %p102
    %p104 = scmp.ne.s32.totalorder %s96, %s98
    %p105 = scmp.eq.s32.totalorder %s20, 7
    %p106 = por %p104, %p105
    %p107 = scmp.ne.s32.totalorder %s98, %s99
    %p108 = scmp.eq.s32.totalorder %s20, 0
    %p109 = por %p107, %p108
    %p110 = scmp.ne.s32.totalorder %s98, %s99
    %p111 = scmp.eq.s32.totalorder %s21, 7
    %p112 = por %p110, %p111
    %p114 = scmp.ne.s32.totalorder %s99, %s113
    %p115 = scmp.eq.s32.totalorder %s21, 0
    %p116 = por %p114, %p115
    %s118 = sadd.s32 %s117, 1
    %p121 = scmp.eq.s32.totalorder %s15, 7
    %p122 = scmp.ne.s32.totalorder %s117, %s119
    %p123 = scmp.eq.s32.totalorder %s15, 0
    %p124 = por %p122, %p123
    %p125 = scmp.ne.s32.totalorder %s117, %s119
    %p126 = scmp.eq.s32.totalorder %s20, 7
    %p127 = por %p125, %p126
    %p128 = scmp.ne.s32.totalorder %s119, %s120
    %p129 = scmp.eq.s32.totalorder %s20, 0
    %p130 = por %p128, %p129
    %p131 = scmp.ne.s32.totalorder %s119, %s120
    %p132 = scmp.eq.s32.totalorder %s21, 7
    %p133 = por %p131, %p132
    %p135 = scmp.ne.s32.totalorder %s120, %s134
    %p136 = scmp.eq.s32.totalorder %s21, 0
    %p137 = por %p135, %p136
    %s139 = sadd.s32 %s138, 1
    %p142 = scmp.eq.s32.totalorder %s15, 7
    %p143 = scmp.ne.s32.totalorder %s138, %s140
    %p144 = scmp.eq.s32.totalorder %s15, 0
    %p145 = por %p143, %p144
    %p146 = scmp.ne.s32.totalorder %s138, %s140
    %p147 = scmp.eq.s32.totalorder %s20, 7
    %p148 = por %p146, %p147
    %p149 = scmp.ne.s32.totalorder %s140, %s141
    %p150 = scmp.eq.s32.totalorder %s20, 0
    %p151 = por %p149, %p150
    %p152 = scmp.ne.s32.totalorder %s140, %s141
    %p153 = scmp.eq.s32.totalorder %s21, 7
    %p154 = por %p152, %p153
    %p156 = scmp.ne.s32.totalorder %s141, %s155
    %p157 = scmp.eq.s32.totalorder %s21, 0
    %p158 = por %p156, %p157
    %s160 = sadd.s32 %s159, 1
    %p163 = scmp.eq.s32.totalorder %s15, 7
    %p164 = scmp.ne.s32.totalorder %s159, %s161
    %p165 = scmp.eq.s32.totalorder %s15, 0
    %p166 = por %p164, %p165
    %p167 = scmp.ne.s32.totalorder %s159, %s161
    %p168 = scmp.eq.s32.totalorder %s20, 7
    %p169 = por %p167, %p168
    %p170 = scmp.ne.s32.totalorder %s161, %s162
    %p171 = scmp.eq.s32.totalorder %s20, 0
    %p172 = por %p170, %p171
    %p173 = scmp.ne.s32.totalorder %s161, %s162
    %p174 = scmp.eq.s32.totalorder %s21, 7
    %p175 = por %p173, %p174
    %p177 = scmp.ne.s32.totalorder %s162, %s176
    %p178 = scmp.eq.s32.totalorder %s21, 0
    %p179 = por %p177, %p178
    %s181 = sadd.s32 %s180, 1
    %p184 = scmp.eq.s32.totalorder %s15, 7
    %p185 = scmp.ne.s32.totalorder %s180, %s182
    %p186 = scmp.eq.s32.totalorder %s15, 0
    %p187 = por %p185, %p186
    %p188 = scmp.ne.s32.totalorder %s180, %s182
    %p189 = scmp.eq.s32.totalorder %s20, 7
    %p190 = por %p188, %p189
    %p191 = scmp.ne.s32.totalorder %s182, %s183
    %p192 = scmp.eq.s32.totalorder %s20, 0
    %p193 = por %p191, %p192
    %p194 = scmp.ne.s32.totalorder %s182, %s183
    %p195 = scmp.eq.s32.totalorder %s21, 7
    %p196 = por %p194, %p195
    %p198 = scmp.ne.s32.totalorder %s183, %s197
    %p199 = scmp.eq.s32.totalorder %s21, 0
    %p200 = por %p198, %p199
    %s202 = sadd.s32 %s201, 1
    %p205 = scmp.eq.s32.totalorder %s15, 7
    %p206 = scmp.ne.s32.totalorder %s201, %s203
    %p207 = scmp.eq.s32.totalorder %s15, 0
    %p208 = por %p206, %p207
    %p209 = scmp.ne.s32.totalorder %s201, %s203
    %p210 = scmp.eq.s32.totalorder %s20, 7
    %p211 = por %p209, %p210
    %p212 = scmp.ne.s32.totalorder %s203, %s204
    %p213 = scmp.eq.s32.totalorder %s20, 0
    %p214 = por %p212, %p213
    %p215 = scmp.ne.s32.totalorder %s203, %s204
    %p216 = scmp.eq.s32.totalorder %s21, 7
    %p217 = por %p215, %p216
    %p219 = scmp.ne.s32.totalorder %s204, %s218
    %p220 = scmp.eq.s32.totalorder %s21, 0
    %p221 = por %p219, %p220
    %s222 = ssub.s32 %s15, %s22
    %p223 = scmp.eq.s32.totalorder %s222, 0
    %s225 = sadd.s32 %s224, 1
    %s226 = scalar_select %p223, %s224, %s225
    %p229 = pneg %p223
    %p230 = scmp.eq.s32.totalorder %s15, 7
    %p231 = por %p229, %p230
    %p232 = scmp.ne.s32.totalorder %s224, %s227
    %p233 = scmp.eq.s32.totalorder %s15, 0
    %p234 = por %p232, %p233
    %p235 = scmp.ne.s32.totalorder %s224, %s227
    %p236 = scmp.eq.s32.totalorder %s20, 7
    %p237 = por %p235, %p236
    %p238 = scmp.ne.s32.totalorder %s227, %s228
    %p239 = scmp.eq.s32.totalorder %s20, 0
    %p240 = por %p238, %p239
    %p241 = scmp.ne.s32.totalorder %s227, %s228
    %p242 = scmp.eq.s32.totalorder %s21, 7
    %p243 = por %p241, %p242
    %p245 = scmp.ne.s32.totalorder %s228, %s244
    %p246 = scmp.eq.s32.totalorder %s21, 0
    %p247 = por %p245, %p246
    %p248 = scmp.le.s32.totalorder 1, %s15
    %p249 = scmp.lt.s32.totalorder %s15, 9
    %p250 = pnand %p248, %p249
    %p251 = pneg %p250
    // Predicated region
    $region9: #{vae_forward.1} parent=5 // pred_check
      _
    $region10: #{vae_forward.1} parent=5 // pred_check_branch
      %253 = sbr.rel (%p250) target = $region12
    $region11: #{vae_forward.1} parent=5 // pred_region
      %s254 = ssub.s32 %s15, 1
      // Predicated region
      $region13: #{vae_forward.1} parent=11 // pred_check
        %p255 = pneg %p88
      $region14: #{vae_forward.1} parent=11 // pred_check_branch
        %257 = sbr.rel (%p255) target = $region16
      $region15: #{vae_forward.1} parent=11 // pred_region
        _
      $region16: #{vae_forward.1} parent=11 // pred_fallthru
        _
      // Predicated region
      $region17: #{vae_forward.1} parent=11 // pred_check
        %p258 = pneg %p109
      $region18: #{vae_forward.1} parent=11 // pred_check_branch
        %260 = sbr.rel (%p258) target = $region20
      $region19: #{vae_forward.1} parent=11 // pred_region
        _
      $region20: #{vae_forward.1} parent=11 // pred_fallthru
        _
      // Predicated region
      $region21: #{vae_forward.1} parent=11 // pred_check
        %p261 = pneg %p130
      $region22: #{vae_forward.1} parent=11 // pred_check_branch
        %263 = sbr.rel (%p261) target = $region24
      $region23: #{vae_forward.1} parent=11 // pred_region
        _
      $region24: #{vae_forward.1} parent=11 // pred_fallthru
        _
      // Predicated region
      $region25: #{vae_forward.1} parent=11 // pred_check
        %p264 = pneg %p151
      $region26: #{vae_forward.1} parent=11 // pred_check_branch
        %266 = sbr.rel (%p264) target = $region28
      $region27: #{vae_forward.1} parent=11 // pred_region
        _
      $region28: #{vae_forward.1} parent=11 // pred_fallthru
        _
      // Predicated region
      $region29: #{vae_forward.1} parent=11 // pred_check
        %p267 = pneg %p172
      $region30: #{vae_forward.1} parent=11 // pred_check_branch
        %269 = sbr.rel (%p267) target = $region32
      $region31: #{vae_forward.1} parent=11 // pred_region
        _
      $region32: #{vae_forward.1} parent=11 // pred_fallthru
        _
      // Predicated region
      $region33: #{vae_forward.1} parent=11 // pred_check
        %p270 = pneg %p193
      $region34: #{vae_forward.1} parent=11 // pred_check_branch
        %272 = sbr.rel (%p270) target = $region36
      $region35: #{vae_forward.1} parent=11 // pred_region
        _
      $region36: #{vae_forward.1} parent=11 // pred_fallthru
        _
      // Predicated region
      $region37: #{vae_forward.1} parent=11 // pred_check
        %p273 = pneg %p214
      $region38: #{vae_forward.1} parent=11 // pred_check_branch
        %275 = sbr.rel (%p273) target = $region40
      $region39: #{vae_forward.1} parent=11 // pred_region
        _
      $region40: #{vae_forward.1} parent=11 // pred_fallthru
        _
    $region12: #{vae_forward.1} parent=5 // pred_fallthru
      _
    %p276 = scmp.lt.s32.totalorder %s15, 8
    // Predicated region
    $region41: #{vae_forward.1} parent=5 // pred_check
      %p277 = pneg %p276
    $region42: #{vae_forward.1} parent=5 // pred_check_branch
      %279 = sbr.rel (%p277) target = $region44
    $region43: #{vae_forward.1} parent=5 // pred_region
      // Predicated region
      $region45: #{vae_forward.1} parent=43 // pred_check
        %p280 = pneg %p35
      $region46: #{vae_forward.1} parent=43 // pred_check_branch
        %282 = sbr.rel (%p280) target = $region48
      $region47: #{vae_forward.1} parent=43 // pred_region
        %s283 = smul.u32 32, %s15
        %p284 = scmp.lt.s32.totalorder %s283, 255
        %s285 = scalar_select %p284, %s283, 255
        %s286 = smul.addr %s285, 8
        %s287 = scalar_lea.vmem %s0, %s286
        %s288 = smul.u32 32, %s15
      $region48: #{vae_forward.1} parent=43 // pred_fallthru
        _
      // Predicated region
      $region49: #{vae_forward.1} parent=43 // pred_check
        %p289 = pneg %p61
      $region50: #{vae_forward.1} parent=43 // pred_check_branch
        %291 = sbr.rel (%p289) target = $region52
      $region51: #{vae_forward.1} parent=43 // pred_region
        %s292 = smul.u32 32, %s15
        %p293 = scmp.lt.s32.totalorder %s292, 255
        %s294 = scalar_select %p293, %s292, 255
        %s295 = smul.addr %s294, 4
        %s296 = scalar_lea.vmem %s1, %s295
        %s297 = smul.u32 32, %s15
      $region52: #{vae_forward.1} parent=43 // pred_fallthru
        _
    $region44: #{vae_forward.1} parent=5 // pred_fallthru
      _
    %p298 = scmp.le.s32.totalorder 1, %s15
    %p299 = scmp.lt.s32.totalorder %s15, 9
    %p300 = pnand %p298, %p299
    %p301 = pneg %p300
    // Predicated region
    $region53: #{vae_forward.1} parent=5 // pred_check
      _
    $region54: #{vae_forward.1} parent=5 // pred_check_branch
      %303 = sbr.rel (%p300) target = $region56
    $region55: #{vae_forward.1} parent=5 // pred_region
      %s304 = ssub.s32 %s15, 1
      %s305 = smul.u32 32, %s20
      %p306 = scmp.lt.s32.totalorder %s305, 255
      %s307 = scalar_select %p306, %s305, 255
      %s308 = smul.addr %s307, 8
      %s309 = scalar_lea.vmem %s0, %s308
      %p310 = pneg %p41
      %p311 = pneg %p38
      %s312 = smul.u32 32, %s20
      %p313 = scmp.lt.s32.totalorder %s312, 255
      %s314 = scalar_select %p313, %s312, 255
      %s315 = smul.addr %s314, 4
      %s316 = scalar_lea.vmem %s1, %s315
      %p317 = pneg %p67
      %p318 = pneg %p64
      %p319 = pneg %p88
      %p320 = pneg %p85
      %p321 = pneg %p109
      %p322 = pneg %p106
      %p323 = pneg %p130
      %p324 = pneg %p127
      %p325 = pneg %p151
      %p326 = pneg %p148
      %p327 = pneg %p172
      %p328 = pneg %p169
      %p329 = pneg %p193
      %p330 = pneg %p190
      %p331 = pneg %p214
      %p332 = pneg %p211
      %p333 = pneg %p240
      %p334 = pneg %p237
      %s335 = smul.u32 32, %s20
      %p336 = scmp.lt.s32.totalorder %s335, 255
      %s337 = scalar_select %p336, %s335, 255
      %s338 = smul.addr %s337, 8
      %s339 = scalar_lea.vmem %s9, %s338
      %s340 = smul.u32 32, %s20
      %p341 = scmp.lt.s32.totalorder %s340, 255
      %s342 = scalar_select %p341, %s340, 255
      %s343 = smul.addr %s342, 8
      %s344 = scalar_lea.vmem %s0, %s343
      %s345 = smul.u32 32, %s20
      %s346 = smul.u32 32, %s20
      %p347 = scmp.lt.s32.totalorder %s346, 255
      %s348 = scalar_select %p347, %s346, 255
      %s349 = smul.addr %s348, 4
      %s350 = scalar_lea.vmem %s1, %s349
      %s351 = smul.u32 32, %s20
      %s352 = smul.u32 32, %s20
      %p353 = scmp.lt.s32.totalorder %s352, 255
      %s354 = scalar_select %p353, %s352, 255
      %s355 = smul.addr %s354, 8
      %s356 = scalar_lea.vmem %s9, %s355
      %s357 = smul.u32 32, %s20
      %v359 = vld [vmem:[%s344] sm:$0xff]
      %v360 = vld [vmem:[%s344 + $0x8] sm:$0xff]
      %v361 = vld [vmem:[%s344 + $0x10] sm:$0xff]
      %v362 = vld [vmem:[%s344 + $0x18] sm:$0xff]
      %v363 = vld [vmem:[%s344 + $0x20] sm:$0xff]
      %v364 = vld [vmem:[%s344 + $0x28] sm:$0xff]
      %v365 = vld [vmem:[%s344 + $0x30] sm:$0xff]
      %v366 = vld [vmem:[%s344 + $0x38] sm:$0xff]
      %v367 = vld [vmem:[%s344 + $0x40] sm:$0xff]
      %v368 = vld [vmem:[%s344 + $0x48] sm:$0xff]
      %v369 = vld [vmem:[%s344 + $0x50] sm:$0xff]
      %v370 = vld [vmem:[%s344 + $0x58] sm:$0xff]
      %v371 = vld [vmem:[%s344 + $0x60] sm:$0xff]
      %v372 = vld [vmem:[%s344 + $0x68] sm:$0xff]
      %v373 = vld [vmem:[%s344 + $0x70] sm:$0xff]
      %v374 = vld [vmem:[%s344 + $0x78] sm:$0xff]
      %v375 = vld [vmem:[%s344 + $0x80] sm:$0xff]
      %v376 = vld [vmem:[%s344 + $0x88] sm:$0xff]
      %v377 = vld [vmem:[%s344 + $0x90] sm:$0xff]
      %v378 = vld [vmem:[%s344 + $0x98] sm:$0xff]
      %v379 = vld [vmem:[%s344 + $0xa0] sm:$0xff]
      %v380 = vld [vmem:[%s344 + $0xa8] sm:$0xff]
      %v381 = vld [vmem:[%s344 + $0xb0] sm:$0xff]
      %v382 = vld [vmem:[%s344 + $0xb8] sm:$0xff]
      %v383 = vld [vmem:[%s344 + $0xc0] sm:$0xff]
      %v384 = vld [vmem:[%s344 + $0xc8] sm:$0xff]
      %v385 = vld [vmem:[%s344 + $0xd0] sm:$0xff]
      %v386 = vld [vmem:[%s344 + $0xd8] sm:$0xff]
      %v387 = vld [vmem:[%s344 + $0xe0] sm:$0xff]
      %v388 = vld [vmem:[%s344 + $0xe8] sm:$0xff]
      %v389 = vld [vmem:[%s344 + $0xf0] sm:$0xff]
      %v390 = vld [vmem:[%s344 + $0xf8] sm:$0xff]
      %v391 = vlaneseq
      %v392 = vand.u32 %v391, 127
      %393 = vset.pattern.permute.xlu0 0
      %394 = vperm.xlu0 %393, %v359
      %v395 = vpop.permute.xlu0 %394
      %396 = vset.pattern.permute.xlu0 0
      %397 = vperm.xlu0 %396, %v360
      %v398 = vpop.permute.xlu0 %397
      %399 = vset.pattern.permute.xlu0 0
      %400 = vperm.xlu0 %399, %v361
      %v401 = vpop.permute.xlu0 %400
      %402 = vset.pattern.permute.xlu0 0
      %403 = vperm.xlu0 %402, %v362
      %v404 = vpop.permute.xlu0 %403
      %405 = vset.pattern.permute.xlu0 0
      %406 = vperm.xlu0 %405, %v363
      %v407 = vpop.permute.xlu0 %406
      %408 = vset.pattern.permute.xlu0 0
      %409 = vperm.xlu0 %408, %v364
      %v410 = vpop.permute.xlu0 %409
      %411 = vset.pattern.permute.xlu0 0
      %412 = vperm.xlu0 %411, %v365
      %v413 = vpop.permute.xlu0 %412
      %414 = vset.pattern.permute.xlu0 0
      %415 = vperm.xlu0 %414, %v366
      %v416 = vpop.permute.xlu0 %415
      %417 = vset.pattern.permute.xlu0 0
      %418 = vperm.xlu0 %417, %v367
      %v419 = vpop.permute.xlu0 %418
      %420 = vset.pattern.permute.xlu0 0
      %421 = vperm.xlu0 %420, %v368
      %v422 = vpop.permute.xlu0 %421
      %423 = vset.pattern.permute.xlu0 0
      %424 = vperm.xlu0 %423, %v369
      %v425 = vpop.permute.xlu0 %424
      %426 = vset.pattern.permute.xlu0 0
      %427 = vperm.xlu0 %426, %v370
      %v428 = vpop.permute.xlu0 %427
      %429 = vset.pattern.permute.xlu0 0
      %430 = vperm.xlu0 %429, %v371
      %v431 = vpop.permute.xlu0 %430
      %432 = vset.pattern.permute.xlu0 0
      %433 = vperm.xlu0 %432, %v372
      %v434 = vpop.permute.xlu0 %433
      %435 = vset.pattern.permute.xlu0 0
      %436 = vperm.xlu0 %435, %v373
      %v437 = vpop.permute.xlu0 %436
      %438 = vset.pattern.permute.xlu0 0
      %439 = vperm.xlu0 %438, %v374
      %v440 = vpop.permute.xlu0 %439
      %441 = vset.pattern.permute.xlu0 0
      %442 = vperm.xlu0 %441, %v375
      %v443 = vpop.permute.xlu0 %442
      %444 = vset.pattern.permute.xlu0 0
      %445 = vperm.xlu0 %444, %v376
      %v446 = vpop.permute.xlu0 %445
      %447 = vset.pattern.permute.xlu0 0
      %448 = vperm.xlu0 %447, %v377
      %v449 = vpop.permute.xlu0 %448
      %450 = vset.pattern.permute.xlu0 0
      %451 = vperm.xlu0 %450, %v378
      %v452 = vpop.permute.xlu0 %451
      %453 = vset.pattern.permute.xlu0 0
      %454 = vperm.xlu0 %453, %v379
      %v455 = vpop.permute.xlu0 %454
      %456 = vset.pattern.permute.xlu0 0
      %457 = vperm.xlu0 %456, %v380
      %v458 = vpop.permute.xlu0 %457
      %459 = vset.pattern.permute.xlu0 0
      %460 = vperm.xlu0 %459, %v381
      %v461 = vpop.permute.xlu0 %460
      %462 = vset.pattern.permute.xlu0 0
      %463 = vperm.xlu0 %462, %v382
      %v464 = vpop.permute.xlu0 %463
      %465 = vset.pattern.permute.xlu0 0
      %466 = vperm.xlu0 %465, %v383
      %v467 = vpop.permute.xlu0 %466
      %468 = vset.pattern.permute.xlu0 0
      %469 = vperm.xlu0 %468, %v384
      %v470 = vpop.permute.xlu0 %469
      %471 = vset.pattern.permute.xlu0 0
      %472 = vperm.xlu0 %471, %v385
      %v473 = vpop.permute.xlu0 %472
      %474 = vset.pattern.permute.xlu0 0
      %475 = vperm.xlu0 %474, %v386
      %v476 = vpop.permute.xlu0 %475
      %477 = vset.pattern.permute.xlu0 0
      %478 = vperm.xlu0 %477, %v387
      %v479 = vpop.permute.xlu0 %478
      %480 = vset.pattern.permute.xlu0 0
      %481 = vperm.xlu0 %480, %v388
      %v482 = vpop.permute.xlu0 %481
      %483 = vset.pattern.permute.xlu0 0
      %484 = vperm.xlu0 %483, %v389
      %v485 = vpop.permute.xlu0 %484
      %486 = vset.pattern.permute.xlu0 0
      %487 = vperm.xlu0 %486, %v390
      %v488 = vpop.permute.xlu0 %487
      %vm489 = vcmp.eq.s32.totalorder %v395, %v392
      %vm490 = vcmp.eq.s32.totalorder %v398, %v392
      %vm491 = vcmp.eq.s32.totalorder %v401, %v392
      %vm492 = vcmp.eq.s32.totalorder %v404, %v392
      %vm493 = vcmp.eq.s32.totalorder %v407, %v392
      %vm494 = vcmp.eq.s32.totalorder %v410, %v392
      %vm495 = vcmp.eq.s32.totalorder %v413, %v392
      %vm496 = vcmp.eq.s32.totalorder %v416, %v392
      %vm497 = vcmp.eq.s32.totalorder %v419, %v392
      %vm498 = vcmp.eq.s32.totalorder %v422, %v392
      %vm499 = vcmp.eq.s32.totalorder %v425, %v392
      %vm500 = vcmp.eq.s32.totalorder %v428, %v392
      %vm501 = vcmp.eq.s32.totalorder %v431, %v392
      %vm502 = vcmp.eq.s32.totalorder %v434, %v392
      %vm503 = vcmp.eq.s32.totalorder %v437, %v392
      %vm504 = vcmp.eq.s32.totalorder %v440, %v392
      %vm505 = vcmp.eq.s32.totalorder %v443, %v392
      %vm506 = vcmp.eq.s32.totalorder %v446, %v392
      %vm507 = vcmp.eq.s32.totalorder %v449, %v392
      %vm508 = vcmp.eq.s32.totalorder %v452, %v392
      %vm509 = vcmp.eq.s32.totalorder %v455, %v392
      %vm510 = vcmp.eq.s32.totalorder %v458, %v392
      %vm511 = vcmp.eq.s32.totalorder %v461, %v392
      %vm512 = vcmp.eq.s32.totalorder %v464, %v392
      %vm513 = vcmp.eq.s32.totalorder %v467, %v392
      %vm514 = vcmp.eq.s32.totalorder %v470, %v392
      %vm515 = vcmp.eq.s32.totalorder %v473, %v392
      %vm516 = vcmp.eq.s32.totalorder %v476, %v392
      %vm517 = vcmp.eq.s32.totalorder %v479, %v392
      %vm518 = vcmp.eq.s32.totalorder %v482, %v392
      %vm519 = vcmp.eq.s32.totalorder %v485, %v392
      %vm520 = vcmp.eq.s32.totalorder %v488, %v392
      %v521 = vsel %vm489, 1, 0
      %v522 = vsel %vm490, 1, 0
      %v523 = vsel %vm491, 1, 0
      %v524 = vsel %vm492, 1, 0
      %v525 = vsel %vm493, 1, 0
      %v526 = vsel %vm494, 1, 0
      %v527 = vsel %vm495, 1, 0
      %v528 = vsel %vm496, 1, 0
      %v529 = vsel %vm497, 1, 0
      %v530 = vsel %vm498, 1, 0
      %v531 = vsel %vm499, 1, 0
      %v532 = vsel %vm500, 1, 0
      %v533 = vsel %vm501, 1, 0
      %v534 = vsel %vm502, 1, 0
      %v535 = vsel %vm503, 1, 0
      %v536 = vsel %vm504, 1, 0
      %v537 = vsel %vm505, 1, 0
      %v538 = vsel %vm506, 1, 0
      %v539 = vsel %vm507, 1, 0
      %v540 = vsel %vm508, 1, 0
      %v541 = vsel %vm509, 1, 0
      %v542 = vsel %vm510, 1, 0
      %v543 = vsel %vm511, 1, 0
      %v544 = vsel %vm512, 1, 0
      %v545 = vsel %vm513, 1, 0
      %v546 = vsel %vm514, 1, 0
      %v547 = vsel %vm515, 1, 0
      %v548 = vsel %vm516, 1, 0
      %v549 = vsel %vm517, 1, 0
      %v550 = vsel %vm518, 1, 0
      %v551 = vsel %vm519, 1, 0
      %v552 = vsel %vm520, 1, 0
      %v553 = vcvt.s32.f32 %v521
      %v554 = vcvt.s32.f32 %v522
      %v555 = vcvt.s32.f32 %v523
      %v556 = vcvt.s32.f32 %v524
      %v557 = vcvt.s32.f32 %v525
      %v558 = vcvt.s32.f32 %v526
      %v559 = vcvt.s32.f32 %v527
      %v560 = vcvt.s32.f32 %v528
      %v561 = vcvt.s32.f32 %v529
      %v562 = vcvt.s32.f32 %v530
      %v563 = vcvt.s32.f32 %v531
      %v564 = vcvt.s32.f32 %v532
      %v565 = vcvt.s32.f32 %v533
      %v566 = vcvt.s32.f32 %v534
      %v567 = vcvt.s32.f32 %v535
      %v568 = vcvt.s32.f32 %v536
      %v569 = vcvt.s32.f32 %v537
      %v570 = vcvt.s32.f32 %v538
      %v571 = vcvt.s32.f32 %v539
      %v572 = vcvt.s32.f32 %v540
      %v573 = vcvt.s32.f32 %v541
      %v574 = vcvt.s32.f32 %v542
      %v575 = vcvt.s32.f32 %v543
      %v576 = vcvt.s32.f32 %v544
      %v577 = vcvt.s32.f32 %v545
      %v578 = vcvt.s32.f32 %v546
      %v579 = vcvt.s32.f32 %v547
      %v580 = vcvt.s32.f32 %v548
      %v581 = vcvt.s32.f32 %v549
      %v582 = vcvt.s32.f32 %v550
      %v583 = vcvt.s32.f32 %v551
      %v584 = vcvt.s32.f32 %v552
      %v585 = vpack.c.bf16 %v554, %v553
      %v586 = vpack.c.bf16 %v556, %v555
      %v587 = vpack.c.bf16 %v558, %v557
      %v588 = vpack.c.bf16 %v560, %v559
      %v589 = vpack.c.bf16 %v562, %v561
      %v590 = vpack.c.bf16 %v564, %v563
      %v591 = vpack.c.bf16 %v566, %v565
      %v592 = vpack.c.bf16 %v568, %v567
      %v593 = vpack.c.bf16 %v570, %v569
      %v594 = vpack.c.bf16 %v572, %v571
      %v595 = vpack.c.bf16 %v574, %v573
      %v596 = vpack.c.bf16 %v576, %v575
      %v597 = vpack.c.bf16 %v578, %v577
      %v598 = vpack.c.bf16 %v580, %v579
      %v599 = vpack.c.bf16 %v582, %v581
      %v600 = vpack.c.bf16 %v584, %v583
      %v601 = vld [vmem:[%s2] sm:$0xff]
      %v602 = vld [vmem:[%s2 + $0x8] sm:$0xff]
      %v605 = vunpack.c.l.b16 %v601
      %v606 = vunpack.c.h.b16 %v601
      %v607 = vunpack.c.l.b16 %v602
      %v608 = vunpack.c.h.b16 %v602
      %v609 = vpack.c.b16 %v607, %v605
      %v610 = vpack.c.b16 %v608, %v606
      %vm613 = vcmask 130048
      %v615 = vsel %vm613, %v585, 0
      %v618 = vsel %vm613, %v586, 0
      %v621 = vsel %vm613, %v587, 0
      %v624 = vsel %vm613, %v588, 0
      %v627 = vsel %vm613, %v589, 0
      %v630 = vsel %vm613, %v590, 0
      %v633 = vsel %vm613, %v591, 0
      %v636 = vsel %vm613, %v592, 0
      %v639 = vsel %vm613, %v593, 0
      %v642 = vsel %vm613, %v594, 0
      %v645 = vsel %vm613, %v595, 0
      %v648 = vsel %vm613, %v596, 0
      %v651 = vsel %vm613, %v597, 0
      %v654 = vsel %vm613, %v598, 0
      %v657 = vsel %vm613, %v599, 0
      %v660 = vsel %vm613, %v600, 0
      %662 = vmatpush.bf16.msra.mxu0 0
      %663 = vmatpush.bf16.msra.mxu0 0
      %664 = vmatpush.bf16.msra.mxu0 0
      %665 = vmatpush.bf16.msra.mxu0 0
      %666 = vmatpush.bf16.msra.mxu0 0
      %667 = vmatpush.bf16.msra.mxu0 0
      %668 = vmatpush.bf16.msra.mxu0 0
      %669 = vmatpush.bf16.msra.mxu0 %v609
      %670 = vmatmul.bf16.gmra.mxu0 %v615
      %v671 = vpop.f32.mrf.mxu0
      %v672 = vadd.f32 0.0, %v671
      %v673 = vpop.f32.mrf.mxu0
      %v674 = vadd.f32 0.0, %v673
      %675 = vmatmul.bf16.gmra.mxu0 %v618
      %v676 = vpop.f32.mrf.mxu0
      %v677 = vadd.f32 0.0, %v676
      %v678 = vpop.f32.mrf.mxu0
      %v679 = vadd.f32 0.0, %v678
      %680 = vmatmul.bf16.gmra.mxu0 %v621
      %v681 = vpop.f32.mrf.mxu0
      %v682 = vadd.f32 0.0, %v681
      %v683 = vpop.f32.mrf.mxu0
      %v684 = vadd.f32 0.0, %v683
      %685 = vmatmul.bf16.gmra.mxu0 %v624
      %v686 = vpop.f32.mrf.mxu0
      %v687 = vadd.f32 0.0, %v686
      %v688 = vpop.f32.mrf.mxu0
      %v689 = vadd.f32 0.0, %v688
      %690 = vmatmul.bf16.gmra.mxu0 %v627
      %v691 = vpop.f32.mrf.mxu0
      %v692 = vadd.f32 0.0, %v691
      %v693 = vpop.f32.mrf.mxu0
      %v694 = vadd.f32 0.0, %v693
      %695 = vmatmul.bf16.gmra.mxu0 %v630
      %v696 = vpop.f32.mrf.mxu0
      %v697 = vadd.f32 0.0, %v696
      %v698 = vpop.f32.mrf.mxu0
      %v699 = vadd.f32 0.0, %v698
      %700 = vmatmul.bf16.gmra.mxu0 %v633
      %v701 = vpop.f32.mrf.mxu0
      %v702 = vadd.f32 0.0, %v701
      %v703 = vpop.f32.mrf.mxu0
      %v704 = vadd.f32 0.0, %v703
      %705 = vmatmul.bf16.gmra.mxu0 %v636
      %v706 = vpop.f32.mrf.mxu0
      %v707 = vadd.f32 0.0, %v706
      %v708 = vpop.f32.mrf.mxu0
      %v709 = vadd.f32 0.0, %v708
      %710 = vmatmul.bf16.gmra.mxu0 %v639
      %v711 = vpop.f32.mrf.mxu0
      %v712 = vadd.f32 0.0, %v711
      %v713 = vpop.f32.mrf.mxu0
      %v714 = vadd.f32 0.0, %v713
      %715 = vmatmul.bf16.gmra.mxu0 %v642
      %v716 = vpop.f32.mrf.mxu0
      %v717 = vadd.f32 0.0, %v716
      %v718 = vpop.f32.mrf.mxu0
      %v719 = vadd.f32 0.0, %v718
      %720 = vmatmul.bf16.gmra.mxu0 %v645
      %v721 = vpop.f32.mrf.mxu0
      %v722 = vadd.f32 0.0, %v721
      %v723 = vpop.f32.mrf.mxu0
      %v724 = vadd.f32 0.0, %v723
      %725 = vmatmul.bf16.gmra.mxu0 %v648
      %v726 = vpop.f32.mrf.mxu0
      %v727 = vadd.f32 0.0, %v726
      %v728 = vpop.f32.mrf.mxu0
      %v729 = vadd.f32 0.0, %v728
      %730 = vmatmul.bf16.gmra.mxu0 %v651
      %v731 = vpop.f32.mrf.mxu0
      %v732 = vadd.f32 0.0, %v731
      %v733 = vpop.f32.mrf.mxu0
      %v734 = vadd.f32 0.0, %v733
      %735 = vmatmul.bf16.gmra.mxu0 %v654
      %v736 = vpop.f32.mrf.mxu0
      %v737 = vadd.f32 0.0, %v736
      %v738 = vpop.f32.mrf.mxu0
      %v739 = vadd.f32 0.0, %v738
      %740 = vmatmul.bf16.gmra.mxu0 %v657
      %v741 = vpop.f32.mrf.mxu0
      %v742 = vadd.f32 0.0, %v741
      %v743 = vpop.f32.mrf.mxu0
      %v744 = vadd.f32 0.0, %v743
      %745 = vmatmul.bf16.gmra.mxu0 %v660
      %v746 = vpop.f32.mrf.mxu0
      %v747 = vadd.f32 0.0, %v746
      %v748 = vpop.f32.mrf.mxu0
      %v749 = vadd.f32 0.0, %v748
      %750 = vdwg.mxu0
      %751 = vmatpush.bf16.msra.mxu0 0
      %752 = vmatpush.bf16.msra.mxu0 0
      %753 = vmatpush.bf16.msra.mxu0 0
      %754 = vmatpush.bf16.msra.mxu0 0
      %755 = vmatpush.bf16.msra.mxu0 0
      %756 = vmatpush.bf16.msra.mxu0 0
      %757 = vmatpush.bf16.msra.mxu0 0
      %758 = vmatpush.bf16.msra.mxu0 %v610
      %759 = vmatmul.bf16.gmra.mxu0 %v615
      %v760 = vpop.f32.mrf.mxu0
      %v761 = vadd.f32 0.0, %v760
      %v762 = vpop.f32.mrf.mxu0
      %v763 = vadd.f32 0.0, %v762
      %764 = vmatmul.bf16.gmra.mxu0 %v618
      %v765 = vpop.f32.mrf.mxu0
      %v766 = vadd.f32 0.0, %v765
      %v767 = vpop.f32.mrf.mxu0
      %v768 = vadd.f32 0.0, %v767
      %769 = vmatmul.bf16.gmra.mxu0 %v621
      %v770 = vpop.f32.mrf.mxu0
      %v771 = vadd.f32 0.0, %v770
      %v772 = vpop.f32.mrf.mxu0
      %v773 = vadd.f32 0.0, %v772
      %774 = vmatmul.bf16.gmra.mxu0 %v624
      %v775 = vpop.f32.mrf.mxu0
      %v776 = vadd.f32 0.0, %v775
      %v777 = vpop.f32.mrf.mxu0
      %v778 = vadd.f32 0.0, %v777
      %779 = vmatmul.bf16.gmra.mxu0 %v627
      %v780 = vpop.f32.mrf.mxu0
      %v781 = vadd.f32 0.0, %v780
      %v782 = vpop.f32.mrf.mxu0
      %v783 = vadd.f32 0.0, %v782
      %784 = vmatmul.bf16.gmra.mxu0 %v630
      %v785 = vpop.f32.mrf.mxu0
      %v786 = vadd.f32 0.0, %v785
      %v787 = vpop.f32.mrf.mxu0
      %v788 = vadd.f32 0.0, %v787
      %789 = vmatmul.bf16.gmra.mxu0 %v633
      %v790 = vpop.f32.mrf.mxu0
      %v791 = vadd.f32 0.0, %v790
      %v792 = vpop.f32.mrf.mxu0
      %v793 = vadd.f32 0.0, %v792
      %794 = vmatmul.bf16.gmra.mxu0 %v636
      %v795 = vpop.f32.mrf.mxu0
      %v796 = vadd.f32 0.0, %v795
      %v797 = vpop.f32.mrf.mxu0
      %v798 = vadd.f32 0.0, %v797
      %799 = vmatmul.bf16.gmra.mxu0 %v639
      %v800 = vpop.f32.mrf.mxu0
      %v801 = vadd.f32 0.0, %v800
      %v802 = vpop.f32.mrf.mxu0
      %v803 = vadd.f32 0.0, %v802
      %804 = vmatmul.bf16.gmra.mxu0 %v642
      %v805 = vpop.f32.mrf.mxu0
      %v806 = vadd.f32 0.0, %v805
      %v807 = vpop.f32.mrf.mxu0
      %v808 = vadd.f32 0.0, %v807
      %809 = vmatmul.bf16.gmra.mxu0 %v645
      %v810 = vpop.f32.mrf.mxu0
      %v811 = vadd.f32 0.0, %v810
      %v812 = vpop.f32.mrf.mxu0
      %v813 = vadd.f32 0.0, %v812
      %814 = vmatmul.bf16.gmra.mxu0 %v648
      %v815 = vpop.f32.mrf.mxu0
      %v816 = vadd.f32 0.0, %v815
      %v817 = vpop.f32.mrf.mxu0
      %v818 = vadd.f32 0.0, %v817
      %819 = vmatmul.bf16.gmra.mxu0 %v651
      %v820 = vpop.f32.mrf.mxu0
      %v821 = vadd.f32 0.0, %v820
      %v822 = vpop.f32.mrf.mxu0
      %v823 = vadd.f32 0.0, %v822
      %824 = vmatmul.bf16.gmra.mxu0 %v654
      %v825 = vpop.f32.mrf.mxu0
      %v826 = vadd.f32 0.0, %v825
      %v827 = vpop.f32.mrf.mxu0
      %v828 = vadd.f32 0.0, %v827
      %829 = vmatmul.bf16.gmra.mxu0 %v657
      %v830 = vpop.f32.mrf.mxu0
      %v831 = vadd.f32 0.0, %v830
      %v832 = vpop.f32.mrf.mxu0
      %v833 = vadd.f32 0.0, %v832
      %834 = vmatmul.bf16.gmra.mxu0 %v660
      %v835 = vpop.f32.mrf.mxu0
      %v836 = vadd.f32 0.0, %v835
      %v837 = vpop.f32.mrf.mxu0
      %v838 = vadd.f32 0.0, %v837
      %839 = vdwg.mxu0
      %v840 = vld [vmem:[%s350] sm:$0xf]
      %v841 = vld [vmem:[%s350 + $0x4] sm:$0xf]
      %v842 = vld [vmem:[%s350 + $0x8] sm:$0xf]
      %v843 = vld [vmem:[%s350 + $0xc] sm:$0xf]
      %v844 = vld [vmem:[%s350 + $0x10] sm:$0xf]
      %v845 = vld [vmem:[%s350 + $0x14] sm:$0xf]
      %v846 = vld [vmem:[%s350 + $0x18] sm:$0xf]
      %v847 = vld [vmem:[%s350 + $0x1c] sm:$0xf]
      %v848 = vld [vmem:[%s350 + $0x20] sm:$0xf]
      %v849 = vld [vmem:[%s350 + $0x24] sm:$0xf]
      %v850 = vld [vmem:[%s350 + $0x28] sm:$0xf]
      %v851 = vld [vmem:[%s350 + $0x2c] sm:$0xf]
      %v852 = vld [vmem:[%s350 + $0x30] sm:$0xf]
      %v853 = vld [vmem:[%s350 + $0x34] sm:$0xf]
      %v854 = vld [vmem:[%s350 + $0x38] sm:$0xf]
      %v855 = vld [vmem:[%s350 + $0x3c] sm:$0xf]
      %v856 = vld [vmem:[%s350 + $0x40] sm:$0xf]
      %v857 = vld [vmem:[%s350 + $0x44] sm:$0xf]
      %v858 = vld [vmem:[%s350 + $0x48] sm:$0xf]
      %v859 = vld [vmem:[%s350 + $0x4c] sm:$0xf]
      %v860 = vld [vmem:[%s350 + $0x50] sm:$0xf]
      %v861 = vld [vmem:[%s350 + $0x54] sm:$0xf]
      %v862 = vld [vmem:[%s350 + $0x58] sm:$0xf]
      %v863 = vld [vmem:[%s350 + $0x5c] sm:$0xf]
      %v864 = vld [vmem:[%s350 + $0x60] sm:$0xf]
      %v865 = vld [vmem:[%s350 + $0x64] sm:$0xf]
      %v866 = vld [vmem:[%s350 + $0x68] sm:$0xf]
      %v867 = vld [vmem:[%s350 + $0x6c] sm:$0xf]
      %v868 = vld [vmem:[%s350 + $0x70] sm:$0xf]
      %v869 = vld [vmem:[%s350 + $0x74] sm:$0xf]
      %v870 = vld [vmem:[%s350 + $0x78] sm:$0xf]
      %v871 = vld [vmem:[%s350 + $0x7c] sm:$0xf]
      %v872 = vunpack.c.l.bf16 %v840
      %v873 = vunpack.c.l.bf16 %v841
      %v874 = vunpack.c.l.bf16 %v842
      %v875 = vunpack.c.l.bf16 %v843
      %v876 = vunpack.c.l.bf16 %v844
      %v877 = vunpack.c.l.bf16 %v845
      %v878 = vunpack.c.l.bf16 %v846
      %v879 = vunpack.c.l.bf16 %v847
      %v880 = vunpack.c.l.bf16 %v848
      %v881 = vunpack.c.l.bf16 %v849
      %v882 = vunpack.c.l.bf16 %v850
      %v883 = vunpack.c.l.bf16 %v851
      %v884 = vunpack.c.l.bf16 %v852
      %v885 = vunpack.c.l.bf16 %v853
      %v886 = vunpack.c.l.bf16 %v854
      %v887 = vunpack.c.l.bf16 %v855
      %v888 = vunpack.c.l.bf16 %v856
      %v889 = vunpack.c.l.bf16 %v857
      %v890 = vunpack.c.l.bf16 %v858
      %v891 = vunpack.c.l.bf16 %v859
      %v892 = vunpack.c.l.bf16 %v860
      %v893 = vunpack.c.l.bf16 %v861
      %v894 = vunpack.c.l.bf16 %v862
      %v895 = vunpack.c.l.bf16 %v863
      %v896 = vunpack.c.l.bf16 %v864
      %v897 = vunpack.c.l.bf16 %v865
      %v898 = vunpack.c.l.bf16 %v866
      %v899 = vunpack.c.l.bf16 %v867
      %v900 = vunpack.c.l.bf16 %v868
      %v901 = vunpack.c.l.bf16 %v869
      %v902 = vunpack.c.l.bf16 %v870
      %v903 = vunpack.c.l.bf16 %v871
      %v904 = vmul.f32 %v761, 0.5
      %v905 = vmul.f32 %v763, 0.5
      %v906 = vmul.f32 %v766, 0.5
      %v907 = vmul.f32 %v768, 0.5
      %v908 = vmul.f32 %v771, 0.5
      %v909 = vmul.f32 %v773, 0.5
      %v910 = vmul.f32 %v776, 0.5
      %v911 = vmul.f32 %v778, 0.5
      %v912 = vmul.f32 %v781, 0.5
      %v913 = vmul.f32 %v783, 0.5
      %v914 = vmul.f32 %v786, 0.5
      %v915 = vmul.f32 %v788, 0.5
      %v916 = vmul.f32 %v791, 0.5
      %v917 = vmul.f32 %v793, 0.5
      %v918 = vmul.f32 %v796, 0.5
      %v919 = vmul.f32 %v798, 0.5
      %v920 = vmul.f32 %v801, 0.5
      %v921 = vmul.f32 %v803, 0.5
      %v922 = vmul.f32 %v806, 0.5
      %v923 = vmul.f32 %v808, 0.5
      %v924 = vmul.f32 %v811, 0.5
      %v925 = vmul.f32 %v813, 0.5
      %v926 = vmul.f32 %v816, 0.5
      %v927 = vmul.f32 %v818, 0.5
      %v928 = vmul.f32 %v821, 0.5
      %v929 = vmul.f32 %v823, 0.5
      %v930 = vmul.f32 %v826, 0.5
      %v931 = vmul.f32 %v828, 0.5
      %v932 = vmul.f32 %v831, 0.5
      %v933 = vmul.f32 %v833, 0.5
      %v934 = vmul.f32 %v836, 0.5
      %v935 = vmul.f32 %v838, 0.5
      %v936 = vmul.f32 %v904, 1.442695
      %v937 = vpow.pop %v936
      %v938 = vmul.f32 %v905, 1.442695
      %v939 = vpow.pop %v938
      %v940 = vmul.f32 %v906, 1.442695
      %v941 = vpow.pop %v940
      %v942 = vmul.f32 %v907, 1.442695
      %v943 = vpow.pop %v942
      %v944 = vmul.f32 %v908, 1.442695
      %v945 = vpow.pop %v944
      %v946 = vmul.f32 %v909, 1.442695
      %v947 = vpow.pop %v946
      %v948 = vmul.f32 %v910, 1.442695
      %v949 = vpow.pop %v948
      %v950 = vmul.f32 %v911, 1.442695
      %v951 = vpow.pop %v950
      %v952 = vmul.f32 %v912, 1.442695
      %v953 = vpow.pop %v952
      %v954 = vmul.f32 %v913, 1.442695
      %v955 = vpow.pop %v954
      %v956 = vmul.f32 %v914, 1.442695
      %v957 = vpow.pop %v956
      %v958 = vmul.f32 %v915, 1.442695
      %v959 = vpow.pop %v958
      %v960 = vmul.f32 %v916, 1.442695
      %v961 = vpow.pop %v960
      %v962 = vmul.f32 %v917, 1.442695
      %v963 = vpow.pop %v962
      %v964 = vmul.f32 %v918, 1.442695
      %v965 = vpow.pop %v964
      %v966 = vmul.f32 %v919, 1.442695
      %v967 = vpow.pop %v966
      %v968 = vmul.f32 %v920, 1.442695
      %v969 = vpow.pop %v968
      %v970 = vmul.f32 %v921, 1.442695
      %v971 = vpow.pop %v970
      %v972 = vmul.f32 %v922, 1.442695
      %v973 = vpow.pop %v972
      %v974 = vmul.f32 %v923, 1.442695
      %v975 = vpow.pop %v974
      %v976 = vmul.f32 %v924, 1.442695
      %v977 = vpow.pop %v976
      %v978 = vmul.f32 %v925, 1.442695
      %v979 = vpow.pop %v978
      %v980 = vmul.f32 %v926, 1.442695
      %v981 = vpow.pop %v980
      %v982 = vmul.f32 %v927, 1.442695
      %v983 = vpow.pop %v982
      %v984 = vmul.f32 %v928, 1.442695
      %v985 = vpow.pop %v984
      %v986 = vmul.f32 %v929, 1.442695
      %v987 = vpow.pop %v986
      %v988 = vmul.f32 %v930, 1.442695
      %v989 = vpow.pop %v988
      %v990 = vmul.f32 %v931, 1.442695
      %v991 = vpow.pop %v990
      %v992 = vmul.f32 %v932, 1.442695
      %v993 = vpow.pop %v992
      %v994 = vmul.f32 %v933, 1.442695
      %v995 = vpow.pop %v994
      %v996 = vmul.f32 %v934, 1.442695
      %v997 = vpow.pop %v996
      %v998 = vmul.f32 %v935, 1.442695
      %v999 = vpow.pop %v998
      %v1000 = vmul.f32 %v937, %v872
      %v1001 = vmul.f32 %v939, %v873
      %v1002 = vmul.f32 %v941, %v874
      %v1003 = vmul.f32 %v943, %v875
      %v1004 = vmul.f32 %v945, %v876
      %v1005 = vmul.f32 %v947, %v877
      %v1006 = vmul.f32 %v949, %v878
      %v1007 = vmul.f32 %v951, %v879
      %v1008 = vmul.f32 %v953, %v880
      %v1009 = vmul.f32 %v955, %v881
      %v1010 = vmul.f32 %v957, %v882
      %v1011 = vmul.f32 %v959, %v883
      %v1012 = vmul.f32 %v961, %v884
      %v1013 = vmul.f32 %v963, %v885
      %v1014 = vmul.f32 %v965, %v886
      %v1015 = vmul.f32 %v967, %v887
      %v1016 = vmul.f32 %v969, %v888
      %v1017 = vmul.f32 %v971, %v889
      %v1018 = vmul.f32 %v973, %v890
      %v1019 = vmul.f32 %v975, %v891
      %v1020 = vmul.f32 %v977, %v892
      %v1021 = vmul.f32 %v979, %v893
      %v1022 = vmul.f32 %v981, %v894
      %v1023 = vmul.f32 %v983, %v895
      %v1024 = vmul.f32 %v985, %v896
      %v1025 = vmul.f32 %v987, %v897
      %v1026 = vmul.f32 %v989, %v898
      %v1027 = vmul.f32 %v991, %v899
      %v1028 = vmul.f32 %v993, %v900
      %v1029 = vmul.f32 %v995, %v901
      %v1030 = vmul.f32 %v997, %v902
      %v1031 = vmul.f32 %v999, %v903
      %v1032 = vadd.f32 %v672, %v1000
      %v1033 = vadd.f32 %v674, %v1001
      %v1034 = vadd.f32 %v677, %v1002
      %v1035 = vadd.f32 %v679, %v1003
      %v1036 = vadd.f32 %v682, %v1004
      %v1037 = vadd.f32 %v684, %v1005
      %v1038 = vadd.f32 %v687, %v1006
      %v1039 = vadd.f32 %v689, %v1007
      %v1040 = vadd.f32 %v692, %v1008
      %v1041 = vadd.f32 %v694, %v1009
      %v1042 = vadd.f32 %v697, %v1010
      %v1043 = vadd.f32 %v699, %v1011
      %v1044 = vadd.f32 %v702, %v1012
      %v1045 = vadd.f32 %v704, %v1013
      %v1046 = vadd.f32 %v707, %v1014
      %v1047 = vadd.f32 %v709, %v1015
      %v1048 = vadd.f32 %v712, %v1016
      %v1049 = vadd.f32 %v714, %v1017
      %v1050 = vadd.f32 %v717, %v1018
      %v1051 = vadd.f32 %v719, %v1019
      %v1052 = vadd.f32 %v722, %v1020
      %v1053 = vadd.f32 %v724, %v1021
      %v1054 = vadd.f32 %v727, %v1022
      %v1055 = vadd.f32 %v729, %v1023
      %v1056 = vadd.f32 %v732, %v1024
      %v1057 = vadd.f32 %v734, %v1025
      %v1058 = vadd.f32 %v737, %v1026
      %v1059 = vadd.f32 %v739, %v1027
      %v1060 = vadd.f32 %v742, %v1028
      %v1061 = vadd.f32 %v744, %v1029
      %v1062 = vadd.f32 %v747, %v1030
      %v1063 = vadd.f32 %v749, %v1031
      %v1064 = vpack.c.bf16 %v1033, %v1032
      %v1065 = vpack.c.bf16 %v1035, %v1034
      %v1066 = vpack.c.bf16 %v1037, %v1036
      %v1067 = vpack.c.bf16 %v1039, %v1038
      %v1068 = vpack.c.bf16 %v1041, %v1040
      %v1069 = vpack.c.bf16 %v1043, %v1042
      %v1070 = vpack.c.bf16 %v1045, %v1044
      %v1071 = vpack.c.bf16 %v1047, %v1046
      %v1072 = vpack.c.bf16 %v1049, %v1048
      %v1073 = vpack.c.bf16 %v1051, %v1050
      %v1074 = vpack.c.bf16 %v1053, %v1052
      %v1075 = vpack.c.bf16 %v1055, %v1054
      %v1076 = vpack.c.bf16 %v1057, %v1056
      %v1077 = vpack.c.bf16 %v1059, %v1058
      %v1078 = vpack.c.bf16 %v1061, %v1060
      %v1079 = vpack.c.bf16 %v1063, %v1062
      %v1080 = vld [vmem:[%s3] sm:$0xff]
      %v1081 = vld [vmem:[%s3 + $0x8] sm:$0xff]
      %v1082 = vld [vmem:[%s3 + $0x10] sm:$0xff]
      %v1083 = vld [vmem:[%s3 + $0x18] sm:$0xff]
      %v1084 = vld [vmem:[%s3 + $0x20] sm:$0xff]
      %v1085 = vld [vmem:[%s3 + $0x28] sm:$0xff]
      %v1086 = vld [vmem:[%s3 + $0x30] sm:$0xff]
      %v1087 = vld [vmem:[%s3 + $0x38] sm:$0xff]
      %v1088 = vld [vmem:[%s3 + $0x40] sm:$0xff]
      %v1089 = vld [vmem:[%s3 + $0x48] sm:$0xff]
      %v1090 = vld [vmem:[%s3 + $0x50] sm:$0xff]
      %v1091 = vld [vmem:[%s3 + $0x58] sm:$0xff]
      %v1092 = vld [vmem:[%s3 + $0x60] sm:$0xff]
      %v1093 = vld [vmem:[%s3 + $0x68] sm:$0xff]
      %v1094 = vld [vmem:[%s3 + $0x70] sm:$0xff]
      %v1095 = vld [vmem:[%s3 + $0x78] sm:$0xff]
      %v1096 = vld [vmem:[%s4] sm:$0x3]
      %v1098 = vperm.slane %v1096, 0
      %v1099 = vperm.slane %v1096, 1
      %v1118 = vunpack.c.l.b16 %v1080
      %v1119 = vunpack.c.h.b16 %v1080
      %v1120 = vunpack.c.l.b16 %v1081
      %v1121 = vunpack.c.h.b16 %v1081
      %v1122 = vunpack.c.l.b16 %v1082
      %v1123 = vunpack.c.h.b16 %v1082
      %v1124 = vunpack.c.l.b16 %v1083
      %v1125 = vunpack.c.h.b16 %v1083
      %v1126 = vunpack.c.l.b16 %v1084
      %v1127 = vunpack.c.h.b16 %v1084
      %v1128 = vunpack.c.l.b16 %v1085
      %v1129 = vunpack.c.h.b16 %v1085
      %v1130 = vunpack.c.l.b16 %v1086
      %v1131 = vunpack.c.h.b16 %v1086
      %v1132 = vunpack.c.l.b16 %v1087
      %v1133 = vunpack.c.h.b16 %v1087
      %v1134 = vunpack.c.l.b16 %v1088
      %v1135 = vunpack.c.h.b16 %v1088
      %v1136 = vunpack.c.l.b16 %v1089
      %v1137 = vunpack.c.h.b16 %v1089
      %v1138 = vunpack.c.l.b16 %v1090
      %v1139 = vunpack.c.h.b16 %v1090
      %v1140 = vunpack.c.l.b16 %v1091
      %v1141 = vunpack.c.h.b16 %v1091
      %v1142 = vunpack.c.l.b16 %v1092
      %v1143 = vunpack.c.h.b16 %v1092
      %v1144 = vunpack.c.l.b16 %v1093
      %v1145 = vunpack.c.h.b16 %v1093
      %v1146 = vunpack.c.l.b16 %v1094
      %v1147 = vunpack.c.h.b16 %v1094
      %v1148 = vunpack.c.l.b16 %v1095
      %v1149 = vunpack.c.h.b16 %v1095
      %v1150 = vpack.c.b16 %v1120, %v1118
      %v1151 = vpack.c.b16 %v1121, %v1119
      %v1152 = vpack.c.b16 %v1124, %v1122
      %v1153 = vpack.c.b16 %v1125, %v1123
      %v1154 = vpack.c.b16 %v1128, %v1126
      %v1155 = vpack.c.b16 %v1129, %v1127
      %v1156 = vpack.c.b16 %v1132, %v1130
      %v1157 = vpack.c.b16 %v1133, %v1131
      %v1158 = vpack.c.b16 %v1136, %v1134
      %v1159 = vpack.c.b16 %v1137, %v1135
      %v1160 = vpack.c.b16 %v1140, %v1138
      %v1161 = vpack.c.b16 %v1141, %v1139
      %v1162 = vpack.c.b16 %v1144, %v1142
      %v1163 = vpack.c.b16 %v1145, %v1143
      %v1164 = vpack.c.b16 %v1148, %v1146
      %v1165 = vpack.c.b16 %v1149, %v1147
      %1182 = vmatpush.bf16.msra.mxu0 %v1164
      %1183 = vmatpush.bf16.msra.mxu0 %v1162
      %1184 = vmatpush.bf16.msra.mxu0 %v1160
      %1185 = vmatpush.bf16.msra.mxu0 %v1158
      %1186 = vmatpush.bf16.msra.mxu0 %v1156
      %1187 = vmatpush.bf16.msra.mxu0 %v1154
      %1188 = vmatpush.bf16.msra.mxu0 %v1152
      %1189 = vmatpush.bf16.msra.mxu0 %v1150
      %1190 = vmatmul.bf16.gmra.mxu0 %v1064
      %v1191 = vpop.f32.mrf.mxu0
      %v1192 = vadd.f32 %v1098, %v1191
      %v1193 = vpop.f32.mrf.mxu0
      %v1194 = vadd.f32 %v1098, %v1193
      %1195 = vmatmul.bf16.gmra.mxu0 %v1065
      %v1196 = vpop.f32.mrf.mxu0
      %v1197 = vadd.f32 %v1098, %v1196
      %v1198 = vpop.f32.mrf.mxu0
      %v1199 = vadd.f32 %v1098, %v1198
      %1200 = vmatmul.bf16.gmra.mxu0 %v1066
      %v1201 = vpop.f32.mrf.mxu0
      %v1202 = vadd.f32 %v1098, %v1201
      %v1203 = vpop.f32.mrf.mxu0
      %v1204 = vadd.f32 %v1098, %v1203
      %1205 = vmatmul.bf16.gmra.mxu0 %v1067
      %v1206 = vpop.f32.mrf.mxu0
      %v1207 = vadd.f32 %v1098, %v1206
      %v1208 = vpop.f32.mrf.mxu0
      %v1209 = vadd.f32 %v1098, %v1208
      %1210 = vmatmul.bf16.gmra.mxu0 %v1068
      %v1211 = vpop.f32.mrf.mxu0
      %v1212 = vadd.f32 %v1098, %v1211
      %v1213 = vpop.f32.mrf.mxu0
      %v1214 = vadd.f32 %v1098, %v1213
      %1215 = vmatmul.bf16.gmra.mxu0 %v1069
      %v1216 = vpop.f32.mrf.mxu0
      %v1217 = vadd.f32 %v1098, %v1216
      %v1218 = vpop.f32.mrf.mxu0
      %v1219 = vadd.f32 %v1098, %v1218
      %1220 = vmatmul.bf16.gmra.mxu0 %v1070
      %v1221 = vpop.f32.mrf.mxu0
      %v1222 = vadd.f32 %v1098, %v1221
      %v1223 = vpop.f32.mrf.mxu0
      %v1224 = vadd.f32 %v1098, %v1223
      %1225 = vmatmul.bf16.gmra.mxu0 %v1071
      %v1226 = vpop.f32.mrf.mxu0
      %v1227 = vadd.f32 %v1098, %v1226
      %v1228 = vpop.f32.mrf.mxu0
      %v1229 = vadd.f32 %v1098, %v1228
      %1230 = vmatmul.bf16.gmra.mxu0 %v1072
      %v1231 = vpop.f32.mrf.mxu0
      %v1232 = vadd.f32 %v1098, %v1231
      %v1233 = vpop.f32.mrf.mxu0
      %v1234 = vadd.f32 %v1098, %v1233
      %1235 = vmatmul.bf16.gmra.mxu0 %v1073
      %v1236 = vpop.f32.mrf.mxu0
      %v1237 = vadd.f32 %v1098, %v1236
      %v1238 = vpop.f32.mrf.mxu0
      %v1239 = vadd.f32 %v1098, %v1238
      %1240 = vmatmul.bf16.gmra.mxu0 %v1074
      %v1241 = vpop.f32.mrf.mxu0
      %v1242 = vadd.f32 %v1098, %v1241
      %v1243 = vpop.f32.mrf.mxu0
      %v1244 = vadd.f32 %v1098, %v1243
      %1245 = vmatmul.bf16.gmra.mxu0 %v1075
      %v1246 = vpop.f32.mrf.mxu0
      %v1247 = vadd.f32 %v1098, %v1246
      %v1248 = vpop.f32.mrf.mxu0
      %v1249 = vadd.f32 %v1098, %v1248
      %1250 = vmatmul.bf16.gmra.mxu0 %v1076
      %v1251 = vpop.f32.mrf.mxu0
      %v1252 = vadd.f32 %v1098, %v1251
      %v1253 = vpop.f32.mrf.mxu0
      %v1254 = vadd.f32 %v1098, %v1253
      %1255 = vmatmul.bf16.gmra.mxu0 %v1077
      %v1256 = vpop.f32.mrf.mxu0
      %v1257 = vadd.f32 %v1098, %v1256
      %v1258 = vpop.f32.mrf.mxu0
      %v1259 = vadd.f32 %v1098, %v1258
      %1260 = vmatmul.bf16.gmra.mxu0 %v1078
      %v1261 = vpop.f32.mrf.mxu0
      %v1262 = vadd.f32 %v1098, %v1261
      %v1263 = vpop.f32.mrf.mxu0
      %v1264 = vadd.f32 %v1098, %v1263
      %1265 = vmatmul.bf16.gmra.mxu0 %v1079
      %v1266 = vpop.f32.mrf.mxu0
      %v1267 = vadd.f32 %v1098, %v1266
      %v1268 = vpop.f32.mrf.mxu0
      %v1269 = vadd.f32 %v1098, %v1268
      %1270 = vdwg.mxu0
      %1271 = vmatpush.bf16.msra.mxu0 %v1165
      %1272 = vmatpush.bf16.msra.mxu0 %v1163
      %1273 = vmatpush.bf16.msra.mxu0 %v1161
      %1274 = vmatpush.bf16.msra.mxu0 %v1159
      %1275 = vmatpush.bf16.msra.mxu0 %v1157
      %1276 = vmatpush.bf16.msra.mxu0 %v1155
      %1277 = vmatpush.bf16.msra.mxu0 %v1153
      %1278 = vmatpush.bf16.msra.mxu0 %v1151
      %1279 = vmatmul.bf16.gmra.mxu0 %v1064
      %v1280 = vpop.f32.mrf.mxu0
      %v1281 = vadd.f32 %v1099, %v1280
      %v1282 = vpop.f32.mrf.mxu0
      %v1283 = vadd.f32 %v1099, %v1282
      %1284 = vmatmul.bf16.gmra.mxu0 %v1065
      %v1285 = vpop.f32.mrf.mxu0
      %v1286 = vadd.f32 %v1099, %v1285
      %v1287 = vpop.f32.mrf.mxu0
      %v1288 = vadd.f32 %v1099, %v1287
      %1289 = vmatmul.bf16.gmra.mxu0 %v1066
      %v1290 = vpop.f32.mrf.mxu0
      %v1291 = vadd.f32 %v1099, %v1290
      %v1292 = vpop.f32.mrf.mxu0
      %v1293 = vadd.f32 %v1099, %v1292
      %1294 = vmatmul.bf16.gmra.mxu0 %v1067
      %v1295 = vpop.f32.mrf.mxu0
      %v1296 = vadd.f32 %v1099, %v1295
      %v1297 = vpop.f32.mrf.mxu0
      %v1298 = vadd.f32 %v1099, %v1297
      %1299 = vmatmul.bf16.gmra.mxu0 %v1068
      %v1300 = vpop.f32.mrf.mxu0
      %v1301 = vadd.f32 %v1099, %v1300
      %v1302 = vpop.f32.mrf.mxu0
      %v1303 = vadd.f32 %v1099, %v1302
      %1304 = vmatmul.bf16.gmra.mxu0 %v1069
      %v1305 = vpop.f32.mrf.mxu0
      %v1306 = vadd.f32 %v1099, %v1305
      %v1307 = vpop.f32.mrf.mxu0
      %v1308 = vadd.f32 %v1099, %v1307
      %1309 = vmatmul.bf16.gmra.mxu0 %v1070
      %v1310 = vpop.f32.mrf.mxu0
      %v1311 = vadd.f32 %v1099, %v1310
      %v1312 = vpop.f32.mrf.mxu0
      %v1313 = vadd.f32 %v1099, %v1312
      %1314 = vmatmul.bf16.gmra.mxu0 %v1071
      %v1315 = vpop.f32.mrf.mxu0
      %v1316 = vadd.f32 %v1099, %v1315
      %v1317 = vpop.f32.mrf.mxu0
      %v1318 = vadd.f32 %v1099, %v1317
      %1319 = vmatmul.bf16.gmra.mxu0 %v1072
      %v1320 = vpop.f32.mrf.mxu0
      %v1321 = vadd.f32 %v1099, %v1320
      %v1322 = vpop.f32.mrf.mxu0
      %v1323 = vadd.f32 %v1099, %v1322
      %1324 = vmatmul.bf16.gmra.mxu0 %v1073
      %v1325 = vpop.f32.mrf.mxu0
      %v1326 = vadd.f32 %v1099, %v1325
      %v1327 = vpop.f32.mrf.mxu0
      %v1328 = vadd.f32 %v1099, %v1327
      %1329 = vmatmul.bf16.gmra.mxu0 %v1074
      %v1330 = vpop.f32.mrf.mxu0
      %v1331 = vadd.f32 %v1099, %v1330
      %v1332 = vpop.f32.mrf.mxu0
      %v1333 = vadd.f32 %v1099, %v1332
      %1334 = vmatmul.bf16.gmra.mxu0 %v1075
      %v1335 = vpop.f32.mrf.mxu0
      %v1336 = vadd.f32 %v1099, %v1335
      %v1337 = vpop.f32.mrf.mxu0
      %v1338 = vadd.f32 %v1099, %v1337
      %1339 = vmatmul.bf16.gmra.mxu0 %v1076
      %v1340 = vpop.f32.mrf.mxu0
      %v1341 = vadd.f32 %v1099, %v1340
      %v1342 = vpop.f32.mrf.mxu0
      %v1343 = vadd.f32 %v1099, %v1342
      %1344 = vmatmul.bf16.gmra.mxu0 %v1077
      %v1345 = vpop.f32.mrf.mxu0
      %v1346 = vadd.f32 %v1099, %v1345
      %v1347 = vpop.f32.mrf.mxu0
      %v1348 = vadd.f32 %v1099, %v1347
      %1349 = vmatmul.bf16.gmra.mxu0 %v1078
      %v1350 = vpop.f32.mrf.mxu0
      %v1351 = vadd.f32 %v1099, %v1350
      %v1352 = vpop.f32.mrf.mxu0
      %v1353 = vadd.f32 %v1099, %v1352
      %1354 = vmatmul.bf16.gmra.mxu0 %v1079
      %v1355 = vpop.f32.mrf.mxu0
      %v1356 = vadd.f32 %v1099, %v1355
      %v1357 = vpop.f32.mrf.mxu0
      %v1358 = vadd.f32 %v1099, %v1357
      %1359 = vdwg.mxu0
      %v1360 = vmax.f32 %v1192, 0.0
      %v1361 = vmax.f32 %v1281, 0.0
      %v1362 = vmax.f32 %v1194, 0.0
      %v1363 = vmax.f32 %v1283, 0.0
      %v1364 = vmax.f32 %v1197, 0.0
      %v1365 = vmax.f32 %v1286, 0.0
      %v1366 = vmax.f32 %v1199, 0.0
      %v1367 = vmax.f32 %v1288, 0.0
      %v1368 = vmax.f32 %v1202, 0.0
      %v1369 = vmax.f32 %v1291, 0.0
      %v1370 = vmax.f32 %v1204, 0.0
      %v1371 = vmax.f32 %v1293, 0.0
      %v1372 = vmax.f32 %v1207, 0.0
      %v1373 = vmax.f32 %v1296, 0.0
      %v1374 = vmax.f32 %v1209, 0.0
      %v1375 = vmax.f32 %v1298, 0.0
      %v1376 = vmax.f32 %v1212, 0.0
      %v1377 = vmax.f32 %v1301, 0.0
      %v1378 = vmax.f32 %v1214, 0.0
      %v1379 = vmax.f32 %v1303, 0.0
      %v1380 = vmax.f32 %v1217, 0.0
      %v1381 = vmax.f32 %v1306, 0.0
      %v1382 = vmax.f32 %v1219, 0.0
      %v1383 = vmax.f32 %v1308, 0.0
      %v1384 = vmax.f32 %v1222, 0.0
      %v1385 = vmax.f32 %v1311, 0.0
      %v1386 = vmax.f32 %v1224, 0.0
      %v1387 = vmax.f32 %v1313, 0.0
      %v1388 = vmax.f32 %v1227, 0.0
      %v1389 = vmax.f32 %v1316, 0.0
      %v1390 = vmax.f32 %v1229, 0.0
      %v1391 = vmax.f32 %v1318, 0.0
      %v1392 = vmax.f32 %v1232, 0.0
      %v1393 = vmax.f32 %v1321, 0.0
      %v1394 = vmax.f32 %v1234, 0.0
      %v1395 = vmax.f32 %v1323, 0.0
      %v1396 = vmax.f32 %v1237, 0.0
      %v1397 = vmax.f32 %v1326, 0.0
      %v1398 = vmax.f32 %v1239, 0.0
      %v1399 = vmax.f32 %v1328, 0.0
      %v1400 = vmax.f32 %v1242, 0.0
      %v1401 = vmax.f32 %v1331, 0.0
      %v1402 = vmax.f32 %v1244, 0.0
      %v1403 = vmax.f32 %v1333, 0.0
      %v1404 = vmax.f32 %v1247, 0.0
      %v1405 = vmax.f32 %v1336, 0.0
      %v1406 = vmax.f32 %v1249, 0.0
      %v1407 = vmax.f32 %v1338, 0.0
      %v1408 = vmax.f32 %v1252, 0.0
      %v1409 = vmax.f32 %v1341, 0.0
      %v1410 = vmax.f32 %v1254, 0.0
      %v1411 = vmax.f32 %v1343, 0.0
      %v1412 = vmax.f32 %v1257, 0.0
      %v1413 = vmax.f32 %v1346, 0.0
      %v1414 = vmax.f32 %v1259, 0.0
      %v1415 = vmax.f32 %v1348, 0.0
      %v1416 = vmax.f32 %v1262, 0.0
      %v1417 = vmax.f32 %v1351, 0.0
      %v1418 = vmax.f32 %v1264, 0.0
      %v1419 = vmax.f32 %v1353, 0.0
      %v1420 = vmax.f32 %v1267, 0.0
      %v1421 = vmax.f32 %v1356, 0.0
      %v1422 = vmax.f32 %v1269, 0.0
      %v1423 = vmax.f32 %v1358, 0.0
      %v1424 = vpack.c.bf16 %v1362, %v1360
      %v1425 = vpack.c.bf16 %v1363, %v1361
      %v1426 = vpack.c.bf16 %v1366, %v1364
      %v1427 = vpack.c.bf16 %v1367, %v1365
      %v1428 = vpack.c.bf16 %v1370, %v1368
      %v1429 = vpack.c.bf16 %v1371, %v1369
      %v1430 = vpack.c.bf16 %v1374, %v1372
      %v1431 = vpack.c.bf16 %v1375, %v1373
      %v1432 = vpack.c.bf16 %v1378, %v1376
      %v1433 = vpack.c.bf16 %v1379, %v1377
      %v1434 = vpack.c.bf16 %v1382, %v1380
      %v1435 = vpack.c.bf16 %v1383, %v1381
      %v1436 = vpack.c.bf16 %v1386, %v1384
      %v1437 = vpack.c.bf16 %v1387, %v1385
      %v1438 = vpack.c.bf16 %v1390, %v1388
      %v1439 = vpack.c.bf16 %v1391, %v1389
      %v1440 = vpack.c.bf16 %v1394, %v1392
      %v1441 = vpack.c.bf16 %v1395, %v1393
      %v1442 = vpack.c.bf16 %v1398, %v1396
      %v1443 = vpack.c.bf16 %v1399, %v1397
      %v1444 = vpack.c.bf16 %v1402, %v1400
      %v1445 = vpack.c.bf16 %v1403, %v1401
      %v1446 = vpack.c.bf16 %v1406, %v1404
      %v1447 = vpack.c.bf16 %v1407, %v1405
      %v1448 = vpack.c.bf16 %v1410, %v1408
      %v1449 = vpack.c.bf16 %v1411, %v1409
      %v1450 = vpack.c.bf16 %v1414, %v1412
      %v1451 = vpack.c.bf16 %v1415, %v1413
      %v1452 = vpack.c.bf16 %v1418, %v1416
      %v1453 = vpack.c.bf16 %v1419, %v1417
      %v1454 = vpack.c.bf16 %v1422, %v1420
      %v1455 = vpack.c.bf16 %v1423, %v1421
      %v1456 = vld [vmem:[%s5] sm:$0xff]
      %v1457 = vld [vmem:[%s5 + $0x8] sm:$0xff]
      %v1458 = vld [vmem:[%s5 + $0x10] sm:$0xff]
      %v1459 = vld [vmem:[%s5 + $0x18] sm:$0xff]
      %v1460 = vld [vmem:[%s5 + $0x20] sm:$0xff]
      %v1461 = vld [vmem:[%s5 + $0x28] sm:$0xff]
      %v1462 = vld [vmem:[%s5 + $0x30] sm:$0xff]
      %v1463 = vld [vmem:[%s5 + $0x38] sm:$0xff]
      %v1464 = vld [vmem:[%s5 + $0x40] sm:$0xff]
      %v1465 = vld [vmem:[%s5 + $0x48] sm:$0xff]
      %v1466 = vld [vmem:[%s5 + $0x50] sm:$0xff]
      %v1467 = vld [vmem:[%s5 + $0x58] sm:$0xff]
      %v1468 = vld [vmem:[%s5 + $0x60] sm:$0xff]
      %v1469 = vld [vmem:[%s5 + $0x68] sm:$0xff]
      %v1470 = vld [vmem:[%s5 + $0x70] sm:$0xff]
      %v1471 = vld [vmem:[%s5 + $0x78] sm:$0xff]
      %v1472 = vld [vmem:[%s5 + $0x80] sm:$0xff]
      %v1473 = vld [vmem:[%s5 + $0x88] sm:$0xff]
      %v1474 = vld [vmem:[%s5 + $0x90] sm:$0xff]
      %v1475 = vld [vmem:[%s5 + $0x98] sm:$0xff]
      %v1476 = vld [vmem:[%s5 + $0xa0] sm:$0xff]
      %v1477 = vld [vmem:[%s5 + $0xa8] sm:$0xff]
      %v1478 = vld [vmem:[%s5 + $0xb0] sm:$0xff]
      %v1479 = vld [vmem:[%s5 + $0xb8] sm:$0xff]
      %v1480 = vld [vmem:[%s5 + $0xc0] sm:$0xff]
      %v1481 = vld [vmem:[%s5 + $0xc8] sm:$0xff]
      %v1482 = vld [vmem:[%s5 + $0xd0] sm:$0xff]
      %v1483 = vld [vmem:[%s5 + $0xd8] sm:$0xff]
      %v1484 = vld [vmem:[%s5 + $0xe0] sm:$0xff]
      %v1485 = vld [vmem:[%s5 + $0xe8] sm:$0xff]
      %v1486 = vld [vmem:[%s5 + $0xf0] sm:$0xff]
      %v1487 = vld [vmem:[%s5 + $0xf8] sm:$0xff]
      %v1488 = vld [vmem:[%s5 + $0x100] sm:$0xff]
      %v1489 = vld [vmem:[%s5 + $0x108] sm:$0xff]
      %v1490 = vld [vmem:[%s5 + $0x110] sm:$0xff]
      %v1491 = vld [vmem:[%s5 + $0x118] sm:$0xff]
      %v1492 = vld [vmem:[%s5 + $0x120] sm:$0xff]
      %v1493 = vld [vmem:[%s5 + $0x128] sm:$0xff]
      %v1494 = vld [vmem:[%s5 + $0x130] sm:$0xff]
      %v1495 = vld [vmem:[%s5 + $0x138] sm:$0xff]
      %v1496 = vld [vmem:[%s5 + $0x140] sm:$0xff]
      %v1497 = vld [vmem:[%s5 + $0x148] sm:$0xff]
      %v1498 = vld [vmem:[%s5 + $0x150] sm:$0xff]
      %v1499 = vld [vmem:[%s5 + $0x158] sm:$0xff]
      %v1500 = vld [vmem:[%s5 + $0x160] sm:$0xff]
      %v1501 = vld [vmem:[%s5 + $0x168] sm:$0xff]
      %v1502 = vld [vmem:[%s5 + $0x170] sm:$0xff]
      %v1503 = vld [vmem:[%s5 + $0x178] sm:$0xff]
      %v1504 = vld [vmem:[%s5 + $0x180] sm:$0xff]
      %v1505 = vld [vmem:[%s5 + $0x188] sm:$0xff]
      %v1506 = vld [vmem:[%s5 + $0x190] sm:$0xff]
      %v1507 = vld [vmem:[%s5 + $0x198] sm:$0xff]
      %v1508 = vld [vmem:[%s5 + $0x1a0] sm:$0xff]
      %v1509 = vld [vmem:[%s5 + $0x1a8] sm:$0xff]
      %v1510 = vld [vmem:[%s5 + $0x1b0] sm:$0xff]
      %v1511 = vld [vmem:[%s5 + $0x1b8] sm:$0xff]
      %v1512 = vld [vmem:[%s5 + $0x1c0] sm:$0xff]
      %v1513 = vld [vmem:[%s5 + $0x1c8] sm:$0xff]
      %v1514 = vld [vmem:[%s5 + $0x1d0] sm:$0xff]
      %v1515 = vld [vmem:[%s5 + $0x1d8] sm:$0xff]
      %v1516 = vld [vmem:[%s5 + $0x1e0] sm:$0xff]
      %v1517 = vld [vmem:[%s5 + $0x1e8] sm:$0xff]
      %v1518 = vld [vmem:[%s5 + $0x1f0] sm:$0xff]
      %v1519 = vld [vmem:[%s5 + $0x1f8] sm:$0xff]
      %v1520 = vld [vmem:[%s6] sm:$0xf]
      %v1522 = vperm.slane %v1520, 0
      %v1523 = vperm.slane %v1520, 1
      %v1524 = vperm.slane %v1520, 2
      %v1525 = vperm.slane %v1520, 3
      %v1594 = vunpack.c.l.b16 %v1456
      %v1595 = vunpack.c.h.b16 %v1456
      %v1596 = vunpack.c.l.b16 %v1457
      %v1597 = vunpack.c.h.b16 %v1457
      %v1598 = vunpack.c.l.b16 %v1458
      %v1599 = vunpack.c.h.b16 %v1458
      %v1600 = vunpack.c.l.b16 %v1459
      %v1601 = vunpack.c.h.b16 %v1459
      %v1602 = vunpack.c.l.b16 %v1460
      %v1603 = vunpack.c.h.b16 %v1460
      %v1604 = vunpack.c.l.b16 %v1461
      %v1605 = vunpack.c.h.b16 %v1461
      %v1606 = vunpack.c.l.b16 %v1462
      %v1607 = vunpack.c.h.b16 %v1462
      %v1608 = vunpack.c.l.b16 %v1463
      %v1609 = vunpack.c.h.b16 %v1463
      %v1610 = vunpack.c.l.b16 %v1464
      %v1611 = vunpack.c.h.b16 %v1464
      %v1612 = vunpack.c.l.b16 %v1465
      %v1613 = vunpack.c.h.b16 %v1465
      %v1614 = vunpack.c.l.b16 %v1466
      %v1615 = vunpack.c.h.b16 %v1466
      %v1616 = vunpack.c.l.b16 %v1467
      %v1617 = vunpack.c.h.b16 %v1467
      %v1618 = vunpack.c.l.b16 %v1468
      %v1619 = vunpack.c.h.b16 %v1468
      %v1620 = vunpack.c.l.b16 %v1469
      %v1621 = vunpack.c.h.b16 %v1469
      %v1622 = vunpack.c.l.b16 %v1470
      %v1623 = vunpack.c.h.b16 %v1470
      %v1624 = vunpack.c.l.b16 %v1471
      %v1625 = vunpack.c.h.b16 %v1471
      %v1626 = vunpack.c.l.b16 %v1472
      %v1627 = vunpack.c.h.b16 %v1472
      %v1628 = vunpack.c.l.b16 %v1473
      %v1629 = vunpack.c.h.b16 %v1473
      %v1630 = vunpack.c.l.b16 %v1474
      %v1631 = vunpack.c.h.b16 %v1474
      %v1632 = vunpack.c.l.b16 %v1475
      %v1633 = vunpack.c.h.b16 %v1475
      %v1634 = vunpack.c.l.b16 %v1476
      %v1635 = vunpack.c.h.b16 %v1476
      %v1636 = vunpack.c.l.b16 %v1477
      %v1637 = vunpack.c.h.b16 %v1477
      %v1638 = vunpack.c.l.b16 %v1478
      %v1639 = vunpack.c.h.b16 %v1478
      %v1640 = vunpack.c.l.b16 %v1479
      %v1641 = vunpack.c.h.b16 %v1479
      %v1642 = vunpack.c.l.b16 %v1480
      %v1643 = vunpack.c.h.b16 %v1480
      %v1644 = vunpack.c.l.b16 %v1481
      %v1645 = vunpack.c.h.b16 %v1481
      %v1646 = vunpack.c.l.b16 %v1482
      %v1647 = vunpack.c.h.b16 %v1482
      %v1648 = vunpack.c.l.b16 %v1483
      %v1649 = vunpack.c.h.b16 %v1483
      %v1650 = vunpack.c.l.b16 %v1484
      %v1651 = vunpack.c.h.b16 %v1484
      %v1652 = vunpack.c.l.b16 %v1485
      %v1653 = vunpack.c.h.b16 %v1485
      %v1654 = vunpack.c.l.b16 %v1486
      %v1655 = vunpack.c.h.b16 %v1486
      %v1656 = vunpack.c.l.b16 %v1487
      %v1657 = vunpack.c.h.b16 %v1487
      %v1658 = vunpack.c.l.b16 %v1488
      %v1659 = vunpack.c.h.b16 %v1488
      %v1660 = vunpack.c.l.b16 %v1489
      %v1661 = vunpack.c.h.b16 %v1489
      %v1662 = vunpack.c.l.b16 %v1490
      %v1663 = vunpack.c.h.b16 %v1490
      %v1664 = vunpack.c.l.b16 %v1491
      %v1665 = vunpack.c.h.b16 %v1491
      %v1666 = vunpack.c.l.b16 %v1492
      %v1667 = vunpack.c.h.b16 %v1492
      %v1668 = vunpack.c.l.b16 %v1493
      %v1669 = vunpack.c.h.b16 %v1493
      %v1670 = vunpack.c.l.b16 %v1494
      %v1671 = vunpack.c.h.b16 %v1494
      %v1672 = vunpack.c.l.b16 %v1495
      %v1673 = vunpack.c.h.b16 %v1495
      %v1674 = vunpack.c.l.b16 %v1496
      %v1675 = vunpack.c.h.b16 %v1496
      %v1676 = vunpack.c.l.b16 %v1497
      %v1677 = vunpack.c.h.b16 %v1497
      %v1678 = vunpack.c.l.b16 %v1498
      %v1679 = vunpack.c.h.b16 %v1498
      %v1680 = vunpack.c.l.b16 %v1499
      %v1681 = vunpack.c.h.b16 %v1499
      %v1682 = vunpack.c.l.b16 %v1500
      %v1683 = vunpack.c.h.b16 %v1500
      %v1684 = vunpack.c.l.b16 %v1501
      %v1685 = vunpack.c.h.b16 %v1501
      %v1686 = vunpack.c.l.b16 %v1502
      %v1687 = vunpack.c.h.b16 %v1502
      %v1688 = vunpack.c.l.b16 %v1503
      %v1689 = vunpack.c.h.b16 %v1503
      %v1690 = vunpack.c.l.b16 %v1504
      %v1691 = vunpack.c.h.b16 %v1504
      %v1692 = vunpack.c.l.b16 %v1505
      %v1693 = vunpack.c.h.b16 %v1505
      %v1694 = vunpack.c.l.b16 %v1506
      %v1695 = vunpack.c.h.b16 %v1506
      %v1696 = vunpack.c.l.b16 %v1507
      %v1697 = vunpack.c.h.b16 %v1507
      %v1698 = vunpack.c.l.b16 %v1508
      %v1699 = vunpack.c.h.b16 %v1508
      %v1700 = vunpack.c.l.b16 %v1509
      %v1701 = vunpack.c.h.b16 %v1509
      %v1702 = vunpack.c.l.b16 %v1510
      %v1703 = vunpack.c.h.b16 %v1510
      %v1704 = vunpack.c.l.b16 %v1511
      %v1705 = vunpack.c.h.b16 %v1511
      %v1706 = vunpack.c.l.b16 %v1512
      %v1707 = vunpack.c.h.b16 %v1512
      %v1708 = vunpack.c.l.b16 %v1513
      %v1709 = vunpack.c.h.b16 %v1513
      %v1710 = vunpack.c.l.b16 %v1514
      %v1711 = vunpack.c.h.b16 %v1514
      %v1712 = vunpack.c.l.b16 %v1515
      %v1713 = vunpack.c.h.b16 %v1515
      %v1714 = vunpack.c.l.b16 %v1516
      %v1715 = vunpack.c.h.b16 %v1516
      %v1716 = vunpack.c.l.b16 %v1517
      %v1717 = vunpack.c.h.b16 %v1517
      %v1718 = vunpack.c.l.b16 %v1518
      %v1719 = vunpack.c.h.b16 %v1518
      %v1720 = vunpack.c.l.b16 %v1519
      %v1721 = vunpack.c.h.b16 %v1519
      %v1722 = vpack.c.b16 %v1598, %v1594
      %v1723 = vpack.c.b16 %v1599, %v1595
      %v1724 = vpack.c.b16 %v1600, %v1596
      %v1725 = vpack.c.b16 %v1601, %v1597
      %v1726 = vpack.c.b16 %v1606, %v1602
      %v1727 = vpack.c.b16 %v1607, %v1603
      %v1728 = vpack.c.b16 %v1608, %v1604
      %v1729 = vpack.c.b16 %v1609, %v1605
      %v1730 = vpack.c.b16 %v1614, %v1610
      %v1731 = vpack.c.b16 %v1615, %v1611
      %v1732 = vpack.c.b16 %v1616, %v1612
      %v1733 = vpack.c.b16 %v1617, %v1613
      %v1734 = vpack.c.b16 %v1622, %v1618
      %v1735 = vpack.c.b16 %v1623, %v1619
      %v1736 = vpack.c.b16 %v1624, %v1620
      %v1737 = vpack.c.b16 %v1625, %v1621
      %v1738 = vpack.c.b16 %v1630, %v1626
      %v1739 = vpack.c.b16 %v1631, %v1627
      %v1740 = vpack.c.b16 %v1632, %v1628
      %v1741 = vpack.c.b16 %v1633, %v1629
      %v1742 = vpack.c.b16 %v1638, %v1634
      %v1743 = vpack.c.b16 %v1639, %v1635
      %v1744 = vpack.c.b16 %v1640, %v1636
      %v1745 = vpack.c.b16 %v1641, %v1637
      %v1746 = vpack.c.b16 %v1646, %v1642
      %v1747 = vpack.c.b16 %v1647, %v1643
      %v1748 = vpack.c.b16 %v1648, %v1644
      %v1749 = vpack.c.b16 %v1649, %v1645
      %v1750 = vpack.c.b16 %v1654, %v1650
      %v1751 = vpack.c.b16 %v1655, %v1651
      %v1752 = vpack.c.b16 %v1656, %v1652
      %v1753 = vpack.c.b16 %v1657, %v1653
      %v1754 = vpack.c.b16 %v1662, %v1658
      %v1755 = vpack.c.b16 %v1663, %v1659
      %v1756 = vpack.c.b16 %v1664, %v1660
      %v1757 = vpack.c.b16 %v1665, %v1661
      %v1758 = vpack.c.b16 %v1670, %v1666
      %v1759 = vpack.c.b16 %v1671, %v1667
      %v1760 = vpack.c.b16 %v1672, %v1668
      %v1761 = vpack.c.b16 %v1673, %v1669
      %v1762 = vpack.c.b16 %v1678, %v1674
      %v1763 = vpack.c.b16 %v1679, %v1675
      %v1764 = vpack.c.b16 %v1680, %v1676
      %v1765 = vpack.c.b16 %v1681, %v1677
      %v1766 = vpack.c.b16 %v1686, %v1682
      %v1767 = vpack.c.b16 %v1687, %v1683
      %v1768 = vpack.c.b16 %v1688, %v1684
      %v1769 = vpack.c.b16 %v1689, %v1685
      %v1770 = vpack.c.b16 %v1694, %v1690
      %v1771 = vpack.c.b16 %v1695, %v1691
      %v1772 = vpack.c.b16 %v1696, %v1692
      %v1773 = vpack.c.b16 %v1697, %v1693
      %v1774 = vpack.c.b16 %v1702, %v1698
      %v1775 = vpack.c.b16 %v1703, %v1699
      %v1776 = vpack.c.b16 %v1704, %v1700
      %v1777 = vpack.c.b16 %v1705, %v1701
      %v1778 = vpack.c.b16 %v1710, %v1706
      %v1779 = vpack.c.b16 %v1711, %v1707
      %v1780 = vpack.c.b16 %v1712, %v1708
      %v1781 = vpack.c.b16 %v1713, %v1709
      %v1782 = vpack.c.b16 %v1718, %v1714
      %v1783 = vpack.c.b16 %v1719, %v1715
      %v1784 = vpack.c.b16 %v1720, %v1716
      %v1785 = vpack.c.b16 %v1721, %v1717
      %1850 = vmatpush.bf16.msra.mxu0 %v1750
      %1851 = vmatpush.bf16.msra.mxu0 %v1746
      %1852 = vmatpush.bf16.msra.mxu0 %v1742
      %1853 = vmatpush.bf16.msra.mxu0 %v1738
      %1854 = vmatpush.bf16.msra.mxu0 %v1734
      %1855 = vmatpush.bf16.msra.mxu0 %v1730
      %1856 = vmatpush.bf16.msra.mxu0 %v1726
      %1857 = vmatpush.bf16.msra.mxu0 %v1722
      %1858 = vmatmul.bf16.gmra.mxu0 %v1424
      %v1859 = vpop.f32.mrf.mxu0
      %v1860 = vadd.f32 %v1522, %v1859
      %v1861 = vpop.f32.mrf.mxu0
      %v1862 = vadd.f32 %v1522, %v1861
      %1863 = vmatmul.bf16.gmra.mxu0 %v1426
      %v1864 = vpop.f32.mrf.mxu0
      %v1865 = vadd.f32 %v1522, %v1864
      %v1866 = vpop.f32.mrf.mxu0
      %v1867 = vadd.f32 %v1522, %v1866
      %1868 = vmatmul.bf16.gmra.mxu0 %v1428
      %v1869 = vpop.f32.mrf.mxu0
      %v1870 = vadd.f32 %v1522, %v1869
      %v1871 = vpop.f32.mrf.mxu0
      %v1872 = vadd.f32 %v1522, %v1871
      %1873 = vmatmul.bf16.gmra.mxu0 %v1430
      %v1874 = vpop.f32.mrf.mxu0
      %v1875 = vadd.f32 %v1522, %v1874
      %v1876 = vpop.f32.mrf.mxu0
      %v1877 = vadd.f32 %v1522, %v1876
      %1878 = vmatmul.bf16.gmra.mxu0 %v1432
      %v1879 = vpop.f32.mrf.mxu0
      %v1880 = vadd.f32 %v1522, %v1879
      %v1881 = vpop.f32.mrf.mxu0
      %v1882 = vadd.f32 %v1522, %v1881
      %1883 = vmatmul.bf16.gmra.mxu0 %v1434
      %v1884 = vpop.f32.mrf.mxu0
      %v1885 = vadd.f32 %v1522, %v1884
      %v1886 = vpop.f32.mrf.mxu0
      %v1887 = vadd.f32 %v1522, %v1886
      %1888 = vmatmul.bf16.gmra.mxu0 %v1436
      %v1889 = vpop.f32.mrf.mxu0
      %v1890 = vadd.f32 %v1522, %v1889
      %v1891 = vpop.f32.mrf.mxu0
      %v1892 = vadd.f32 %v1522, %v1891
      %1893 = vmatmul.bf16.gmra.mxu0 %v1438
      %v1894 = vpop.f32.mrf.mxu0
      %v1895 = vadd.f32 %v1522, %v1894
      %v1896 = vpop.f32.mrf.mxu0
      %v1897 = vadd.f32 %v1522, %v1896
      %1898 = vmatmul.bf16.gmra.mxu0 %v1440
      %v1899 = vpop.f32.mrf.mxu0
      %v1900 = vadd.f32 %v1522, %v1899
      %v1901 = vpop.f32.mrf.mxu0
      %v1902 = vadd.f32 %v1522, %v1901
      %1903 = vmatmul.bf16.gmra.mxu0 %v1442
      %v1904 = vpop.f32.mrf.mxu0
      %v1905 = vadd.f32 %v1522, %v1904
      %v1906 = vpop.f32.mrf.mxu0
      %v1907 = vadd.f32 %v1522, %v1906
      %1908 = vmatmul.bf16.gmra.mxu0 %v1444
      %v1909 = vpop.f32.mrf.mxu0
      %v1910 = vadd.f32 %v1522, %v1909
      %v1911 = vpop.f32.mrf.mxu0
      %v1912 = vadd.f32 %v1522, %v1911
      %1913 = vmatmul.bf16.gmra.mxu0 %v1446
      %v1914 = vpop.f32.mrf.mxu0
      %v1915 = vadd.f32 %v1522, %v1914
      %v1916 = vpop.f32.mrf.mxu0
      %v1917 = vadd.f32 %v1522, %v1916
      %1918 = vmatmul.bf16.gmra.mxu0 %v1448
      %v1919 = vpop.f32.mrf.mxu0
      %v1920 = vadd.f32 %v1522, %v1919
      %v1921 = vpop.f32.mrf.mxu0
      %v1922 = vadd.f32 %v1522, %v1921
      %1923 = vmatmul.bf16.gmra.mxu0 %v1450
      %v1924 = vpop.f32.mrf.mxu0
      %v1925 = vadd.f32 %v1522, %v1924
      %v1926 = vpop.f32.mrf.mxu0
      %v1927 = vadd.f32 %v1522, %v1926
      %1928 = vmatmul.bf16.gmra.mxu0 %v1452
      %v1929 = vpop.f32.mrf.mxu0
      %v1930 = vadd.f32 %v1522, %v1929
      %v1931 = vpop.f32.mrf.mxu0
      %v1932 = vadd.f32 %v1522, %v1931
      %1933 = vmatmul.bf16.gmra.mxu0 %v1454
      %v1934 = vpop.f32.mrf.mxu0
      %v1935 = vadd.f32 %v1522, %v1934
      %v1936 = vpop.f32.mrf.mxu0
      %v1937 = vadd.f32 %v1522, %v1936
      %1938 = vdwg.mxu0
      %1939 = vmatpush.bf16.msra.mxu0 %v1782
      %1940 = vmatpush.bf16.msra.mxu0 %v1778
      %1941 = vmatpush.bf16.msra.mxu0 %v1774
      %1942 = vmatpush.bf16.msra.mxu0 %v1770
      %1943 = vmatpush.bf16.msra.mxu0 %v1766
      %1944 = vmatpush.bf16.msra.mxu0 %v1762
      %1945 = vmatpush.bf16.msra.mxu0 %v1758
      %1946 = vmatpush.bf16.msra.mxu0 %v1754
      %1947 = vmatmul.bf16.gmra.mxu0 %v1425
      %v1948 = vpop.f32.mrf.mxu0
      %v1949 = vadd.f32 %v1860, %v1948
      %v1950 = vpop.f32.mrf.mxu0
      %v1951 = vadd.f32 %v1862, %v1950
      %1952 = vmatmul.bf16.gmra.mxu0 %v1427
      %v1953 = vpop.f32.mrf.mxu0
      %v1954 = vadd.f32 %v1865, %v1953
      %v1955 = vpop.f32.mrf.mxu0
      %v1956 = vadd.f32 %v1867, %v1955
      %1957 = vmatmul.bf16.gmra.mxu0 %v1429
      %v1958 = vpop.f32.mrf.mxu0
      %v1959 = vadd.f32 %v1870, %v1958
      %v1960 = vpop.f32.mrf.mxu0
      %v1961 = vadd.f32 %v1872, %v1960
      %1962 = vmatmul.bf16.gmra.mxu0 %v1431
      %v1963 = vpop.f32.mrf.mxu0
      %v1964 = vadd.f32 %v1875, %v1963
      %v1965 = vpop.f32.mrf.mxu0
      %v1966 = vadd.f32 %v1877, %v1965
      %1967 = vmatmul.bf16.gmra.mxu0 %v1433
      %v1968 = vpop.f32.mrf.mxu0
      %v1969 = vadd.f32 %v1880, %v1968
      %v1970 = vpop.f32.mrf.mxu0
      %v1971 = vadd.f32 %v1882, %v1970
      %1972 = vmatmul.bf16.gmra.mxu0 %v1435
      %v1973 = vpop.f32.mrf.mxu0
      %v1974 = vadd.f32 %v1885, %v1973
      %v1975 = vpop.f32.mrf.mxu0
      %v1976 = vadd.f32 %v1887, %v1975
      %1977 = vmatmul.bf16.gmra.mxu0 %v1437
      %v1978 = vpop.f32.mrf.mxu0
      %v1979 = vadd.f32 %v1890, %v1978
      %v1980 = vpop.f32.mrf.mxu0
      %v1981 = vadd.f32 %v1892, %v1980
      %1982 = vmatmul.bf16.gmra.mxu0 %v1439
      %v1983 = vpop.f32.mrf.mxu0
      %v1984 = vadd.f32 %v1895, %v1983
      %v1985 = vpop.f32.mrf.mxu0
      %v1986 = vadd.f32 %v1897, %v1985
      %1987 = vmatmul.bf16.gmra.mxu0 %v1441
      %v1988 = vpop.f32.mrf.mxu0
      %v1989 = vadd.f32 %v1900, %v1988
      %v1990 = vpop.f32.mrf.mxu0
      %v1991 = vadd.f32 %v1902, %v1990
      %1992 = vmatmul.bf16.gmra.mxu0 %v1443
      %v1993 = vpop.f32.mrf.mxu0
      %v1994 = vadd.f32 %v1905, %v1993
      %v1995 = vpop.f32.mrf.mxu0
      %v1996 = vadd.f32 %v1907, %v1995
      %1997 = vmatmul.bf16.gmra.mxu0 %v1445
      %v1998 = vpop.f32.mrf.mxu0
      %v1999 = vadd.f32 %v1910, %v1998
      %v2000 = vpop.f32.mrf.mxu0
      %v2001 = vadd.f32 %v1912, %v2000
      %2002 = vmatmul.bf16.gmra.mxu0 %v1447
      %v2003 = vpop.f32.mrf.mxu0
      %v2004 = vadd.f32 %v1915, %v2003
      %v2005 = vpop.f32.mrf.mxu0
      %v2006 = vadd.f32 %v1917, %v2005
      %2007 = vmatmul.bf16.gmra.mxu0 %v1449
      %v2008 = vpop.f32.mrf.mxu0
      %v2009 = vadd.f32 %v1920, %v2008
      %v2010 = vpop.f32.mrf.mxu0
      %v2011 = vadd.f32 %v1922, %v2010
      %2012 = vmatmul.bf16.gmra.mxu0 %v1451
      %v2013 = vpop.f32.mrf.mxu0
      %v2014 = vadd.f32 %v1925, %v2013
      %v2015 = vpop.f32.mrf.mxu0
      %v2016 = vadd.f32 %v1927, %v2015
      %2017 = vmatmul.bf16.gmra.mxu0 %v1453
      %v2018 = vpop.f32.mrf.mxu0
      %v2019 = vadd.f32 %v1930, %v2018
      %v2020 = vpop.f32.mrf.mxu0
      %v2021 = vadd.f32 %v1932, %v2020
      %2022 = vmatmul.bf16.gmra.mxu0 %v1455
      %v2023 = vpop.f32.mrf.mxu0
      %v2024 = vadd.f32 %v1935, %v2023
      %v2025 = vpop.f32.mrf.mxu0
      %v2026 = vadd.f32 %v1937, %v2025
      %2027 = vdwg.mxu0
      %2028 = vmatpush.bf16.msra.mxu0 %v1751
      %2029 = vmatpush.bf16.msra.mxu0 %v1747
      %2030 = vmatpush.bf16.msra.mxu0 %v1743
      %2031 = vmatpush.bf16.msra.mxu0 %v1739
      %2032 = vmatpush.bf16.msra.mxu0 %v1735
      %2033 = vmatpush.bf16.msra.mxu0 %v1731
      %2034 = vmatpush.bf16.msra.mxu0 %v1727
      %2035 = vmatpush.bf16.msra.mxu0 %v1723
      %2036 = vmatmul.bf16.gmra.mxu0 %v1424
      %v2037 = vpop.f32.mrf.mxu0
      %v2038 = vadd.f32 %v1523, %v2037
      %v2039 = vpop.f32.mrf.mxu0
      %v2040 = vadd.f32 %v1523, %v2039
      %2041 = vmatmul.bf16.gmra.mxu0 %v1426
      %v2042 = vpop.f32.mrf.mxu0
      %v2043 = vadd.f32 %v1523, %v2042
      %v2044 = vpop.f32.mrf.mxu0
      %v2045 = vadd.f32 %v1523, %v2044
      %2046 = vmatmul.bf16.gmra.mxu0 %v1428
      %v2047 = vpop.f32.mrf.mxu0
      %v2048 = vadd.f32 %v1523, %v2047
      %v2049 = vpop.f32.mrf.mxu0
      %v2050 = vadd.f32 %v1523, %v2049
      %2051 = vmatmul.bf16.gmra.mxu0 %v1430
      %v2052 = vpop.f32.mrf.mxu0
      %v2053 = vadd.f32 %v1523, %v2052
      %v2054 = vpop.f32.mrf.mxu0
      %v2055 = vadd.f32 %v1523, %v2054
      %2056 = vmatmul.bf16.gmra.mxu0 %v1432
      %v2057 = vpop.f32.mrf.mxu0
      %v2058 = vadd.f32 %v1523, %v2057
      %v2059 = vpop.f32.mrf.mxu0
      %v2060 = vadd.f32 %v1523, %v2059
      %2061 = vmatmul.bf16.gmra.mxu0 %v1434
      %v2062 = vpop.f32.mrf.mxu0
      %v2063 = vadd.f32 %v1523, %v2062
      %v2064 = vpop.f32.mrf.mxu0
      %v2065 = vadd.f32 %v1523, %v2064
      %2066 = vmatmul.bf16.gmra.mxu0 %v1436
      %v2067 = vpop.f32.mrf.mxu0
      %v2068 = vadd.f32 %v1523, %v2067
      %v2069 = vpop.f32.mrf.mxu0
      %v2070 = vadd.f32 %v1523, %v2069
      %2071 = vmatmul.bf16.gmra.mxu0 %v1438
      %v2072 = vpop.f32.mrf.mxu0
      %v2073 = vadd.f32 %v1523, %v2072
      %v2074 = vpop.f32.mrf.mxu0
      %v2075 = vadd.f32 %v1523, %v2074
      %2076 = vmatmul.bf16.gmra.mxu0 %v1440
      %v2077 = vpop.f32.mrf.mxu0
      %v2078 = vadd.f32 %v1523, %v2077
      %v2079 = vpop.f32.mrf.mxu0
      %v2080 = vadd.f32 %v1523, %v2079
      %2081 = vmatmul.bf16.gmra.mxu0 %v1442
      %v2082 = vpop.f32.mrf.mxu0
      %v2083 = vadd.f32 %v1523, %v2082
      %v2084 = vpop.f32.mrf.mxu0
      %v2085 = vadd.f32 %v1523, %v2084
      %2086 = vmatmul.bf16.gmra.mxu0 %v1444
      %v2087 = vpop.f32.mrf.mxu0
      %v2088 = vadd.f32 %v1523, %v2087
      %v2089 = vpop.f32.mrf.mxu0
      %v2090 = vadd.f32 %v1523, %v2089
      %2091 = vmatmul.bf16.gmra.mxu0 %v1446
      %v2092 = vpop.f32.mrf.mxu0
      %v2093 = vadd.f32 %v1523, %v2092
      %v2094 = vpop.f32.mrf.mxu0
      %v2095 = vadd.f32 %v1523, %v2094
      %2096 = vmatmul.bf16.gmra.mxu0 %v1448
      %v2097 = vpop.f32.mrf.mxu0
      %v2098 = vadd.f32 %v1523, %v2097
      %v2099 = vpop.f32.mrf.mxu0
      %v2100 = vadd.f32 %v1523, %v2099
      %2101 = vmatmul.bf16.gmra.mxu0 %v1450
      %v2102 = vpop.f32.mrf.mxu0
      %v2103 = vadd.f32 %v1523, %v2102
      %v2104 = vpop.f32.mrf.mxu0
      %v2105 = vadd.f32 %v1523, %v2104
      %2106 = vmatmul.bf16.gmra.mxu0 %v1452
      %v2107 = vpop.f32.mrf.mxu0
      %v2108 = vadd.f32 %v1523, %v2107
      %v2109 = vpop.f32.mrf.mxu0
      %v2110 = vadd.f32 %v1523, %v2109
      %2111 = vmatmul.bf16.gmra.mxu0 %v1454
      %v2112 = vpop.f32.mrf.mxu0
      %v2113 = vadd.f32 %v1523, %v2112
      %v2114 = vpop.f32.mrf.mxu0
      %v2115 = vadd.f32 %v1523, %v2114
      %2116 = vdwg.mxu0
      %2117 = vmatpush.bf16.msra.mxu0 %v1783
      %2118 = vmatpush.bf16.msra.mxu0 %v1779
      %2119 = vmatpush.bf16.msra.mxu0 %v1775
      %2120 = vmatpush.bf16.msra.mxu0 %v1771
      %2121 = vmatpush.bf16.msra.mxu0 %v1767
      %2122 = vmatpush.bf16.msra.mxu0 %v1763
      %2123 = vmatpush.bf16.msra.mxu0 %v1759
      %2124 = vmatpush.bf16.msra.mxu0 %v1755
      %2125 = vmatmul.bf16.gmra.mxu0 %v1425
      %v2126 = vpop.f32.mrf.mxu0
      %v2127 = vadd.f32 %v2038, %v2126
      %v2128 = vpop.f32.mrf.mxu0
      %v2129 = vadd.f32 %v2040, %v2128
      %2130 = vmatmul.bf16.gmra.mxu0 %v1427
      %v2131 = vpop.f32.mrf.mxu0
      %v2132 = vadd.f32 %v2043, %v2131
      %v2133 = vpop.f32.mrf.mxu0
      %v2134 = vadd.f32 %v2045, %v2133
      %2135 = vmatmul.bf16.gmra.mxu0 %v1429
      %v2136 = vpop.f32.mrf.mxu0
      %v2137 = vadd.f32 %v2048, %v2136
      %v2138 = vpop.f32.mrf.mxu0
      %v2139 = vadd.f32 %v2050, %v2138
      %2140 = vmatmul.bf16.gmra.mxu0 %v1431
      %v2141 = vpop.f32.mrf.mxu0
      %v2142 = vadd.f32 %v2053, %v2141
      %v2143 = vpop.f32.mrf.mxu0
      %v2144 = vadd.f32 %v2055, %v2143
      %2145 = vmatmul.bf16.gmra.mxu0 %v1433
      %v2146 = vpop.f32.mrf.mxu0
      %v2147 = vadd.f32 %v2058, %v2146
      %v2148 = vpop.f32.mrf.mxu0
      %v2149 = vadd.f32 %v2060, %v2148
      %2150 = vmatmul.bf16.gmra.mxu0 %v1435
      %v2151 = vpop.f32.mrf.mxu0
      %v2152 = vadd.f32 %v2063, %v2151
      %v2153 = vpop.f32.mrf.mxu0
      %v2154 = vadd.f32 %v2065, %v2153
      %2155 = vmatmul.bf16.gmra.mxu0 %v1437
      %v2156 = vpop.f32.mrf.mxu0
      %v2157 = vadd.f32 %v2068, %v2156
      %v2158 = vpop.f32.mrf.mxu0
      %v2159 = vadd.f32 %v2070, %v2158
      %2160 = vmatmul.bf16.gmra.mxu0 %v1439
      %v2161 = vpop.f32.mrf.mxu0
      %v2162 = vadd.f32 %v2073, %v2161
      %v2163 = vpop.f32.mrf.mxu0
      %v2164 = vadd.f32 %v2075, %v2163
      %2165 = vmatmul.bf16.gmra.mxu0 %v1441
      %v2166 = vpop.f32.mrf.mxu0
      %v2167 = vadd.f32 %v2078, %v2166
      %v2168 = vpop.f32.mrf.mxu0
      %v2169 = vadd.f32 %v2080, %v2168
      %2170 = vmatmul.bf16.gmra.mxu0 %v1443
      %v2171 = vpop.f32.mrf.mxu0
      %v2172 = vadd.f32 %v2083, %v2171
      %v2173 = vpop.f32.mrf.mxu0
      %v2174 = vadd.f32 %v2085, %v2173
      %2175 = vmatmul.bf16.gmra.mxu0 %v1445
      %v2176 = vpop.f32.mrf.mxu0
      %v2177 = vadd.f32 %v2088, %v2176
      %v2178 = vpop.f32.mrf.mxu0
      %v2179 = vadd.f32 %v2090, %v2178
      %2180 = vmatmul.bf16.gmra.mxu0 %v1447
      %v2181 = vpop.f32.mrf.mxu0
      %v2182 = vadd.f32 %v2093, %v2181
      %v2183 = vpop.f32.mrf.mxu0
      %v2184 = vadd.f32 %v2095, %v2183
      %2185 = vmatmul.bf16.gmra.mxu0 %v1449
      %v2186 = vpop.f32.mrf.mxu0
      %v2187 = vadd.f32 %v2098, %v2186
      %v2188 = vpop.f32.mrf.mxu0
      %v2189 = vadd.f32 %v2100, %v2188
      %2190 = vmatmul.bf16.gmra.mxu0 %v1451
      %v2191 = vpop.f32.mrf.mxu0
      %v2192 = vadd.f32 %v2103, %v2191
      %v2193 = vpop.f32.mrf.mxu0
      %v2194 = vadd.f32 %v2105, %v2193
      %2195 = vmatmul.bf16.gmra.mxu0 %v1453
      %v2196 = vpop.f32.mrf.mxu0
      %v2197 = vadd.f32 %v2108, %v2196
      %v2198 = vpop.f32.mrf.mxu0
      %v2199 = vadd.f32 %v2110, %v2198
      %2200 = vmatmul.bf16.gmra.mxu0 %v1455
      %v2201 = vpop.f32.mrf.mxu0
      %v2202 = vadd.f32 %v2113, %v2201
      %v2203 = vpop.f32.mrf.mxu0
      %v2204 = vadd.f32 %v2115, %v2203
      %2205 = vdwg.mxu0
      %2206 = vmatpush.bf16.msra.mxu0 %v1752
      %2207 = vmatpush.bf16.msra.mxu0 %v1748
      %2208 = vmatpush.bf16.msra.mxu0 %v1744
      %2209 = vmatpush.bf16.msra.mxu0 %v1740
      %2210 = vmatpush.bf16.msra.mxu0 %v1736
      %2211 = vmatpush.bf16.msra.mxu0 %v1732
      %2212 = vmatpush.bf16.msra.mxu0 %v1728
      %2213 = vmatpush.bf16.msra.mxu0 %v1724
      %2214 = vmatmul.bf16.gmra.mxu0 %v1424
      %v2215 = vpop.f32.mrf.mxu0
      %v2216 = vadd.f32 %v1524, %v2215
      %v2217 = vpop.f32.mrf.mxu0
      %v2218 = vadd.f32 %v1524, %v2217
      %2219 = vmatmul.bf16.gmra.mxu0 %v1426
      %v2220 = vpop.f32.mrf.mxu0
      %v2221 = vadd.f32 %v1524, %v2220
      %v2222 = vpop.f32.mrf.mxu0
      %v2223 = vadd.f32 %v1524, %v2222
      %2224 = vmatmul.bf16.gmra.mxu0 %v1428
      %v2225 = vpop.f32.mrf.mxu0
      %v2226 = vadd.f32 %v1524, %v2225
      %v2227 = vpop.f32.mrf.mxu0
      %v2228 = vadd.f32 %v1524, %v2227
      %2229 = vmatmul.bf16.gmra.mxu0 %v1430
      %v2230 = vpop.f32.mrf.mxu0
      %v2231 = vadd.f32 %v1524, %v2230
      %v2232 = vpop.f32.mrf.mxu0
      %v2233 = vadd.f32 %v1524, %v2232
      %2234 = vmatmul.bf16.gmra.mxu0 %v1432
      %v2235 = vpop.f32.mrf.mxu0
      %v2236 = vadd.f32 %v1524, %v2235
      %v2237 = vpop.f32.mrf.mxu0
      %v2238 = vadd.f32 %v1524, %v2237
      %2239 = vmatmul.bf16.gmra.mxu0 %v1434
      %v2240 = vpop.f32.mrf.mxu0
      %v2241 = vadd.f32 %v1524, %v2240
      %v2242 = vpop.f32.mrf.mxu0
      %v2243 = vadd.f32 %v1524, %v2242
      %2244 = vmatmul.bf16.gmra.mxu0 %v1436
      %v2245 = vpop.f32.mrf.mxu0
      %v2246 = vadd.f32 %v1524, %v2245
      %v2247 = vpop.f32.mrf.mxu0
      %v2248 = vadd.f32 %v1524, %v2247
      %2249 = vmatmul.bf16.gmra.mxu0 %v1438
      %v2250 = vpop.f32.mrf.mxu0
      %v2251 = vadd.f32 %v1524, %v2250
      %v2252 = vpop.f32.mrf.mxu0
      %v2253 = vadd.f32 %v1524, %v2252
      %2254 = vmatmul.bf16.gmra.mxu0 %v1440
      %v2255 = vpop.f32.mrf.mxu0
      %v2256 = vadd.f32 %v1524, %v2255
      %v2257 = vpop.f32.mrf.mxu0
      %v2258 = vadd.f32 %v1524, %v2257
      %2259 = vmatmul.bf16.gmra.mxu0 %v1442
      %v2260 = vpop.f32.mrf.mxu0
      %v2261 = vadd.f32 %v1524, %v2260
      %v2262 = vpop.f32.mrf.mxu0
      %v2263 = vadd.f32 %v1524, %v2262
      %2264 = vmatmul.bf16.gmra.mxu0 %v1444
      %v2265 = vpop.f32.mrf.mxu0
      %v2266 = vadd.f32 %v1524, %v2265
      %v2267 = vpop.f32.mrf.mxu0
      %v2268 = vadd.f32 %v1524, %v2267
      %2269 = vmatmul.bf16.gmra.mxu0 %v1446
      %v2270 = vpop.f32.mrf.mxu0
      %v2271 = vadd.f32 %v1524, %v2270
      %v2272 = vpop.f32.mrf.mxu0
      %v2273 = vadd.f32 %v1524, %v2272
      %2274 = vmatmul.bf16.gmra.mxu0 %v1448
      %v2275 = vpop.f32.mrf.mxu0
      %v2276 = vadd.f32 %v1524, %v2275
      %v2277 = vpop.f32.mrf.mxu0
      %v2278 = vadd.f32 %v1524, %v2277
      %2279 = vmatmul.bf16.gmra.mxu0 %v1450
      %v2280 = vpop.f32.mrf.mxu0
      %v2281 = vadd.f32 %v1524, %v2280
      %v2282 = vpop.f32.mrf.mxu0
      %v2283 = vadd.f32 %v1524, %v2282
      %2284 = vmatmul.bf16.gmra.mxu0 %v1452
      %v2285 = vpop.f32.mrf.mxu0
      %v2286 = vadd.f32 %v1524, %v2285
      %v2287 = vpop.f32.mrf.mxu0
      %v2288 = vadd.f32 %v1524, %v2287
      %2289 = vmatmul.bf16.gmra.mxu0 %v1454
      %v2290 = vpop.f32.mrf.mxu0
      %v2291 = vadd.f32 %v1524, %v2290
      %v2292 = vpop.f32.mrf.mxu0
      %v2293 = vadd.f32 %v1524, %v2292
      %2294 = vdwg.mxu0
      %2295 = vmatpush.bf16.msra.mxu0 %v1784
      %2296 = vmatpush.bf16.msra.mxu0 %v1780
      %2297 = vmatpush.bf16.msra.mxu0 %v1776
      %2298 = vmatpush.bf16.msra.mxu0 %v1772
      %2299 = vmatpush.bf16.msra.mxu0 %v1768
      %2300 = vmatpush.bf16.msra.mxu0 %v1764
      %2301 = vmatpush.bf16.msra.mxu0 %v1760
      %2302 = vmatpush.bf16.msra.mxu0 %v1756
      %2303 = vmatmul.bf16.gmra.mxu0 %v1425
      %v2304 = vpop.f32.mrf.mxu0
      %v2305 = vadd.f32 %v2216, %v2304
      %v2306 = vpop.f32.mrf.mxu0
      %v2307 = vadd.f32 %v2218, %v2306
      %2308 = vmatmul.bf16.gmra.mxu0 %v1427
      %v2309 = vpop.f32.mrf.mxu0
      %v2310 = vadd.f32 %v2221, %v2309
      %v2311 = vpop.f32.mrf.mxu0
      %v2312 = vadd.f32 %v2223, %v2311
      %2313 = vmatmul.bf16.gmra.mxu0 %v1429
      %v2314 = vpop.f32.mrf.mxu0
      %v2315 = vadd.f32 %v2226, %v2314
      %v2316 = vpop.f32.mrf.mxu0
      %v2317 = vadd.f32 %v2228, %v2316
      %2318 = vmatmul.bf16.gmra.mxu0 %v1431
      %v2319 = vpop.f32.mrf.mxu0
      %v2320 = vadd.f32 %v2231, %v2319
      %v2321 = vpop.f32.mrf.mxu0
      %v2322 = vadd.f32 %v2233, %v2321
      %2323 = vmatmul.bf16.gmra.mxu0 %v1433
      %v2324 = vpop.f32.mrf.mxu0
      %v2325 = vadd.f32 %v2236, %v2324
      %v2326 = vpop.f32.mrf.mxu0
      %v2327 = vadd.f32 %v2238, %v2326
      %2328 = vmatmul.bf16.gmra.mxu0 %v1435
      %v2329 = vpop.f32.mrf.mxu0
      %v2330 = vadd.f32 %v2241, %v2329
      %v2331 = vpop.f32.mrf.mxu0
      %v2332 = vadd.f32 %v2243, %v2331
      %2333 = vmatmul.bf16.gmra.mxu0 %v1437
      %v2334 = vpop.f32.mrf.mxu0
      %v2335 = vadd.f32 %v2246, %v2334
      %v2336 = vpop.f32.mrf.mxu0
      %v2337 = vadd.f32 %v2248, %v2336
      %2338 = vmatmul.bf16.gmra.mxu0 %v1439
      %v2339 = vpop.f32.mrf.mxu0
      %v2340 = vadd.f32 %v2251, %v2339
      %v2341 = vpop.f32.mrf.mxu0
      %v2342 = vadd.f32 %v2253, %v2341
      %2343 = vmatmul.bf16.gmra.mxu0 %v1441
      %v2344 = vpop.f32.mrf.mxu0
      %v2345 = vadd.f32 %v2256, %v2344
      %v2346 = vpop.f32.mrf.mxu0
      %v2347 = vadd.f32 %v2258, %v2346
      %2348 = vmatmul.bf16.gmra.mxu0 %v1443
      %v2349 = vpop.f32.mrf.mxu0
      %v2350 = vadd.f32 %v2261, %v2349
      %v2351 = vpop.f32.mrf.mxu0
      %v2352 = vadd.f32 %v2263, %v2351
      %2353 = vmatmul.bf16.gmra.mxu0 %v1445
      %v2354 = vpop.f32.mrf.mxu0
      %v2355 = vadd.f32 %v2266, %v2354
      %v2356 = vpop.f32.mrf.mxu0
      %v2357 = vadd.f32 %v2268, %v2356
      %2358 = vmatmul.bf16.gmra.mxu0 %v1447
      %v2359 = vpop.f32.mrf.mxu0
      %v2360 = vadd.f32 %v2271, %v2359
      %v2361 = vpop.f32.mrf.mxu0
      %v2362 = vadd.f32 %v2273, %v2361
      %2363 = vmatmul.bf16.gmra.mxu0 %v1449
      %v2364 = vpop.f32.mrf.mxu0
      %v2365 = vadd.f32 %v2276, %v2364
      %v2366 = vpop.f32.mrf.mxu0
      %v2367 = vadd.f32 %v2278, %v2366
      %2368 = vmatmul.bf16.gmra.mxu0 %v1451
      %v2369 = vpop.f32.mrf.mxu0
      %v2370 = vadd.f32 %v2281, %v2369
      %v2371 = vpop.f32.mrf.mxu0
      %v2372 = vadd.f32 %v2283, %v2371
      %2373 = vmatmul.bf16.gmra.mxu0 %v1453
      %v2374 = vpop.f32.mrf.mxu0
      %v2375 = vadd.f32 %v2286, %v2374
      %v2376 = vpop.f32.mrf.mxu0
      %v2377 = vadd.f32 %v2288, %v2376
      %2378 = vmatmul.bf16.gmra.mxu0 %v1455
      %v2379 = vpop.f32.mrf.mxu0
      %v2380 = vadd.f32 %v2291, %v2379
      %v2381 = vpop.f32.mrf.mxu0
      %v2382 = vadd.f32 %v2293, %v2381
      %2383 = vdwg.mxu0
      %2384 = vmatpush.bf16.msra.mxu0 %v1753
      %2385 = vmatpush.bf16.msra.mxu0 %v1749
      %2386 = vmatpush.bf16.msra.mxu0 %v1745
      %2387 = vmatpush.bf16.msra.mxu0 %v1741
      %2388 = vmatpush.bf16.msra.mxu0 %v1737
      %2389 = vmatpush.bf16.msra.mxu0 %v1733
      %2390 = vmatpush.bf16.msra.mxu0 %v1729
      %2391 = vmatpush.bf16.msra.mxu0 %v1725
      %2392 = vmatmul.bf16.gmra.mxu0 %v1424
      %v2393 = vpop.f32.mrf.mxu0
      %v2394 = vadd.f32 %v1525, %v2393
      %v2395 = vpop.f32.mrf.mxu0
      %v2396 = vadd.f32 %v1525, %v2395
      %2397 = vmatmul.bf16.gmra.mxu0 %v1426
      %v2398 = vpop.f32.mrf.mxu0
      %v2399 = vadd.f32 %v1525, %v2398
      %v2400 = vpop.f32.mrf.mxu0
      %v2401 = vadd.f32 %v1525, %v2400
      %2402 = vmatmul.bf16.gmra.mxu0 %v1428
      %v2403 = vpop.f32.mrf.mxu0
      %v2404 = vadd.f32 %v1525, %v2403
      %v2405 = vpop.f32.mrf.mxu0
      %v2406 = vadd.f32 %v1525, %v2405
      %2407 = vmatmul.bf16.gmra.mxu0 %v1430
      %v2408 = vpop.f32.mrf.mxu0
      %v2409 = vadd.f32 %v1525, %v2408
      %v2410 = vpop.f32.mrf.mxu0
      %v2411 = vadd.f32 %v1525, %v2410
      %2412 = vmatmul.bf16.gmra.mxu0 %v1432
      %v2413 = vpop.f32.mrf.mxu0
      %v2414 = vadd.f32 %v1525, %v2413
      %v2415 = vpop.f32.mrf.mxu0
      %v2416 = vadd.f32 %v1525, %v2415
      %2417 = vmatmul.bf16.gmra.mxu0 %v1434
      %v2418 = vpop.f32.mrf.mxu0
      %v2419 = vadd.f32 %v1525, %v2418
      %v2420 = vpop.f32.mrf.mxu0
      %v2421 = vadd.f32 %v1525, %v2420
      %2422 = vmatmul.bf16.gmra.mxu0 %v1436
      %v2423 = vpop.f32.mrf.mxu0
      %v2424 = vadd.f32 %v1525, %v2423
      %v2425 = vpop.f32.mrf.mxu0
      %v2426 = vadd.f32 %v1525, %v2425
      %2427 = vmatmul.bf16.gmra.mxu0 %v1438
      %v2428 = vpop.f32.mrf.mxu0
      %v2429 = vadd.f32 %v1525, %v2428
      %v2430 = vpop.f32.mrf.mxu0
      %v2431 = vadd.f32 %v1525, %v2430
      %2432 = vmatmul.bf16.gmra.mxu0 %v1440
      %v2433 = vpop.f32.mrf.mxu0
      %v2434 = vadd.f32 %v1525, %v2433
      %v2435 = vpop.f32.mrf.mxu0
      %v2436 = vadd.f32 %v1525, %v2435
      %2437 = vmatmul.bf16.gmra.mxu0 %v1442
      %v2438 = vpop.f32.mrf.mxu0
      %v2439 = vadd.f32 %v1525, %v2438
      %v2440 = vpop.f32.mrf.mxu0
      %v2441 = vadd.f32 %v1525, %v2440
      %2442 = vmatmul.bf16.gmra.mxu0 %v1444
      %v2443 = vpop.f32.mrf.mxu0
      %v2444 = vadd.f32 %v1525, %v2443
      %v2445 = vpop.f32.mrf.mxu0
      %v2446 = vadd.f32 %v1525, %v2445
      %2447 = vmatmul.bf16.gmra.mxu0 %v1446
      %v2448 = vpop.f32.mrf.mxu0
      %v2449 = vadd.f32 %v1525, %v2448
      %v2450 = vpop.f32.mrf.mxu0
      %v2451 = vadd.f32 %v1525, %v2450
      %2452 = vmatmul.bf16.gmra.mxu0 %v1448
      %v2453 = vpop.f32.mrf.mxu0
      %v2454 = vadd.f32 %v1525, %v2453
      %v2455 = vpop.f32.mrf.mxu0
      %v2456 = vadd.f32 %v1525, %v2455
      %2457 = vmatmul.bf16.gmra.mxu0 %v1450
      %v2458 = vpop.f32.mrf.mxu0
      %v2459 = vadd.f32 %v1525, %v2458
      %v2460 = vpop.f32.mrf.mxu0
      %v2461 = vadd.f32 %v1525, %v2460
      %2462 = vmatmul.bf16.gmra.mxu0 %v1452
      %v2463 = vpop.f32.mrf.mxu0
      %v2464 = vadd.f32 %v1525, %v2463
      %v2465 = vpop.f32.mrf.mxu0
      %v2466 = vadd.f32 %v1525, %v2465
      %2467 = vmatmul.bf16.gmra.mxu0 %v1454
      %v2468 = vpop.f32.mrf.mxu0
      %v2469 = vadd.f32 %v1525, %v2468
      %v2470 = vpop.f32.mrf.mxu0
      %v2471 = vadd.f32 %v1525, %v2470
      %2472 = vdwg.mxu0
      %2473 = vmatpush.bf16.msra.mxu0 %v1785
      %2474 = vmatpush.bf16.msra.mxu0 %v1781
      %2475 = vmatpush.bf16.msra.mxu0 %v1777
      %2476 = vmatpush.bf16.msra.mxu0 %v1773
      %2477 = vmatpush.bf16.msra.mxu0 %v1769
      %2478 = vmatpush.bf16.msra.mxu0 %v1765
      %2479 = vmatpush.bf16.msra.mxu0 %v1761
      %2480 = vmatpush.bf16.msra.mxu0 %v1757
      %2481 = vmatmul.bf16.gmra.mxu0 %v1425
      %v2482 = vpop.f32.mrf.mxu0
      %v2483 = vadd.f32 %v2394, %v2482
      %v2484 = vpop.f32.mrf.mxu0
      %v2485 = vadd.f32 %v2396, %v2484
      %2486 = vmatmul.bf16.gmra.mxu0 %v1427
      %v2487 = vpop.f32.mrf.mxu0
      %v2488 = vadd.f32 %v2399, %v2487
      %v2489 = vpop.f32.mrf.mxu0
      %v2490 = vadd.f32 %v2401, %v2489
      %2491 = vmatmul.bf16.gmra.mxu0 %v1429
      %v2492 = vpop.f32.mrf.mxu0
      %v2493 = vadd.f32 %v2404, %v2492
      %v2494 = vpop.f32.mrf.mxu0
      %v2495 = vadd.f32 %v2406, %v2494
      %2496 = vmatmul.bf16.gmra.mxu0 %v1431
      %v2497 = vpop.f32.mrf.mxu0
      %v2498 = vadd.f32 %v2409, %v2497
      %v2499 = vpop.f32.mrf.mxu0
      %v2500 = vadd.f32 %v2411, %v2499
      %2501 = vmatmul.bf16.gmra.mxu0 %v1433
      %v2502 = vpop.f32.mrf.mxu0
      %v2503 = vadd.f32 %v2414, %v2502
      %v2504 = vpop.f32.mrf.mxu0
      %v2505 = vadd.f32 %v2416, %v2504
      %2506 = vmatmul.bf16.gmra.mxu0 %v1435
      %v2507 = vpop.f32.mrf.mxu0
      %v2508 = vadd.f32 %v2419, %v2507
      %v2509 = vpop.f32.mrf.mxu0
      %v2510 = vadd.f32 %v2421, %v2509
      %2511 = vmatmul.bf16.gmra.mxu0 %v1437
      %v2512 = vpop.f32.mrf.mxu0
      %v2513 = vadd.f32 %v2424, %v2512
      %v2514 = vpop.f32.mrf.mxu0
      %v2515 = vadd.f32 %v2426, %v2514
      %2516 = vmatmul.bf16.gmra.mxu0 %v1439
      %v2517 = vpop.f32.mrf.mxu0
      %v2518 = vadd.f32 %v2429, %v2517
      %v2519 = vpop.f32.mrf.mxu0
      %v2520 = vadd.f32 %v2431, %v2519
      %2521 = vmatmul.bf16.gmra.mxu0 %v1441
      %v2522 = vpop.f32.mrf.mxu0
      %v2523 = vadd.f32 %v2434, %v2522
      %v2524 = vpop.f32.mrf.mxu0
      %v2525 = vadd.f32 %v2436, %v2524
      %2526 = vmatmul.bf16.gmra.mxu0 %v1443
      %v2527 = vpop.f32.mrf.mxu0
      %v2528 = vadd.f32 %v2439, %v2527
      %v2529 = vpop.f32.mrf.mxu0
      %v2530 = vadd.f32 %v2441, %v2529
      %2531 = vmatmul.bf16.gmra.mxu0 %v1445
      %v2532 = vpop.f32.mrf.mxu0
      %v2533 = vadd.f32 %v2444, %v2532
      %v2534 = vpop.f32.mrf.mxu0
      %v2535 = vadd.f32 %v2446, %v2534
      %2536 = vmatmul.bf16.gmra.mxu0 %v1447
      %v2537 = vpop.f32.mrf.mxu0
      %v2538 = vadd.f32 %v2449, %v2537
      %v2539 = vpop.f32.mrf.mxu0
      %v2540 = vadd.f32 %v2451, %v2539
      %2541 = vmatmul.bf16.gmra.mxu0 %v1449
      %v2542 = vpop.f32.mrf.mxu0
      %v2543 = vadd.f32 %v2454, %v2542
      %v2544 = vpop.f32.mrf.mxu0
      %v2545 = vadd.f32 %v2456, %v2544
      %2546 = vmatmul.bf16.gmra.mxu0 %v1451
      %v2547 = vpop.f32.mrf.mxu0
      %v2548 = vadd.f32 %v2459, %v2547
      %v2549 = vpop.f32.mrf.mxu0
      %v2550 = vadd.f32 %v2461, %v2549
      %2551 = vmatmul.bf16.gmra.mxu0 %v1453
      %v2552 = vpop.f32.mrf.mxu0
      %v2553 = vadd.f32 %v2464, %v2552
      %v2554 = vpop.f32.mrf.mxu0
      %v2555 = vadd.f32 %v2466, %v2554
      %2556 = vmatmul.bf16.gmra.mxu0 %v1455
      %v2557 = vpop.f32.mrf.mxu0
      %v2558 = vadd.f32 %v2469, %v2557
      %v2559 = vpop.f32.mrf.mxu0
      %v2560 = vadd.f32 %v2471, %v2559
      %2561 = vdwg.mxu0
      %v2562 = vmax.f32 %v1949, 0.0
      %v2563 = vmax.f32 %v2127, 0.0
      %v2564 = vmax.f32 %v2305, 0.0
      %v2565 = vmax.f32 %v2483, 0.0
      %v2566 = vmax.f32 %v1951, 0.0
      %v2567 = vmax.f32 %v2129, 0.0
      %v2568 = vmax.f32 %v2307, 0.0
      %v2569 = vmax.f32 %v2485, 0.0
      %v2570 = vmax.f32 %v1954, 0.0
      %v2571 = vmax.f32 %v2132, 0.0
      %v2572 = vmax.f32 %v2310, 0.0
      %v2573 = vmax.f32 %v2488, 0.0
      %v2574 = vmax.f32 %v1956, 0.0
      %v2575 = vmax.f32 %v2134, 0.0
      %v2576 = vmax.f32 %v2312, 0.0
      %v2577 = vmax.f32 %v2490, 0.0
      %v2578 = vmax.f32 %v1959, 0.0
      %v2579 = vmax.f32 %v2137, 0.0
      %v2580 = vmax.f32 %v2315, 0.0
      %v2581 = vmax.f32 %v2493, 0.0
      %v2582 = vmax.f32 %v1961, 0.0
      %v2583 = vmax.f32 %v2139, 0.0
      %v2584 = vmax.f32 %v2317, 0.0
      %v2585 = vmax.f32 %v2495, 0.0
      %v2586 = vmax.f32 %v1964, 0.0
      %v2587 = vmax.f32 %v2142, 0.0
      %v2588 = vmax.f32 %v2320, 0.0
      %v2589 = vmax.f32 %v2498, 0.0
      %v2590 = vmax.f32 %v1966, 0.0
      %v2591 = vmax.f32 %v2144, 0.0
      %v2592 = vmax.f32 %v2322, 0.0
      %v2593 = vmax.f32 %v2500, 0.0
      %v2594 = vmax.f32 %v1969, 0.0
      %v2595 = vmax.f32 %v2147, 0.0
      %v2596 = vmax.f32 %v2325, 0.0
      %v2597 = vmax.f32 %v2503, 0.0
      %v2598 = vmax.f32 %v1971, 0.0
      %v2599 = vmax.f32 %v2149, 0.0
      %v2600 = vmax.f32 %v2327, 0.0
      %v2601 = vmax.f32 %v2505, 0.0
      %v2602 = vmax.f32 %v1974, 0.0
      %v2603 = vmax.f32 %v2152, 0.0
      %v2604 = vmax.f32 %v2330, 0.0
      %v2605 = vmax.f32 %v2508, 0.0
      %v2606 = vmax.f32 %v1976, 0.0
      %v2607 = vmax.f32 %v2154, 0.0
      %v2608 = vmax.f32 %v2332, 0.0
      %v2609 = vmax.f32 %v2510, 0.0
      %v2610 = vmax.f32 %v1979, 0.0
      %v2611 = vmax.f32 %v2157, 0.0
      %v2612 = vmax.f32 %v2335, 0.0
      %v2613 = vmax.f32 %v2513, 0.0
      %v2614 = vmax.f32 %v1981, 0.0
      %v2615 = vmax.f32 %v2159, 0.0
      %v2616 = vmax.f32 %v2337, 0.0
      %v2617 = vmax.f32 %v2515, 0.0
      %v2618 = vmax.f32 %v1984, 0.0
      %v2619 = vmax.f32 %v2162, 0.0
      %v2620 = vmax.f32 %v2340, 0.0
      %v2621 = vmax.f32 %v2518, 0.0
      %v2622 = vmax.f32 %v1986, 0.0
      %v2623 = vmax.f32 %v2164, 0.0
      %v2624 = vmax.f32 %v2342, 0.0
      %v2625 = vmax.f32 %v2520, 0.0
      %v2626 = vmax.f32 %v1989, 0.0
      %v2627 = vmax.f32 %v2167, 0.0
      %v2628 = vmax.f32 %v2345, 0.0
      %v2629 = vmax.f32 %v2523, 0.0
      %v2630 = vmax.f32 %v1991, 0.0
      %v2631 = vmax.f32 %v2169, 0.0
      %v2632 = vmax.f32 %v2347, 0.0
      %v2633 = vmax.f32 %v2525, 0.0
      %v2634 = vmax.f32 %v1994, 0.0
      %v2635 = vmax.f32 %v2172, 0.0
      %v2636 = vmax.f32 %v2350, 0.0
      %v2637 = vmax.f32 %v2528, 0.0
      %v2638 = vmax.f32 %v1996, 0.0
      %v2639 = vmax.f32 %v2174, 0.0
      %v2640 = vmax.f32 %v2352, 0.0
      %v2641 = vmax.f32 %v2530, 0.0
      %v2642 = vmax.f32 %v1999, 0.0
      %v2643 = vmax.f32 %v2177, 0.0
      %v2644 = vmax.f32 %v2355, 0.0
      %v2645 = vmax.f32 %v2533, 0.0
      %v2646 = vmax.f32 %v2001, 0.0
      %v2647 = vmax.f32 %v2179, 0.0
      %v2648 = vmax.f32 %v2357, 0.0
      %v2649 = vmax.f32 %v2535, 0.0
      %v2650 = vmax.f32 %v2004, 0.0
      %v2651 = vmax.f32 %v2182, 0.0
      %v2652 = vmax.f32 %v2360, 0.0
      %v2653 = vmax.f32 %v2538, 0.0
      %v2654 = vmax.f32 %v2006, 0.0
      %v2655 = vmax.f32 %v2184, 0.0
      %v2656 = vmax.f32 %v2362, 0.0
      %v2657 = vmax.f32 %v2540, 0.0
      %v2658 = vmax.f32 %v2009, 0.0
      %v2659 = vmax.f32 %v2187, 0.0
      %v2660 = vmax.f32 %v2365, 0.0
      %v2661 = vmax.f32 %v2543, 0.0
      %v2662 = vmax.f32 %v2011, 0.0
      %v2663 = vmax.f32 %v2189, 0.0
      %v2664 = vmax.f32 %v2367, 0.0
      %v2665 = vmax.f32 %v2545, 0.0
      %v2666 = vmax.f32 %v2014, 0.0
      %v2667 = vmax.f32 %v2192, 0.0
      %v2668 = vmax.f32 %v2370, 0.0
      %v2669 = vmax.f32 %v2548, 0.0
      %v2670 = vmax.f32 %v2016, 0.0
      %v2671 = vmax.f32 %v2194, 0.0
      %v2672 = vmax.f32 %v2372, 0.0
      %v2673 = vmax.f32 %v2550, 0.0
      %v2674 = vmax.f32 %v2019, 0.0
      %v2675 = vmax.f32 %v2197, 0.0
      %v2676 = vmax.f32 %v2375, 0.0
      %v2677 = vmax.f32 %v2553, 0.0
      %v2678 = vmax.f32 %v2021, 0.0
      %v2679 = vmax.f32 %v2199, 0.0
      %v2680 = vmax.f32 %v2377, 0.0
      %v2681 = vmax.f32 %v2555, 0.0
      %v2682 = vmax.f32 %v2024, 0.0
      %v2683 = vmax.f32 %v2202, 0.0
      %v2684 = vmax.f32 %v2380, 0.0
      %v2685 = vmax.f32 %v2558, 0.0
      %v2686 = vmax.f32 %v2026, 0.0
      %v2687 = vmax.f32 %v2204, 0.0
      %v2688 = vmax.f32 %v2382, 0.0
      %v2689 = vmax.f32 %v2560, 0.0
      %v2690 = vpack.c.bf16 %v2566, %v2562
      %v2691 = vpack.c.bf16 %v2567, %v2563
      %v2692 = vpack.c.bf16 %v2568, %v2564
      %v2693 = vpack.c.bf16 %v2569, %v2565
      %v2694 = vpack.c.bf16 %v2574, %v2570
      %v2695 = vpack.c.bf16 %v2575, %v2571
      %v2696 = vpack.c.bf16 %v2576, %v2572
      %v2697 = vpack.c.bf16 %v2577, %v2573
      %v2698 = vpack.c.bf16 %v2582, %v2578
      %v2699 = vpack.c.bf16 %v2583, %v2579
      %v2700 = vpack.c.bf16 %v2584, %v2580
      %v2701 = vpack.c.bf16 %v2585, %v2581
      %v2702 = vpack.c.bf16 %v2590, %v2586
      %v2703 = vpack.c.bf16 %v2591, %v2587
      %v2704 = vpack.c.bf16 %v2592, %v2588
      %v2705 = vpack.c.bf16 %v2593, %v2589
      %v2706 = vpack.c.bf16 %v2598, %v2594
      %v2707 = vpack.c.bf16 %v2599, %v2595
      %v2708 = vpack.c.bf16 %v2600, %v2596
      %v2709 = vpack.c.bf16 %v2601, %v2597
      %v2710 = vpack.c.bf16 %v2606, %v2602
      %v2711 = vpack.c.bf16 %v2607, %v2603
      %v2712 = vpack.c.bf16 %v2608, %v2604
      %v2713 = vpack.c.bf16 %v2609, %v2605
      %v2714 = vpack.c.bf16 %v2614, %v2610
      %v2715 = vpack.c.bf16 %v2615, %v2611
      %v2716 = vpack.c.bf16 %v2616, %v2612
      %v2717 = vpack.c.bf16 %v2617, %v2613
      %v2718 = vpack.c.bf16 %v2622, %v2618
      %v2719 = vpack.c.bf16 %v2623, %v2619
      %v2720 = vpack.c.bf16 %v2624, %v2620
      %v2721 = vpack.c.bf16 %v2625, %v2621
      %v2722 = vpack.c.bf16 %v2630, %v2626
      %v2723 = vpack.c.bf16 %v2631, %v2627
      %v2724 = vpack.c.bf16 %v2632, %v2628
      %v2725 = vpack.c.bf16 %v2633, %v2629
      %v2726 = vpack.c.bf16 %v2638, %v2634
      %v2727 = vpack.c.bf16 %v2639, %v2635
      %v2728 = vpack.c.bf16 %v2640, %v2636
      %v2729 = vpack.c.bf16 %v2641, %v2637
      %v2730 = vpack.c.bf16 %v2646, %v2642
      %v2731 = vpack.c.bf16 %v2647, %v2643
      %v2732 = vpack.c.bf16 %v2648, %v2644
      %v2733 = vpack.c.bf16 %v2649, %v2645
      %v2734 = vpack.c.bf16 %v2654, %v2650
      %v2735 = vpack.c.bf16 %v2655, %v2651
      %v2736 = vpack.c.bf16 %v2656, %v2652
      %v2737 = vpack.c.bf16 %v2657, %v2653
      %v2738 = vpack.c.bf16 %v2662, %v2658
      %v2739 = vpack.c.bf16 %v2663, %v2659
      %v2740 = vpack.c.bf16 %v2664, %v2660
      %v2741 = vpack.c.bf16 %v2665, %v2661
      %v2742 = vpack.c.bf16 %v2670, %v2666
      %v2743 = vpack.c.bf16 %v2671, %v2667
      %v2744 = vpack.c.bf16 %v2672, %v2668
      %v2745 = vpack.c.bf16 %v2673, %v2669
      %v2746 = vpack.c.bf16 %v2678, %v2674
      %v2747 = vpack.c.bf16 %v2679, %v2675
      %v2748 = vpack.c.bf16 %v2680, %v2676
      %v2749 = vpack.c.bf16 %v2681, %v2677
      %v2750 = vpack.c.bf16 %v2686, %v2682
      %v2751 = vpack.c.bf16 %v2687, %v2683
      %v2752 = vpack.c.bf16 %v2688, %v2684
      %v2753 = vpack.c.bf16 %v2689, %v2685
      %v2754 = vld [vmem:[%s7] sm:$0xf]
      %v2755 = vld [vmem:[%s7 + $0x4] sm:$0xf]
      %v2756 = vld [vmem:[%s7 + $0x8] sm:$0xf]
      %v2757 = vld [vmem:[%s7 + $0xc] sm:$0xf]
      %v2758 = vld [vmem:[%s7 + $0x10] sm:$0xf]
      %v2759 = vld [vmem:[%s7 + $0x14] sm:$0xf]
      %v2760 = vld [vmem:[%s7 + $0x18] sm:$0xf]
      %v2761 = vld [vmem:[%s7 + $0x1c] sm:$0xf]
      %v2762 = vld [vmem:[%s7 + $0x20] sm:$0xf]
      %v2763 = vld [vmem:[%s7 + $0x24] sm:$0xf]
      %v2764 = vld [vmem:[%s7 + $0x28] sm:$0xf]
      %v2765 = vld [vmem:[%s7 + $0x2c] sm:$0xf]
      %v2766 = vld [vmem:[%s7 + $0x30] sm:$0xf]
      %v2767 = vld [vmem:[%s7 + $0x34] sm:$0xf]
      %v2768 = vld [vmem:[%s7 + $0x38] sm:$0xf]
      %v2769 = vld [vmem:[%s7 + $0x3c] sm:$0xf]
      %v2770 = vld [vmem:[%s7 + $0x40] sm:$0xf]
      %v2771 = vld [vmem:[%s7 + $0x44] sm:$0xf]
      %v2772 = vld [vmem:[%s7 + $0x48] sm:$0xf]
      %v2773 = vld [vmem:[%s7 + $0x4c] sm:$0xf]
      %v2774 = vld [vmem:[%s7 + $0x50] sm:$0xf]
      %v2775 = vld [vmem:[%s7 + $0x54] sm:$0xf]
      %v2776 = vld [vmem:[%s7 + $0x58] sm:$0xf]
      %v2777 = vld [vmem:[%s7 + $0x5c] sm:$0xf]
      %v2778 = vld [vmem:[%s7 + $0x60] sm:$0xf]
      %v2779 = vld [vmem:[%s7 + $0x64] sm:$0xf]
      %v2780 = vld [vmem:[%s7 + $0x68] sm:$0xf]
      %v2781 = vld [vmem:[%s7 + $0x6c] sm:$0xf]
      %v2782 = vld [vmem:[%s7 + $0x70] sm:$0xf]
      %v2783 = vld [vmem:[%s7 + $0x74] sm:$0xf]
      %v2784 = vld [vmem:[%s7 + $0x78] sm:$0xf]
      %v2785 = vld [vmem:[%s7 + $0x7c] sm:$0xf]
      %v2786 = vld [vmem:[%s7 + $0x80] sm:$0xf]
      %v2787 = vld [vmem:[%s7 + $0x84] sm:$0xf]
      %v2788 = vld [vmem:[%s7 + $0x88] sm:$0xf]
      %v2789 = vld [vmem:[%s7 + $0x8c] sm:$0xf]
      %v2790 = vld [vmem:[%s7 + $0x90] sm:$0xf]
      %v2791 = vld [vmem:[%s7 + $0x94] sm:$0xf]
      %v2792 = vld [vmem:[%s7 + $0x98] sm:$0xf]
      %v2793 = vld [vmem:[%s7 + $0x9c] sm:$0xf]
      %v2794 = vld [vmem:[%s7 + $0xa0] sm:$0xf]
      %v2795 = vld [vmem:[%s7 + $0xa4] sm:$0xf]
      %v2796 = vld [vmem:[%s7 + $0xa8] sm:$0xf]
      %v2797 = vld [vmem:[%s7 + $0xac] sm:$0xf]
      %v2798 = vld [vmem:[%s7 + $0xb0] sm:$0xf]
      %v2799 = vld [vmem:[%s7 + $0xb4] sm:$0xf]
      %v2800 = vld [vmem:[%s7 + $0xb8] sm:$0xf]
      %v2801 = vld [vmem:[%s7 + $0xbc] sm:$0xf]
      %v2802 = vld [vmem:[%s7 + $0xc0] sm:$0xf]
      %v2803 = vld [vmem:[%s7 + $0xc4] sm:$0xf]
      %v2804 = vld [vmem:[%s7 + $0xc8] sm:$0xf]
      %v2805 = vld [vmem:[%s7 + $0xcc] sm:$0xf]
      %v2806 = vld [vmem:[%s7 + $0xd0] sm:$0xf]
      %v2807 = vld [vmem:[%s7 + $0xd4] sm:$0xf]
      %v2808 = vld [vmem:[%s7 + $0xd8] sm:$0xf]
      %v2809 = vld [vmem:[%s7 + $0xdc] sm:$0xf]
      %v2810 = vld [vmem:[%s7 + $0xe0] sm:$0xf]
      %v2811 = vld [vmem:[%s7 + $0xe4] sm:$0xf]
      %v2812 = vld [vmem:[%s7 + $0xe8] sm:$0xf]
      %v2813 = vld [vmem:[%s7 + $0xec] sm:$0xf]
      %v2814 = vld [vmem:[%s7 + $0xf0] sm:$0xf]
      %v2815 = vld [vmem:[%s7 + $0xf4] sm:$0xf]
      %v2816 = vld [vmem:[%s7 + $0xf8] sm:$0xf]
      %v2817 = vld [vmem:[%s7 + $0xfc] sm:$0xf]
      %v2818 = vld [vmem:[%s8] sm:$0x1]
      %v2820 = vperm.slane %v2818, 0
      %v2886 = vunpack.c.l.b16 %v2754
      %v2887 = vunpack.c.l.b16 %v2755
      %v2888 = vunpack.c.l.b16 %v2756
      %v2889 = vunpack.c.l.b16 %v2757
      %v2890 = vunpack.c.l.b16 %v2758
      %v2891 = vunpack.c.l.b16 %v2759
      %v2892 = vunpack.c.l.b16 %v2760
      %v2893 = vunpack.c.l.b16 %v2761
      %v2894 = vunpack.c.l.b16 %v2762
      %v2895 = vunpack.c.l.b16 %v2763
      %v2896 = vunpack.c.l.b16 %v2764
      %v2897 = vunpack.c.l.b16 %v2765
      %v2898 = vunpack.c.l.b16 %v2766
      %v2899 = vunpack.c.l.b16 %v2767
      %v2900 = vunpack.c.l.b16 %v2768
      %v2901 = vunpack.c.l.b16 %v2769
      %v2902 = vunpack.c.l.b16 %v2770
      %v2903 = vunpack.c.l.b16 %v2771
      %v2904 = vunpack.c.l.b16 %v2772
      %v2905 = vunpack.c.l.b16 %v2773
      %v2906 = vunpack.c.l.b16 %v2774
      %v2907 = vunpack.c.l.b16 %v2775
      %v2908 = vunpack.c.l.b16 %v2776
      %v2909 = vunpack.c.l.b16 %v2777
      %v2910 = vunpack.c.l.b16 %v2778
      %v2911 = vunpack.c.l.b16 %v2779
      %v2912 = vunpack.c.l.b16 %v2780
      %v2913 = vunpack.c.l.b16 %v2781
      %v2914 = vunpack.c.l.b16 %v2782
      %v2915 = vunpack.c.l.b16 %v2783
      %v2916 = vunpack.c.l.b16 %v2784
      %v2917 = vunpack.c.l.b16 %v2785
      %v2918 = vunpack.c.l.b16 %v2786
      %v2919 = vunpack.c.l.b16 %v2787
      %v2920 = vunpack.c.l.b16 %v2788
      %v2921 = vunpack.c.l.b16 %v2789
      %v2922 = vunpack.c.l.b16 %v2790
      %v2923 = vunpack.c.l.b16 %v2791
      %v2924 = vunpack.c.l.b16 %v2792
      %v2925 = vunpack.c.l.b16 %v2793
      %v2926 = vunpack.c.l.b16 %v2794
      %v2927 = vunpack.c.l.b16 %v2795
      %v2928 = vunpack.c.l.b16 %v2796
      %v2929 = vunpack.c.l.b16 %v2797
      %v2930 = vunpack.c.l.b16 %v2798
      %v2931 = vunpack.c.l.b16 %v2799
      %v2932 = vunpack.c.l.b16 %v2800
      %v2933 = vunpack.c.l.b16 %v2801
      %v2934 = vunpack.c.l.b16 %v2802
      %v2935 = vunpack.c.l.b16 %v2803
      %v2936 = vunpack.c.l.b16 %v2804
      %v2937 = vunpack.c.l.b16 %v2805
      %v2938 = vunpack.c.l.b16 %v2806
      %v2939 = vunpack.c.l.b16 %v2807
      %v2940 = vunpack.c.l.b16 %v2808
      %v2941 = vunpack.c.l.b16 %v2809
      %v2942 = vunpack.c.l.b16 %v2810
      %v2943 = vunpack.c.l.b16 %v2811
      %v2944 = vunpack.c.l.b16 %v2812
      %v2945 = vunpack.c.l.b16 %v2813
      %v2946 = vunpack.c.l.b16 %v2814
      %v2947 = vunpack.c.l.b16 %v2815
      %v2948 = vunpack.c.l.b16 %v2816
      %v2949 = vunpack.c.l.b16 %v2817
      %v2950 = vpack.c.b16 %v2887, %v2886
      %v2951 = vpack.c.b16 %v2889, %v2888
      %v2952 = vpack.c.b16 %v2891, %v2890
      %v2953 = vpack.c.b16 %v2893, %v2892
      %v2954 = vpack.c.b16 %v2895, %v2894
      %v2955 = vpack.c.b16 %v2897, %v2896
      %v2956 = vpack.c.b16 %v2899, %v2898
      %v2957 = vpack.c.b16 %v2901, %v2900
      %v2958 = vpack.c.b16 %v2903, %v2902
      %v2959 = vpack.c.b16 %v2905, %v2904
      %v2960 = vpack.c.b16 %v2907, %v2906
      %v2961 = vpack.c.b16 %v2909, %v2908
      %v2962 = vpack.c.b16 %v2911, %v2910
      %v2963 = vpack.c.b16 %v2913, %v2912
      %v2964 = vpack.c.b16 %v2915, %v2914
      %v2965 = vpack.c.b16 %v2917, %v2916
      %v2966 = vpack.c.b16 %v2919, %v2918
      %v2967 = vpack.c.b16 %v2921, %v2920
      %v2968 = vpack.c.b16 %v2923, %v2922
      %v2969 = vpack.c.b16 %v2925, %v2924
      %v2970 = vpack.c.b16 %v2927, %v2926
      %v2971 = vpack.c.b16 %v2929, %v2928
      %v2972 = vpack.c.b16 %v2931, %v2930
      %v2973 = vpack.c.b16 %v2933, %v2932
      %v2974 = vpack.c.b16 %v2935, %v2934
      %v2975 = vpack.c.b16 %v2937, %v2936
      %v2976 = vpack.c.b16 %v2939, %v2938
      %v2977 = vpack.c.b16 %v2941, %v2940
      %v2978 = vpack.c.b16 %v2943, %v2942
      %v2979 = vpack.c.b16 %v2945, %v2944
      %v2980 = vpack.c.b16 %v2947, %v2946
      %v2981 = vpack.c.b16 %v2949, %v2948
      %3014 = vmatpush.bf16.msra.mxu0 %v2957
      %3015 = vmatpush.bf16.msra.mxu0 %v2956
      %3016 = vmatpush.bf16.msra.mxu0 %v2955
      %3017 = vmatpush.bf16.msra.mxu0 %v2954
      %3018 = vmatpush.bf16.msra.mxu0 %v2953
      %3019 = vmatpush.bf16.msra.mxu0 %v2952
      %3020 = vmatpush.bf16.msra.mxu0 %v2951
      %3021 = vmatpush.bf16.msra.mxu0 %v2950
      %3022 = vmatmul.bf16.gmra.mxu0 %v2690
      %v3023 = vpop.f32.mrf.mxu0
      %v3024 = vadd.f32 %v2820, %v3023
      %v3025 = vpop.f32.mrf.mxu0
      %v3026 = vadd.f32 %v2820, %v3025
      %3027 = vmatmul.bf16.gmra.mxu0 %v2694
      %v3028 = vpop.f32.mrf.mxu0
      %v3029 = vadd.f32 %v2820, %v3028
      %v3030 = vpop.f32.mrf.mxu0
      %v3031 = vadd.f32 %v2820, %v3030
      %3032 = vmatmul.bf16.gmra.mxu0 %v2698
      %v3033 = vpop.f32.mrf.mxu0
      %v3034 = vadd.f32 %v2820, %v3033
      %v3035 = vpop.f32.mrf.mxu0
      %v3036 = vadd.f32 %v2820, %v3035
      %3037 = vmatmul.bf16.gmra.mxu0 %v2702
      %v3038 = vpop.f32.mrf.mxu0
      %v3039 = vadd.f32 %v2820, %v3038
      %v3040 = vpop.f32.mrf.mxu0
      %v3041 = vadd.f32 %v2820, %v3040
      %3042 = vmatmul.bf16.gmra.mxu0 %v2706
      %v3043 = vpop.f32.mrf.mxu0
      %v3044 = vadd.f32 %v2820, %v3043
      %v3045 = vpop.f32.mrf.mxu0
      %v3046 = vadd.f32 %v2820, %v3045
      %3047 = vmatmul.bf16.gmra.mxu0 %v2710
      %v3048 = vpop.f32.mrf.mxu0
      %v3049 = vadd.f32 %v2820, %v3048
      %v3050 = vpop.f32.mrf.mxu0
      %v3051 = vadd.f32 %v2820, %v3050
      %3052 = vmatmul.bf16.gmra.mxu0 %v2714
      %v3053 = vpop.f32.mrf.mxu0
      %v3054 = vadd.f32 %v2820, %v3053
      %v3055 = vpop.f32.mrf.mxu0
      %v3056 = vadd.f32 %v2820, %v3055
      %3057 = vmatmul.bf16.gmra.mxu0 %v2718
      %v3058 = vpop.f32.mrf.mxu0
      %v3059 = vadd.f32 %v2820, %v3058
      %v3060 = vpop.f32.mrf.mxu0
      %v3061 = vadd.f32 %v2820, %v3060
      %3062 = vmatmul.bf16.gmra.mxu0 %v2722
      %v3063 = vpop.f32.mrf.mxu0
      %v3064 = vadd.f32 %v2820, %v3063
      %v3065 = vpop.f32.mrf.mxu0
      %v3066 = vadd.f32 %v2820, %v3065
      %3067 = vmatmul.bf16.gmra.mxu0 %v2726
      %v3068 = vpop.f32.mrf.mxu0
      %v3069 = vadd.f32 %v2820, %v3068
      %v3070 = vpop.f32.mrf.mxu0
      %v3071 = vadd.f32 %v2820, %v3070
      %3072 = vmatmul.bf16.gmra.mxu0 %v2730
      %v3073 = vpop.f32.mrf.mxu0
      %v3074 = vadd.f32 %v2820, %v3073
      %v3075 = vpop.f32.mrf.mxu0
      %v3076 = vadd.f32 %v2820, %v3075
      %3077 = vmatmul.bf16.gmra.mxu0 %v2734
      %v3078 = vpop.f32.mrf.mxu0
      %v3079 = vadd.f32 %v2820, %v3078
      %v3080 = vpop.f32.mrf.mxu0
      %v3081 = vadd.f32 %v2820, %v3080
      %3082 = vmatmul.bf16.gmra.mxu0 %v2738
      %v3083 = vpop.f32.mrf.mxu0
      %v3084 = vadd.f32 %v2820, %v3083
      %v3085 = vpop.f32.mrf.mxu0
      %v3086 = vadd.f32 %v2820, %v3085
      %3087 = vmatmul.bf16.gmra.mxu0 %v2742
      %v3088 = vpop.f32.mrf.mxu0
      %v3089 = vadd.f32 %v2820, %v3088
      %v3090 = vpop.f32.mrf.mxu0
      %v3091 = vadd.f32 %v2820, %v3090
      %3092 = vmatmul.bf16.gmra.mxu0 %v2746
      %v3093 = vpop.f32.mrf.mxu0
      %v3094 = vadd.f32 %v2820, %v3093
      %v3095 = vpop.f32.mrf.mxu0
      %v3096 = vadd.f32 %v2820, %v3095
      %3097 = vmatmul.bf16.gmra.mxu0 %v2750
      %v3098 = vpop.f32.mrf.mxu0
      %v3099 = vadd.f32 %v2820, %v3098
      %v3100 = vpop.f32.mrf.mxu0
      %v3101 = vadd.f32 %v2820, %v3100
      %3102 = vdwg.mxu0
      %3103 = vmatpush.bf16.msra.mxu0 %v2965
      %3104 = vmatpush.bf16.msra.mxu0 %v2964
      %3105 = vmatpush.bf16.msra.mxu0 %v2963
      %3106 = vmatpush.bf16.msra.mxu0 %v2962
      %3107 = vmatpush.bf16.msra.mxu0 %v2961
      %3108 = vmatpush.bf16.msra.mxu0 %v2960
      %3109 = vmatpush.bf16.msra.mxu0 %v2959
      %3110 = vmatpush.bf16.msra.mxu0 %v2958
      %3111 = vmatmul.bf16.gmra.mxu0 %v2691
      %v3112 = vpop.f32.mrf.mxu0
      %v3113 = vadd.f32 %v3024, %v3112
      %v3114 = vpop.f32.mrf.mxu0
      %v3115 = vadd.f32 %v3026, %v3114
      %3116 = vmatmul.bf16.gmra.mxu0 %v2695
      %v3117 = vpop.f32.mrf.mxu0
      %v3118 = vadd.f32 %v3029, %v3117
      %v3119 = vpop.f32.mrf.mxu0
      %v3120 = vadd.f32 %v3031, %v3119
      %3121 = vmatmul.bf16.gmra.mxu0 %v2699
      %v3122 = vpop.f32.mrf.mxu0
      %v3123 = vadd.f32 %v3034, %v3122
      %v3124 = vpop.f32.mrf.mxu0
      %v3125 = vadd.f32 %v3036, %v3124
      %3126 = vmatmul.bf16.gmra.mxu0 %v2703
      %v3127 = vpop.f32.mrf.mxu0
      %v3128 = vadd.f32 %v3039, %v3127
      %v3129 = vpop.f32.mrf.mxu0
      %v3130 = vadd.f32 %v3041, %v3129
      %3131 = vmatmul.bf16.gmra.mxu0 %v2707
      %v3132 = vpop.f32.mrf.mxu0
      %v3133 = vadd.f32 %v3044, %v3132
      %v3134 = vpop.f32.mrf.mxu0
      %v3135 = vadd.f32 %v3046, %v3134
      %3136 = vmatmul.bf16.gmra.mxu0 %v2711
      %v3137 = vpop.f32.mrf.mxu0
      %v3138 = vadd.f32 %v3049, %v3137
      %v3139 = vpop.f32.mrf.mxu0
      %v3140 = vadd.f32 %v3051, %v3139
      %3141 = vmatmul.bf16.gmra.mxu0 %v2715
      %v3142 = vpop.f32.mrf.mxu0
      %v3143 = vadd.f32 %v3054, %v3142
      %v3144 = vpop.f32.mrf.mxu0
      %v3145 = vadd.f32 %v3056, %v3144
      %3146 = vmatmul.bf16.gmra.mxu0 %v2719
      %v3147 = vpop.f32.mrf.mxu0
      %v3148 = vadd.f32 %v3059, %v3147
      %v3149 = vpop.f32.mrf.mxu0
      %v3150 = vadd.f32 %v3061, %v3149
      %3151 = vmatmul.bf16.gmra.mxu0 %v2723
      %v3152 = vpop.f32.mrf.mxu0
      %v3153 = vadd.f32 %v3064, %v3152
      %v3154 = vpop.f32.mrf.mxu0
      %v3155 = vadd.f32 %v3066, %v3154
      %3156 = vmatmul.bf16.gmra.mxu0 %v2727
      %v3157 = vpop.f32.mrf.mxu0
      %v3158 = vadd.f32 %v3069, %v3157
      %v3159 = vpop.f32.mrf.mxu0
      %v3160 = vadd.f32 %v3071, %v3159
      %3161 = vmatmul.bf16.gmra.mxu0 %v2731
      %v3162 = vpop.f32.mrf.mxu0
      %v3163 = vadd.f32 %v3074, %v3162
      %v3164 = vpop.f32.mrf.mxu0
      %v3165 = vadd.f32 %v3076, %v3164
      %3166 = vmatmul.bf16.gmra.mxu0 %v2735
      %v3167 = vpop.f32.mrf.mxu0
      %v3168 = vadd.f32 %v3079, %v3167
      %v3169 = vpop.f32.mrf.mxu0
      %v3170 = vadd.f32 %v3081, %v3169
      %3171 = vmatmul.bf16.gmra.mxu0 %v2739
      %v3172 = vpop.f32.mrf.mxu0
      %v3173 = vadd.f32 %v3084, %v3172
      %v3174 = vpop.f32.mrf.mxu0
      %v3175 = vadd.f32 %v3086, %v3174
      %3176 = vmatmul.bf16.gmra.mxu0 %v2743
      %v3177 = vpop.f32.mrf.mxu0
      %v3178 = vadd.f32 %v3089, %v3177
      %v3179 = vpop.f32.mrf.mxu0
      %v3180 = vadd.f32 %v3091, %v3179
      %3181 = vmatmul.bf16.gmra.mxu0 %v2747
      %v3182 = vpop.f32.mrf.mxu0
      %v3183 = vadd.f32 %v3094, %v3182
      %v3184 = vpop.f32.mrf.mxu0
      %v3185 = vadd.f32 %v3096, %v3184
      %3186 = vmatmul.bf16.gmra.mxu0 %v2751
      %v3187 = vpop.f32.mrf.mxu0
      %v3188 = vadd.f32 %v3099, %v3187
      %v3189 = vpop.f32.mrf.mxu0
      %v3190 = vadd.f32 %v3101, %v3189
      %3191 = vdwg.mxu0
      %3192 = vmatpush.bf16.msra.mxu0 %v2973
      %3193 = vmatpush.bf16.msra.mxu0 %v2972
      %3194 = vmatpush.bf16.msra.mxu0 %v2971
      %3195 = vmatpush.bf16.msra.mxu0 %v2970
      %3196 = vmatpush.bf16.msra.mxu0 %v2969
      %3197 = vmatpush.bf16.msra.mxu0 %v2968
      %3198 = vmatpush.bf16.msra.mxu0 %v2967
      %3199 = vmatpush.bf16.msra.mxu0 %v2966
      %3200 = vmatmul.bf16.gmra.mxu0 %v2692
      %v3201 = vpop.f32.mrf.mxu0
      %v3202 = vadd.f32 %v3113, %v3201
      %v3203 = vpop.f32.mrf.mxu0
      %v3204 = vadd.f32 %v3115, %v3203
      %3205 = vmatmul.bf16.gmra.mxu0 %v2696
      %v3206 = vpop.f32.mrf.mxu0
      %v3207 = vadd.f32 %v3118, %v3206
      %v3208 = vpop.f32.mrf.mxu0
      %v3209 = vadd.f32 %v3120, %v3208
      %3210 = vmatmul.bf16.gmra.mxu0 %v2700
      %v3211 = vpop.f32.mrf.mxu0
      %v3212 = vadd.f32 %v3123, %v3211
      %v3213 = vpop.f32.mrf.mxu0
      %v3214 = vadd.f32 %v3125, %v3213
      %3215 = vmatmul.bf16.gmra.mxu0 %v2704
      %v3216 = vpop.f32.mrf.mxu0
      %v3217 = vadd.f32 %v3128, %v3216
      %v3218 = vpop.f32.mrf.mxu0
      %v3219 = vadd.f32 %v3130, %v3218
      %3220 = vmatmul.bf16.gmra.mxu0 %v2708
      %v3221 = vpop.f32.mrf.mxu0
      %v3222 = vadd.f32 %v3133, %v3221
      %v3223 = vpop.f32.mrf.mxu0
      %v3224 = vadd.f32 %v3135, %v3223
      %3225 = vmatmul.bf16.gmra.mxu0 %v2712
      %v3226 = vpop.f32.mrf.mxu0
      %v3227 = vadd.f32 %v3138, %v3226
      %v3228 = vpop.f32.mrf.mxu0
      %v3229 = vadd.f32 %v3140, %v3228
      %3230 = vmatmul.bf16.gmra.mxu0 %v2716
      %v3231 = vpop.f32.mrf.mxu0
      %v3232 = vadd.f32 %v3143, %v3231
      %v3233 = vpop.f32.mrf.mxu0
      %v3234 = vadd.f32 %v3145, %v3233
      %3235 = vmatmul.bf16.gmra.mxu0 %v2720
      %v3236 = vpop.f32.mrf.mxu0
      %v3237 = vadd.f32 %v3148, %v3236
      %v3238 = vpop.f32.mrf.mxu0
      %v3239 = vadd.f32 %v3150, %v3238
      %3240 = vmatmul.bf16.gmra.mxu0 %v2724
      %v3241 = vpop.f32.mrf.mxu0
      %v3242 = vadd.f32 %v3153, %v3241
      %v3243 = vpop.f32.mrf.mxu0
      %v3244 = vadd.f32 %v3155, %v3243
      %3245 = vmatmul.bf16.gmra.mxu0 %v2728
      %v3246 = vpop.f32.mrf.mxu0
      %v3247 = vadd.f32 %v3158, %v3246
      %v3248 = vpop.f32.mrf.mxu0
      %v3249 = vadd.f32 %v3160, %v3248
      %3250 = vmatmul.bf16.gmra.mxu0 %v2732
      %v3251 = vpop.f32.mrf.mxu0
      %v3252 = vadd.f32 %v3163, %v3251
      %v3253 = vpop.f32.mrf.mxu0
      %v3254 = vadd.f32 %v3165, %v3253
      %3255 = vmatmul.bf16.gmra.mxu0 %v2736
      %v3256 = vpop.f32.mrf.mxu0
      %v3257 = vadd.f32 %v3168, %v3256
      %v3258 = vpop.f32.mrf.mxu0
      %v3259 = vadd.f32 %v3170, %v3258
      %3260 = vmatmul.bf16.gmra.mxu0 %v2740
      %v3261 = vpop.f32.mrf.mxu0
      %v3262 = vadd.f32 %v3173, %v3261
      %v3263 = vpop.f32.mrf.mxu0
      %v3264 = vadd.f32 %v3175, %v3263
      %3265 = vmatmul.bf16.gmra.mxu0 %v2744
      %v3266 = vpop.f32.mrf.mxu0
      %v3267 = vadd.f32 %v3178, %v3266
      %v3268 = vpop.f32.mrf.mxu0
      %v3269 = vadd.f32 %v3180, %v3268
      %3270 = vmatmul.bf16.gmra.mxu0 %v2748
      %v3271 = vpop.f32.mrf.mxu0
      %v3272 = vadd.f32 %v3183, %v3271
      %v3273 = vpop.f32.mrf.mxu0
      %v3274 = vadd.f32 %v3185, %v3273
      %3275 = vmatmul.bf16.gmra.mxu0 %v2752
      %v3276 = vpop.f32.mrf.mxu0
      %v3277 = vadd.f32 %v3188, %v3276
      %v3278 = vpop.f32.mrf.mxu0
      %v3279 = vadd.f32 %v3190, %v3278
      %3280 = vdwg.mxu0
      %3281 = vmatpush.bf16.msra.mxu0 %v2981
      %3282 = vmatpush.bf16.msra.mxu0 %v2980
      %3283 = vmatpush.bf16.msra.mxu0 %v2979
      %3284 = vmatpush.bf16.msra.mxu0 %v2978
      %3285 = vmatpush.bf16.msra.mxu0 %v2977
      %3286 = vmatpush.bf16.msra.mxu0 %v2976
      %3287 = vmatpush.bf16.msra.mxu0 %v2975
      %3288 = vmatpush.bf16.msra.mxu0 %v2974
      %3289 = vmatmul.bf16.gmra.mxu0 %v2693
      %v3290 = vpop.f32.mrf.mxu0
      %v3291 = vadd.f32 %v3202, %v3290
      %v3292 = vpop.f32.mrf.mxu0
      %v3293 = vadd.f32 %v3204, %v3292
      %3294 = vmatmul.bf16.gmra.mxu0 %v2697
      %v3295 = vpop.f32.mrf.mxu0
      %v3296 = vadd.f32 %v3207, %v3295
      %v3297 = vpop.f32.mrf.mxu0
      %v3298 = vadd.f32 %v3209, %v3297
      %3299 = vmatmul.bf16.gmra.mxu0 %v2701
      %v3300 = vpop.f32.mrf.mxu0
      %v3301 = vadd.f32 %v3212, %v3300
      %v3302 = vpop.f32.mrf.mxu0
      %v3303 = vadd.f32 %v3214, %v3302
      %3304 = vmatmul.bf16.gmra.mxu0 %v2705
      %v3305 = vpop.f32.mrf.mxu0
      %v3306 = vadd.f32 %v3217, %v3305
      %v3307 = vpop.f32.mrf.mxu0
      %v3308 = vadd.f32 %v3219, %v3307
      %3309 = vmatmul.bf16.gmra.mxu0 %v2709
      %v3310 = vpop.f32.mrf.mxu0
      %v3311 = vadd.f32 %v3222, %v3310
      %v3312 = vpop.f32.mrf.mxu0
      %v3313 = vadd.f32 %v3224, %v3312
      %3314 = vmatmul.bf16.gmra.mxu0 %v2713
      %v3315 = vpop.f32.mrf.mxu0
      %v3316 = vadd.f32 %v3227, %v3315
      %v3317 = vpop.f32.mrf.mxu0
      %v3318 = vadd.f32 %v3229, %v3317
      %3319 = vmatmul.bf16.gmra.mxu0 %v2717
      %v3320 = vpop.f32.mrf.mxu0
      %v3321 = vadd.f32 %v3232, %v3320
      %v3322 = vpop.f32.mrf.mxu0
      %v3323 = vadd.f32 %v3234, %v3322
      %3324 = vmatmul.bf16.gmra.mxu0 %v2721
      %v3325 = vpop.f32.mrf.mxu0
      %v3326 = vadd.f32 %v3237, %v3325
      %v3327 = vpop.f32.mrf.mxu0
      %v3328 = vadd.f32 %v3239, %v3327
      %3329 = vmatmul.bf16.gmra.mxu0 %v2725
      %v3330 = vpop.f32.mrf.mxu0
      %v3331 = vadd.f32 %v3242, %v3330
      %v3332 = vpop.f32.mrf.mxu0
      %v3333 = vadd.f32 %v3244, %v3332
      %3334 = vmatmul.bf16.gmra.mxu0 %v2729
      %v3335 = vpop.f32.mrf.mxu0
      %v3336 = vadd.f32 %v3247, %v3335
      %v3337 = vpop.f32.mrf.mxu0
      %v3338 = vadd.f32 %v3249, %v3337
      %3339 = vmatmul.bf16.gmra.mxu0 %v2733
      %v3340 = vpop.f32.mrf.mxu0
      %v3341 = vadd.f32 %v3252, %v3340
      %v3342 = vpop.f32.mrf.mxu0
      %v3343 = vadd.f32 %v3254, %v3342
      %3344 = vmatmul.bf16.gmra.mxu0 %v2737
      %v3345 = vpop.f32.mrf.mxu0
      %v3346 = vadd.f32 %v3257, %v3345
      %v3347 = vpop.f32.mrf.mxu0
      %v3348 = vadd.f32 %v3259, %v3347
      %3349 = vmatmul.bf16.gmra.mxu0 %v2741
      %v3350 = vpop.f32.mrf.mxu0
      %v3351 = vadd.f32 %v3262, %v3350
      %v3352 = vpop.f32.mrf.mxu0
      %v3353 = vadd.f32 %v3264, %v3352
      %3354 = vmatmul.bf16.gmra.mxu0 %v2745
      %v3355 = vpop.f32.mrf.mxu0
      %v3356 = vadd.f32 %v3267, %v3355
      %v3357 = vpop.f32.mrf.mxu0
      %v3358 = vadd.f32 %v3269, %v3357
      %3359 = vmatmul.bf16.gmra.mxu0 %v2749
      %v3360 = vpop.f32.mrf.mxu0
      %v3361 = vadd.f32 %v3272, %v3360
      %v3362 = vpop.f32.mrf.mxu0
      %v3363 = vadd.f32 %v3274, %v3362
      %3364 = vmatmul.bf16.gmra.mxu0 %v2753
      %v3365 = vpop.f32.mrf.mxu0
      %v3366 = vadd.f32 %v3277, %v3365
      %v3367 = vpop.f32.mrf.mxu0
      %v3368 = vadd.f32 %v3279, %v3367
      %3369 = vdwg.mxu0
      %3370 = vst [vmem:[%s356] sm:$0xff] %v3291
      %3371 = vst [vmem:[%s356 + $0x8] sm:$0xff] %v3293
      %3372 = vst [vmem:[%s356 + $0x10] sm:$0xff] %v3296
      %3373 = vst [vmem:[%s356 + $0x18] sm:$0xff] %v3298
      %3374 = vst [vmem:[%s356 + $0x20] sm:$0xff] %v3301
      %3375 = vst [vmem:[%s356 + $0x28] sm:$0xff] %v3303
      %3376 = vst [vmem:[%s356 + $0x30] sm:$0xff] %v3306
      %3377 = vst [vmem:[%s356 + $0x38] sm:$0xff] %v3308
      %3378 = vst [vmem:[%s356 + $0x40] sm:$0xff] %v3311
      %3379 = vst [vmem:[%s356 + $0x48] sm:$0xff] %v3313
      %3380 = vst [vmem:[%s356 + $0x50] sm:$0xff] %v3316
      %3381 = vst [vmem:[%s356 + $0x58] sm:$0xff] %v3318
      %3382 = vst [vmem:[%s356 + $0x60] sm:$0xff] %v3321
      %3383 = vst [vmem:[%s356 + $0x68] sm:$0xff] %v3323
      %3384 = vst [vmem:[%s356 + $0x70] sm:$0xff] %v3326
      %3385 = vst [vmem:[%s356 + $0x78] sm:$0xff] %v3328
      %3386 = vst [vmem:[%s356 + $0x80] sm:$0xff] %v3331
      %3387 = vst [vmem:[%s356 + $0x88] sm:$0xff] %v3333
      %3388 = vst [vmem:[%s356 + $0x90] sm:$0xff] %v3336
      %3389 = vst [vmem:[%s356 + $0x98] sm:$0xff] %v3338
      %3390 = vst [vmem:[%s356 + $0xa0] sm:$0xff] %v3341
      %3391 = vst [vmem:[%s356 + $0xa8] sm:$0xff] %v3343
      %3392 = vst [vmem:[%s356 + $0xb0] sm:$0xff] %v3346
      %3393 = vst [vmem:[%s356 + $0xb8] sm:$0xff] %v3348
      %3394 = vst [vmem:[%s356 + $0xc0] sm:$0xff] %v3351
      %3395 = vst [vmem:[%s356 + $0xc8] sm:$0xff] %v3353
      %3396 = vst [vmem:[%s356 + $0xd0] sm:$0xff] %v3356
      %3397 = vst [vmem:[%s356 + $0xd8] sm:$0xff] %v3358
      %3398 = vst [vmem:[%s356 + $0xe0] sm:$0xff] %v3361
      %3399 = vst [vmem:[%s356 + $0xe8] sm:$0xff] %v3363
      %3400 = vst [vmem:[%s356 + $0xf0] sm:$0xff] %v3366
      %3401 = vst [vmem:[%s356 + $0xf8] sm:$0xff] %v3368
      %s3402 = smul.u32 32, %s20
      %p3403 = scmp.lt.s32.totalorder %s3402, 255
      %s3404 = scalar_select %p3403, %s3402, 255
      %s3405 = smul.addr %s3404, 8
      %s3406 = scalar_lea.vmem %s9, %s3405
      // Predicated region
      $region57: #{vae_forward.1} parent=55 // pred_check
        %p3407 = pneg %p237
      $region58: #{vae_forward.1} parent=55 // pred_check_branch
        %3409 = sbr.rel (%p3407) target = $region60
      $region59: #{vae_forward.1} parent=55 // pred_region
        %s3410 = smul.u32 32, %s20
      $region60: #{vae_forward.1} parent=55 // pred_fallthru
        _
    $region56: #{vae_forward.1} parent=5 // pred_fallthru
      _
    %p3411 = scmp.le.s32.totalorder 2, %s15
    // Predicated region
    $region61: #{vae_forward.1} parent=5 // pred_check
      %p3412 = pneg %p3411
    $region62: #{vae_forward.1} parent=5 // pred_check_branch
      %3414 = sbr.rel (%p3412) target = $region64
    $region63: #{vae_forward.1} parent=5 // pred_region
      %s3415 = ssub.s32 %s15, 2
      // Predicated region
      $region65: #{vae_forward.1} parent=63 // pred_check
        %p3416 = pneg %p243
      $region66: #{vae_forward.1} parent=63 // pred_check_branch
        %3418 = sbr.rel (%p3416) target = $region68
      $region67: #{vae_forward.1} parent=63 // pred_region
        %s3419 = smul.u32 32, %s21
        %p3420 = scmp.lt.s32.totalorder %s3419, 255
        %s3421 = scalar_select %p3420, %s3419, 255
        %s3422 = smul.addr %s3421, 8
        %s3423 = scalar_lea.vmem %s9, %s3422
      $region68: #{vae_forward.1} parent=63 // pred_fallthru
        _
    $region64: #{vae_forward.1} parent=5 // pred_fallthru
      _
  $region6: #{vae_forward.1} parent=0 // loop_footer
    %s19 = sadd.s32 1, %s15
  $region7: #{vae_forward.1} parent=0 // loop_footer_branch
    %14 = sbr.rel target = $region3
  $region8: #{vae_forward.1} parent=0 // loop_exit
    _

</llo_original>
